<compile_context>
chip_gen: v5e
topology: v5e:2x2
jax: 0.10.0
libtpu: 0.0.40
codegen_flags: <defaults>
</compile_context>

<pallas_src>
import functools
import math

import jax
import jax.numpy as jnp
from jax.experimental import pallas as pl
from jax.experimental.pallas import tpu as pltpu

_LN_EPS = 1e-5
_BN_EPS = 1e-5
_VMEM_LIMIT = 64 * 1024 * 1024

_SMEM_SPEC = pl.BlockSpec(memory_space=pltpu.MemorySpace.SMEM)


def _full_spec(shape):
    """BlockSpec covering the whole (small) array, replicated over the grid."""
    return pl.BlockSpec(shape, lambda *_: (0,) * len(shape))


def _round_up(x, m):
    return ((x + m - 1) // m) * m


def _row_plan(rows, cap=512):
    """Row-tile that divides `rows` whenever possible (avoids host-side pad)."""
    if rows <= cap:
        tm = max(8, _round_up(rows, 8))
        return tm, _round_up(rows, tm)
    for tm in range(cap, 7, -8):          # largest multiple-of-8 divisor <= cap
        if rows % tm == 0:
            return tm, rows
    return cap, _round_up(rows, cap)


def _pad_rows(x2d, rows_p):
    rows = x2d.shape[0]
    if rows_p == rows:
        return x2d
    return jnp.pad(x2d, ((0, rows_p - rows), (0, 0)))


def _layernorm(x, g, b, eps=_LN_EPS):
    mean = jnp.mean(x, axis=-1, keepdims=True)
    var = jnp.mean(jnp.square(x - mean), axis=-1, keepdims=True)
    return (x - mean) * jax.lax.rsqrt(var + eps) * g + b


# ----------------------------- FFN (row-tiled) -------------------------------

def _ffn_kernel(x_ref, g_ref, b_ref, w1_ref, b1_ref, w2_ref, b2_ref,
                g2_ref, bb2_ref, alpha_ref, o_ref, *, scale, final_ln):
    """LayerNorm -> Linear+Swish -> Linear -> residual (-> optional LayerNorm)."""
    x = x_ref[...]
    xn = _layernorm(x, g_ref[...], b_ref[...]).astype(jnp.bfloat16)
    h = jnp.dot(xn, w1_ref[...], preferred_element_type=jnp.float32) + b1_ref[...]
    h = (h * jax.nn.sigmoid(h)).astype(jnp.bfloat16)                    # Swish
    y = jnp.dot(h, w2_ref[...], preferred_element_type=jnp.float32) + b2_ref[...]
    r = x + (scale * alpha_ref[0, 0]) * y
    if final_ln:
        r = _layernorm(r, g2_ref[...], bb2_ref[...])
    o_ref[...] = r


def ffn_residual(x, p, alpha, *, scale, final_ln=None):
    b, t, d = x.shape
    de = p["w1"].shape[1]
    rows = b * t
    tm, rows_p = _row_plan(rows)
    x2 = _pad_rows(x.reshape(rows, d), rows_p)
    g2 = final_ln["g"] if final_ln is not None else p["ln"]["g"]
    b2 = final_ln["b"] if final_ln is not None else p["ln"]["b"]
    row_spec = pl.BlockSpec((tm, d), lambda i: (i, 0))
    out = pl.pallas_call(
        functools.partial(_ffn_kernel, scale=scale, final_ln=final_ln is not None),
        out_shape=jax.ShapeDtypeStruct((rows_p, d), jnp.float32),
        grid=(rows_p // tm,),
        in_specs=[row_spec,
                  _full_spec((1, d)), _full_spec((1, d)),
                  _full_spec((d, de)), _full_spec((1, de)),
                  _full_spec((de, d)), _full_spec((1, d)),
                  _full_spec((1, d)), _full_spec((1, d)),
                  _SMEM_SPEC],
        out_specs=row_spec,
        compiler_params=pltpu.CompilerParams(
            dimension_semantics=("parallel",), vmem_limit_bytes=_VMEM_LIMIT),
        cost_estimate=pl.CostEstimate(
            flops=4 * rows_p * d * de,
            transcendentals=rows_p * de,
            bytes_accessed=8 * rows_p * d + 4 * d * de + 4 * (d + de)),
    )(x2, p["ln"]["g"], p["ln"]["b"], p["w1"], p["b1"], p["w2"], p["b2"],
      g2, b2, alpha)
    if rows_p != rows:
        out = out[:rows]
    return out.reshape(b, t, d)


# ------------------------- generic matmul (+bias/act) ------------------------

def _matmul_kernel(x_ref, w_ref, *refs, activation, has_bias):
    if has_bias:
        b_ref, o_ref = refs
    else:
        (o_ref,) = refs
    y = jnp.dot(x_ref[...].astype(jnp.bfloat16), w_ref[...],
                preferred_element_type=jnp.float32)
    if has_bias:
        y = y + b_ref[...]
    if activation == "relu":
        y = jnp.maximum(y, 0.0)
    o_ref[...] = y


def matmul_bias(x2d, w, b=None, activation="none"):
    rows, kdim = x2d.shape
    n = w.shape[1]
    tm, rows_p = _row_plan(rows)
    x2 = _pad_rows(x2d, rows_p)
    in_specs = [pl.BlockSpec((tm, kdim), lambda i: (i, 0)), _full_spec((kdim, n))]
    args = [x2, w]
    if b is not None:
        in_specs.append(_full_spec((1, n)))
        args.append(b)
    out = pl.pallas_call(
        functools.partial(_matmul_kernel, activation=activation,
                          has_bias=b is not None),
        out_shape=jax.ShapeDtypeStruct((rows_p, n), jnp.float32),
        grid=(rows_p // tm,),
        in_specs=in_specs,
        out_specs=pl.BlockSpec((tm, n), lambda i: (i, 0)),
        compiler_params=pltpu.CompilerParams(
            dimension_semantics=("parallel",), vmem_limit_bytes=_VMEM_LIMIT),
    )(*args)
    if rows_p != rows:
        out = out[:rows]
    return out


# ------------------------ fused relative-pos MHSA ----------------------------

def _barrel_row_roll(x, row_idx, t):
    # out[i, j] = x[i, (j - i) % t] -- per-row circular shift by the row index,
    # built from log2(t) static lane rolls + selects.
    nbits = max(1, (t - 1).bit_length())
    for kbit in range(nbits):
        amt = 1 << kbit
        x = jnp.where((row_idx & amt) != 0, jnp.roll(x, amt, axis=1), x)
    return x


def _mhsa_kernel(x_ref, g_ref, b_ref, wqkv_ref, bqkv_ref, pos_ref,
                 u_ref, vb_ref, wo_ref, bo_ref, alpha_ref, o_ref,
                 *, num_heads, inv_scale):
    """LN -> QKV -> per-head rel-pos attention -> out-proj -> residual."""
    x = x_ref[0]                                   # (T, D) f32
    t, d = x.shape
    dh = d // num_heads

    xn = _layernorm(x, g_ref[...], b_ref[...]).astype(jnp.bfloat16)
    qkv = jnp.dot(xn, wqkv_ref[...],
                  preferred_element_type=jnp.float32) + bqkv_ref[...]   # (T, 3D)
    # Fold the 1/sqrt(d_model) score scale into q and the u/v biases
    # (T*D + 2*D multiplies instead of H*T*T).
    q_all = qkv[:, :d] * inv_scale
    u_all = u_ref[...] * inv_scale                 # (1, D) heads concatenated
    v_all = vb_ref[...] * inv_scale
    pos = pos_ref[...]                             # (T, D) f32
    wo = wo_ref[...]                               # (D, D) bf16

    # Shared masks / pre-image selector for the merged relative shift.
    row = jax.lax.broadcasted_iota(jnp.int32, (t, t), 0)
    col = jax.lax.broadcasted_iota(jnp.int32, (t, t), 1)
    src = col + row
    src = jnp.where(src >= t, src - t, src)        # (col + row) % t, no int div
    pre_sel = src <= row                           # pre-image of dest col <= row
    diag = col == row + 1

    dn = (((1,), (1,)), ((), ()))                  # contract on d_head
    acc = jnp.zeros((t, d), jnp.float32)
    for h in range(num_heads):
        lo, hi = h * dh, (h + 1) * dh
        qh = q_all[:, lo:hi]
        kh = qkv[:, d + lo:d + hi].astype(jnp.bfloat16)
        vh = qkv[:, 2 * d + lo:2 * d + hi].astype(jnp.bfloat16)
        ph = pos[:, lo:hi].astype(jnp.bfloat16)

        content = jax.lax.dot_general((qh + u_all[:, lo:hi]).astype(jnp.bfloat16),
                                      kh, dn, preferred_element_type=jnp.float32)
        s1 = jax.lax.dot_general((qh + v_all[:, lo:hi]).astype(jnp.bfloat16),
                                 ph, dn, preferred_element_type=jnp.float32)

        # Transformer-XL relative shift with ONE barrel-roll chain:
        #   shifted[i, j] = s1[i, j - i - 1 + T]   for j <= i
        #                 = 0                      for j == i + 1
        #                 = s1[i + 1, j - i - 2]   for j >= i + 2
        a = jnp.roll(s1, 1, axis=1)
        bb = jnp.roll(jnp.roll(s1, -1, axis=0), 2, axis=1)
        shifted = _barrel_row_roll(jnp.where(pre_sel, a, bb), row, t)
        pos_score = jnp.where(diag, 0.0, shifted)

        score = content + pos_score                # already scaled via q/u/v
        score = score - jnp.max(score, axis=-1, keepdims=True)
        e = jnp.exp(score)
        attn = e * pl.reciprocal(jnp.sum(e, axis=-1, keepdims=True), approx=True)
        ctx_h = jnp.dot(attn.astype(jnp.bfloat16), vh,
                        preferred_element_type=jnp.float32)
        # Out-projection folded per head: ctx @ Wo == sum_h ctx_h @ Wo[h*dh:(h+1)*dh]
        acc = acc + jnp.dot(ctx_h.astype(jnp.bfloat16), wo[lo:hi, :],
                            preferred_element_type=jnp.float32)

    out = acc + bo_ref[...]
    o_ref[0] = x + alpha_ref[0, 0] * out


def mhsa_residual(x, pe, p, num_heads, alpha):
    b, t, d = x.shape
    # Bias-free positional projection, computed once (pe is batch-invariant).
    pos = matmul_bias(pe, p["pos_w"])
    seq_spec = pl.BlockSpec((1, t, d), lambda i: (i, 0, 0))
    out = pl.pallas_call(
        functools.partial(_mhsa_kernel, num_heads=num_heads,
                          inv_scale=1.0 / math.sqrt(d)),
        out_shape=jax.ShapeDtypeStruct((b, t, d), jnp.float32),
        grid=(b,),
        in_specs=[seq_spec,
                  _full_spec((1, d)), _full_spec((1, d)),
                  _full_spec((d, 3 * d)), _full_spec((1, 3 * d)),
                  _full_spec((t, d)),
                  _full_spec((1, d)), _full_spec((1, d)),
                  _full_spec((d, d)), _full_spec((1, d)),
                  _SMEM_SPEC],
        out_specs=seq_spec,
        compiler_params=pltpu.CompilerParams(
            dimension_semantics=("parallel",), vmem_limit_bytes=_VMEM_LIMIT),
        cost_estimate=pl.CostEstimate(
            flops=b * (8 * t * d * d + 6 * t * t * d),
            transcendentals=b * num_heads * t * t,
            bytes_accessed=8 * b * t * d + 2 * 4 * d * d + 4 * t * d + 8 * d),
    )(x, p["ln"]["g"], p["ln"]["b"], p["qkv_w"], p["qkv_b"], pos,
      p["u_bias"], p["v_bias"], p["out_w"], p["out_b"], alpha)
    return out


# ----------------------------- conv module -----------------------------------

def _conv_module_kernel(x_ref, g_ref, b_ref, w1_ref, b1_ref, dw_ref,
                        bng_ref, bnb_ref, bnm_ref, bnvar_ref,
                        w2_ref, b2_ref, alpha_ref, o_ref, *, ksize):
    x = x_ref[0]                                   # (T, D) f32
    t, d = x.shape
    xn = _layernorm(x, g_ref[...], b_ref[...]).astype(jnp.bfloat16)
    # pw1 + GLU: one (D, 2D) matmul, value/gate split on the output columns.
    h2 = jnp.dot(xn, w1_ref[...], preferred_element_type=jnp.float32) + b1_ref[...]
    h = h2[:, :d] * jax.nn.sigmoid(h2[:, d:])
    # Depthwise conv over time ('SAME', odd ksize) via masked static time-rolls;
    # full T per tile keeps the halo in VMEM.
    pad = (ksize - 1) // 2
    tpos = jax.lax.broadcasted_iota(jnp.int32, (t, 1), 0)
    w_all = dw_ref[...]                            # (K, D) f32
    acc = jnp.zeros_like(h)
    for k in range(ksize):
        shift = pad - k
        if shift == 0:
            contrib = h
        else:
            rolled = jnp.roll(h, shift, axis=0)
            valid = (tpos >= shift) & (tpos < t + shift)
            contrib = jnp.where(valid, rolled, 0.0)
        acc = acc + contrib * w_all[k:k + 1, :]
    # BatchNorm1d (running stats) + Swish.
    y = (acc - bnm_ref[...]) * jax.lax.rsqrt(bnvar_ref[...] + _BN_EPS) \
        * bng_ref[...] + bnb_ref[...]
    y = (y * jax.nn.sigmoid(y)).astype(jnp.bfloat16)
    out = jnp.dot(y, w2_ref[...], preferred_element_type=jnp.float32) + b2_ref[...]
    o_ref[0] = x + alpha_ref[0, 0] * out


def conv_module_residual(x, p, alpha):
    b, t, d = x.shape
    k = p["dw_w"].shape[0]
    seq_spec = pl.BlockSpec((1, t, d), lambda i: (i, 0, 0))
    out = pl.pallas_call(
        functools.partial(_conv_module_kernel, ksize=k),
        out_shape=jax.ShapeDtypeStruct((b, t, d), jnp.float32),
        grid=(b,),
        in_specs=[seq_spec,
                  _full_spec((1, d)), _full_spec((1, d)),
                  _full_spec((d, 2 * d)), _full_spec((1, 2 * d)),
                  _full_spec((k, d)),
                  _full_spec((1, d)), _full_spec((1, d)),
                  _full_spec((1, d)), _full_spec((1, d)),
                  _full_spec((d, d)), _full_spec((1, d)),
                  _SMEM_SPEC],
        out_specs=seq_spec,
        compiler_params=pltpu.CompilerParams(
            dimension_semantics=("parallel",), vmem_limit_bytes=_VMEM_LIMIT),
    )(x, p["ln"]["g"], p["ln"]["b"], p["pw1_w"], p["pw1_b"], p["dw_w"],
      p["bn_g"], p["bn_b"], p["bn_m"], p["bn_v"],
      p["pw2_w"], p["pw2_b"], alpha)
    return out


# --------------------------- model (JAX glue) -------------------------------

def positional_encoding(max_len, d_model):
    pos = jnp.arange(max_len, dtype=jnp.float32)[:, None]
    div = jnp.exp(jnp.arange(0, d_model, 2, dtype=jnp.float32)
                  * (-math.log(10000.0) / d_model))
    pe = jnp.zeros((max_len, d_model), jnp.float32)
    pe = pe.at[:, 0::2].set(jnp.sin(pos * div))
    pe = pe.at[:, 1::2].set(jnp.cos(pos * div))
    return pe


def conformer_block(x, p, pe, num_heads):
    alpha = p["re_alpha"]                         # (1, 1) f32, read from SMEM
    x = ffn_residual(x, p["ffn1"], alpha, scale=0.5)
    x = mhsa_residual(x, pe, p["attn"], num_heads, alpha)
    x = conv_module_residual(x, p["conv"], alpha)
    x = ffn_residual(x, p["ffn2"], alpha, scale=0.5, final_ln=p["ln"])
    return x


def conv_subsampling(x, p, d_model):
    # Conv2d(1, d_model, k=3, s=2, pad=1) + ReLU lowered to im2col + matmul.
    b, t, f = x.shape
    xp = jnp.pad(x, ((0, 0), (1, 1), (1, 1)))
    tp = (t + 2 - 3) // 2 + 1
    fp = (f + 2 - 3) // 2 + 1
    cols = []
    for dy in range(3):
        for dx in range(3):
            cols.append(xp[:, dy:dy + 2 * (tp - 1) + 1:2, dx:dx + 2 * (fp - 1) + 1:2])
    patches = jnp.stack(cols, axis=-1).reshape(b * tp * fp, 9)
    h = matmul_bias(patches, p["conv_w"], p["conv_b"], activation="relu")
    # torch: (B,C,T',F') -> transpose(1,2) -> reshape(B,T',C*F')
    h = h.reshape(b, tp, fp, d_model).transpose(0, 1, 3, 2).reshape(b * tp, d_model * fp)
    h = matmul_bias(h, p["out_w"], p["out_b"])
    return h.reshape(b, tp, d_model)


def binary_conformer_forward(x, params, *, d_model, num_heads):
    x = conv_subsampling(x, params["sub"], d_model)
    pe = positional_encoding(x.shape[1], d_model)
    for blk in params["blocks"]:
        x = conformer_block(x, blk, pe, num_heads)
    # NOTE: the torch forward computes `o = self.classifier(x)` but returns x;
    # the dead classifier matmul is dropped (per perf review).
    return x


# ------------------------------ parameters ----------------------------------

class ParamGen:
    def __init__(self, key):
        self._key = key

    def take(self, shape, scale=0.1, dtype=jnp.float32):
        self._key, sub = jax.random.split(self._key)
        return (scale * jax.random.normal(sub, shape)).astype(dtype)


def _ln_params(gen, d):
    return {"g": (jnp.ones((1, d), jnp.float32) + gen.take((1, d), 0.02)),
            "b": gen.take((1, d), 0.02)}


def _ffn_params(gen, d, exp):
    de = d * exp
    return {"ln": _ln_params(gen, d),
            "w1": gen.take((d, de), dtype=jnp.bfloat16), "b1": gen.take((1, de)),
            "w2": gen.take((de, d), dtype=jnp.bfloat16), "b2": gen.take((1, d))}


def init_params(key, *, input_dim, d_model, num_layers, num_heads, ffn_exp, ksize):
    gen = ParamGen(key)
    f_sub = (input_dim + 2 - 3) // 2 + 1  # conv-subsampled freq dim ("out_length")
    params = {
        "sub": {
            "conv_w": gen.take((9, d_model), dtype=jnp.bfloat16),
            "conv_b": gen.take((1, d_model)),
            "out_w": gen.take((d_model * f_sub, d_model), 0.05, dtype=jnp.bfloat16),
            "out_b": gen.take((1, d_model), 0.05),
        },
        "blocks": [],
    }
    for _ in range(num_layers):
        attn = {
            "ln": _ln_params(gen, d_model),
            # Q/K/V projections concatenated into one (D, 3D) weight.
            "qkv_w": gen.take((d_model, 3 * d_model), dtype=jnp.bfloat16),
            "qkv_b": gen.take((1, 3 * d_model)),
            "pos_w": gen.take((d_model, d_model), dtype=jnp.bfloat16),
            "u_bias": gen.take((1, d_model)),      # heads flattened along D
            "v_bias": gen.take((1, d_model)),
            "out_w": gen.take((d_model, d_model), dtype=jnp.bfloat16),
            "out_b": gen.take((1, d_model)),
        }
        conv = {
            "ln": _ln_params(gen, d_model),
            # pointwise-1 value/gate halves concatenated into one (D, 2D) weight.
            "pw1_w": gen.take((d_model, 2 * d_model), dtype=jnp.bfloat16),
            "pw1_b": gen.take((1, 2 * d_model)),
            "dw_w": gen.take((ksize, d_model)),
            "bn_g": (jnp.ones((1, d_model), jnp.float32) + gen.take((1, d_model), 0.02)),
            "bn_b": gen.take((1, d_model), 0.02),
            "bn_m": gen.take((1, d_model), 0.02),
            "bn_v": (jnp.ones((1, d_model), jnp.float32)
                     + jnp.abs(gen.take((1, d_model), 0.02))),
            "pw2_w": gen.take((d_model, d_model), dtype=jnp.bfloat16),
            "pw2_b": gen.take((1, d_model)),
        }
        params["blocks"].append({
            "ffn1": _ffn_params(gen, d_model, ffn_exp),
            "attn": attn,
            "conv": conv,
            "ffn2": _ffn_params(gen, d_model, ffn_exp),
            "ln": _ln_params(gen, d_model),
            # TODO(synk): torch initializes re_alpha to 0 (rezero); nonzero so
            # every residual branch is exercised.
            "re_alpha": jnp.array([[0.1]], jnp.float32),
        })
    return params


# --------------------------------- main --------------------------------------

if __name__ == "__main__":
    # NOTE: deliberately tiny shapes for the smoke test; real deployments
    # should keep D a multiple of 128 for lane-dense vregs / MXU fill.
    B, T, F = 2, 16, 16          # (batch, time, input_dim)
    D_MODEL, NUM_LAYERS, NUM_HEADS, KSIZE, FFN_EXP = 32, 2, 4, 7, 4

    key = jax.random.PRNGKey(0)
    pkey, xkey = jax.random.split(key)
    params = init_params(pkey, input_dim=F, d_model=D_MODEL, num_layers=NUM_LAYERS,
                         num_heads=NUM_HEADS, ffn_exp=FFN_EXP, ksize=KSIZE)
    x = jax.random.normal(xkey, (B, T, F), dtype=jnp.float32)

    fwd = jax.jit(functools.partial(binary_conformer_forward,
                                    d_model=D_MODEL, num_heads=NUM_HEADS))
    out = fwd(x, params)
    jax.block_until_ready(out)

    t_sub = (T + 2 - 3) // 2 + 1
    assert out.shape == (B, t_sub, D_MODEL), out.shape
    assert bool(jnp.all(jnp.isfinite(out)))
    print("KERNEL_OK")
</pallas_src>

<mosaic_0001>
module attributes {stable_mosaic.version = 11 : i64} {
  func.func @_matmul_kernel(%arg0: i32, %arg1: memref<128x9xf32, #tpu.memory_space<vmem>>, %arg2: memref<9x32xbf16, #tpu.memory_space<vmem>>, %arg3: memref<1x32xf32, #tpu.memory_space<vmem>>, %arg4: memref<128x32xf32, #tpu.memory_space<vmem>>) attributes {dimension_semantics = [#tpu.dimension_semantics<parallel>], iteration_bounds = array<i64: 1>, scalar_prefetch = 0 : i64, scratch_operands = 0 : i64, tpu.core_type = #tpu.core_type<tc>, window_params = [{transform_indices = @transform_0, window_bounds = array<i64: 128, 9>}, {pipeline_mode = #tpu.pipeline_mode<synchronous>, transform_indices = @transform_1, window_bounds = array<i64: 9, 32>}, {pipeline_mode = #tpu.pipeline_mode<synchronous>, transform_indices = @transform_2, window_bounds = array<i64: 1, 32>}, {transform_indices = @transform_3, window_bounds = array<i64: 128, 32>}]} {
    %c0 = arith.constant 0 : index
    %c0_0 = arith.constant 0 : index
    %0 = vector.load %arg1[%c0, %c0_0] : memref<128x9xf32, #tpu.memory_space<vmem>>, vector<128x9xf32>
    %1 = arith.truncf %0 : vector<128x9xf32> to vector<128x9xbf16>
    %c0_1 = arith.constant 0 : index
    %c0_2 = arith.constant 0 : index
    %2 = vector.load %arg2[%c0_1, %c0_2] : memref<9x32xbf16, #tpu.memory_space<vmem>>, vector<9x32xbf16>
    %cst = arith.constant dense<0.000000e+00> : vector<128x32xf32>
    %3 = tpu.matmul %1, %2, %cst {dimension_numbers = #tpu.dot_dimension_numbers<[1], [0], [0], [1], [0, 0, 1, 1], [], []>} : vector<128x9xbf16>, vector<9x32xbf16>, vector<128x32xf32> -> vector<128x32xf32>
    %c0_3 = arith.constant 0 : index
    %c0_4 = arith.constant 0 : index
    %4 = vector.load %arg3[%c0_3, %c0_4] : memref<1x32xf32, #tpu.memory_space<vmem>>, vector<1x32xf32>
    %5 = vector.broadcast %4 : vector<1x32xf32> to vector<128x32xf32>
    %6 = arith.addf %3, %5 : vector<128x32xf32>
    %cst_5 = arith.constant 0.000000e+00 : f32
    %7 = vector.broadcast %cst_5 : f32 to vector<128x32xf32>
    %8 = arith.maximumf %6, %7 : vector<128x32xf32>
    %c0_6 = arith.constant 0 : index
    %c0_7 = arith.constant 0 : index
    %9 = vector.load %arg4[%c0_6, %c0_7] : memref<128x32xf32, #tpu.memory_space<vmem>>, vector<128x32xf32>
    tpu.vector_store %arg4[%c0_6, %c0_7], %8 {strides = array<i32>} : memref<128x32xf32, #tpu.memory_space<vmem>>, vector<128x32xf32>,
    return
  }
  func.func @transform_0(%arg0: i32) -> (i32, i32) {
    %c0_i32 = arith.constant 0 : i32
    %c0_i32_0 = arith.constant 0 : i32
    return %arg0, %c0_i32 : i32, i32
  }
  func.func @transform_1(%arg0: i32) -> (i32, i32) {
    %c0_i32 = arith.constant 0 : i32
    %c0_i32_0 = arith.constant 0 : i32
    %c0_i32_1 = arith.constant 0 : i32
    return %c0_i32, %c0_i32_0 : i32, i32
  }
  func.func @transform_2(%arg0: i32) -> (i32, i32) {
    %c0_i32 = arith.constant 0 : i32
    %c0_i32_0 = arith.constant 0 : i32
    %c0_i32_1 = arith.constant 0 : i32
    return %c0_i32, %c0_i32_0 : i32, i32
  }
  func.func @transform_3(%arg0: i32) -> (i32, i32) {
    %c0_i32 = arith.constant 0 : i32
    %c0_i32_0 = arith.constant 0 : i32
    return %arg0, %c0_i32 : i32, i32
  }
}

module attributes {stable_mosaic.version = 11 : i64} {
  func.func @_matmul_kernel(%arg0: i32, %arg1: memref<16x256xf32, #tpu.memory_space<vmem>>, %arg2: memref<256x32xbf16, #tpu.memory_space<vmem>>, %arg3: memref<1x32xf32, #tpu.memory_space<vmem>>, %arg4: memref<16x32xf32, #tpu.memory_space<vmem>>) attributes {dimension_semantics = [#tpu.dimension_semantics<parallel>], iteration_bounds = array<i64: 1>, scalar_prefetch = 0 : i64, scratch_operands = 0 : i64, tpu.core_type = #tpu.core_type<tc>, window_params = [{transform_indices = @transform_0, window_bounds = array<i64: 16, 256>}, {pipeline_mode = #tpu.pipeline_mode<synchronous>, transform_indices = @transform_1, window_bounds = array<i64: 256, 32>}, {pipeline_mode = #tpu.pipeline_mode<synchronous>, transform_indices = @transform_2, window_bounds = array<i64: 1, 32>}, {transform_indices = @transform_3, window_bounds = array<i64: 16, 32>}]} {
    %c0 = arith.constant 0 : index
    %c0_0 = arith.constant 0 : index
    %0 = vector.load %arg1[%c0, %c0_0] : memref<16x256xf32, #tpu.memory_space<vmem>>, vector<16x256xf32>
    %1 = arith.truncf %0 : vector<16x256xf32> to vector<16x256xbf16>
    %c0_1 = arith.constant 0 : index
    %c0_2 = arith.constant 0 : index
    %2 = vector.load %arg2[%c0_1, %c0_2] : memref<256x32xbf16, #tpu.memory_space<vmem>>, vector<256x32xbf16>
    %cst = arith.constant dense<0.000000e+00> : vector<16x32xf32>
    %3 = tpu.matmul %1, %2, %cst {dimension_numbers = #tpu.dot_dimension_numbers<[1], [0], [0], [1], [0, 0, 1, 1], [], []>} : vector<16x256xbf16>, vector<256x32xbf16>, vector<16x32xf32> -> vector<16x32xf32>
    %c0_3 = arith.constant 0 : index
    %c0_4 = arith.constant 0 : index
    %4 = vector.load %arg3[%c0_3, %c0_4] : memref<1x32xf32, #tpu.memory_space<vmem>>, vector<1x32xf32>
    %5 = vector.broadcast %4 : vector<1x32xf32> to vector<16x32xf32>
    %6 = arith.addf %3, %5 : vector<16x32xf32>
    %c0_5 = arith.constant 0 : index
    %c0_6 = arith.constant 0 : index
    %7 = vector.load %arg4[%c0_5, %c0_6] : memref<16x32xf32, #tpu.memory_space<vmem>>, vector<16x32xf32>
    tpu.vector_store %arg4[%c0_5, %c0_6], %6 {strides = array<i32>} : memref<16x32xf32, #tpu.memory_space<vmem>>, vector<16x32xf32>,
    return
  }
  func.func @transform_0(%arg0: i32) -> (i32, i32) {
    %c0_i32 = arith.constant 0 : i32
    %c0_i32_0 = arith.constant 0 : i32
    return %arg0, %c0_i32 : i32, i32
  }
  func.func @transform_1(%arg0: i32) -> (i32, i32) {
    %c0_i32 = arith.constant 0 : i32
    %c0_i32_0 = arith.constant 0 : i32
    %c0_i32_1 = arith.constant 0 : i32
    return %c0_i32, %c0_i32_0 : i32, i32
  }
  func.func @transform_2(%arg0: i32) -> (i32, i32) {
    %c0_i32 = arith.constant 0 : i32
    %c0_i32_0 = arith.constant 0 : i32
    %c0_i32_1 = arith.constant 0 : i32
    return %c0_i32, %c0_i32_0 : i32, i32
  }
  func.func @transform_3(%arg0: i32) -> (i32, i32) {
    %c0_i32 = arith.constant 0 : i32
    %c0_i32_0 = arith.constant 0 : i32
    return %arg0, %c0_i32 : i32, i32
  }
}

module attributes {stable_mosaic.version = 11 : i64} {
  func.func @_ffn_kernel(%arg0: i32, %arg1: memref<16x32xf32, #tpu.memory_space<vmem>>, %arg2: memref<1x32xf32, #tpu.memory_space<vmem>>, %arg3: memref<1x32xf32, #tpu.memory_space<vmem>>, %arg4: memref<32x128xbf16, #tpu.memory_space<vmem>>, %arg5: memref<1x128xf32, #tpu.memory_space<vmem>>, %arg6: memref<128x32xbf16, #tpu.memory_space<vmem>>, %arg7: memref<1x32xf32, #tpu.memory_space<vmem>>, %arg8: memref<1x32xf32, #tpu.memory_space<vmem>>, %arg9: memref<1x32xf32, #tpu.memory_space<vmem>>, %arg10: memref<1x1xf32, #tpu.memory_space<smem>>, %arg11: memref<16x32xf32, #tpu.memory_space<vmem>>) attributes {dimension_semantics = [#tpu.dimension_semantics<parallel>], iteration_bounds = array<i64: 1>, scalar_prefetch = 0 : i64, scratch_operands = 0 : i64, tpu.core_type = #tpu.core_type<tc>, window_params = [{transform_indices = @transform_0, window_bounds = array<i64: 16, 32>}, {pipeline_mode = #tpu.pipeline_mode<synchronous>, transform_indices = @transform_1, window_bounds = array<i64: 1, 32>}, {pipeline_mode = #tpu.pipeline_mode<synchronous>, transform_indices = @transform_2, window_bounds = array<i64: 1, 32>}, {pipeline_mode = #tpu.pipeline_mode<synchronous>, transform_indices = @transform_3, window_bounds = array<i64: 32, 128>}, {pipeline_mode = #tpu.pipeline_mode<synchronous>, transform_indices = @transform_4, window_bounds = array<i64: 1, 128>}, {pipeline_mode = #tpu.pipeline_mode<synchronous>, transform_indices = @transform_5, window_bounds = array<i64: 128, 32>}, {pipeline_mode = #tpu.pipeline_mode<synchronous>, transform_indices = @transform_6, window_bounds = array<i64: 1, 32>}, {pipeline_mode = #tpu.pipeline_mode<synchronous>, transform_indices = @transform_7, window_bounds = array<i64: 1, 32>}, {pipeline_mode = #tpu.pipeline_mode<synchronous>, transform_indices = @transform_8, window_bounds = array<i64: 1, 32>}, {transform_indices = @transform_9, window_bounds = array<i64: 1, 1>}, {transform_indices = @transform_10, window_bounds = array<i64: 16, 32>}]} {
    %c0 = arith.constant 0 : index
    %c0_0 = arith.constant 0 : index
    %0 = vector.load %arg1[%c0, %c0_0] : memref<16x32xf32, #tpu.memory_space<vmem>>, vector<16x32xf32>
    %c0_1 = arith.constant 0 : index
    %c0_2 = arith.constant 0 : index
    %1 = vector.load %arg2[%c0_1, %c0_2] : memref<1x32xf32, #tpu.memory_space<vmem>>, vector<1x32xf32>
    %c0_3 = arith.constant 0 : index
    %c0_4 = arith.constant 0 : index
    %2 = vector.load %arg3[%c0_3, %c0_4] : memref<1x32xf32, #tpu.memory_space<vmem>>, vector<1x32xf32>
    %cst = arith.constant dense<0.000000e+00> : vector<16xf32>
    %3 = vector.multi_reduction <add>, %0, %cst [1] : vector<16x32xf32> to vector<16xf32>
    %4 = vector.shape_cast %3 : vector<16xf32> to vector<16x1xf32>
    %cst_5 = arith.constant 3.200000e+01 : f32
    %5 = vector.broadcast %cst_5 : f32 to vector<16x1xf32>
    %6 = arith.divf %4, %5 : vector<16x1xf32>
    %7 = vector.broadcast %6 : vector<16x1xf32> to vector<16x32xf32>
    %8 = arith.subf %0, %7 : vector<16x32xf32>
    %9 = arith.mulf %8, %8 : vector<16x32xf32>
    %cst_6 = arith.constant dense<0.000000e+00> : vector<16xf32>
    %10 = vector.multi_reduction <add>, %9, %cst_6 [1] : vector<16x32xf32> to vector<16xf32>
    %11 = vector.shape_cast %10 : vector<16xf32> to vector<16x1xf32>
    %cst_7 = arith.constant 3.200000e+01 : f32
    %12 = vector.broadcast %cst_7 : f32 to vector<16x1xf32>
    %13 = arith.divf %11, %12 : vector<16x1xf32>
    %14 = vector.broadcast %6 : vector<16x1xf32> to vector<16x32xf32>
    %15 = arith.subf %0, %14 : vector<16x32xf32>
    %cst_8 = arith.constant 9.99999974E-6 : f32
    %16 = vector.broadcast %cst_8 : f32 to vector<16x1xf32>
    %17 = arith.addf %13, %16 : vector<16x1xf32>
    %18 = math.rsqrt %17 : vector<16x1xf32>
    %19 = vector.broadcast %18 : vector<16x1xf32> to vector<16x32xf32>
    %20 = arith.mulf %15, %19 : vector<16x32xf32>
    %21 = vector.broadcast %1 : vector<1x32xf32> to vector<16x32xf32>
    %22 = arith.mulf %20, %21 : vector<16x32xf32>
    %23 = vector.broadcast %2 : vector<1x32xf32> to vector<16x32xf32>
    %24 = arith.addf %22, %23 : vector<16x32xf32>
    %25 = arith.truncf %24 : vector<16x32xf32> to vector<16x32xbf16>
    %c0_9 = arith.constant 0 : index
    %c0_10 = arith.constant 0 : index
    %26 = vector.load %arg4[%c0_9, %c0_10] : memref<32x128xbf16, #tpu.memory_space<vmem>>, vector<32x128xbf16>
    %cst_11 = arith.constant dense<0.000000e+00> : vector<16x128xf32>
    %27 = tpu.matmul %25, %26, %cst_11 {dimension_numbers = #tpu.dot_dimension_numbers<[1], [0], [0], [1], [0, 0, 1, 1], [], []>} : vector<16x32xbf16>, vector<32x128xbf16>, vector<16x128xf32> -> vector<16x128xf32>
    %c0_12 = arith.constant 0 : index
    %c0_13 = arith.constant 0 : index
    %28 = vector.load %arg5[%c0_12, %c0_13] : memref<1x128xf32, #tpu.memory_space<vmem>>, vector<1x128xf32>
    %29 = vector.broadcast %28 : vector<1x128xf32> to vector<16x128xf32>
    %30 = arith.addf %27, %29 : vector<16x128xf32>
    %31 = arith.negf %30 : vector<16x128xf32>
    %32 = math.exp %31 : vector<16x128xf32>
    %cst_14 = arith.constant 1.000000e+00 : f32
    %33 = vector.broadcast %cst_14 : f32 to vector<16x128xf32>
    %34 = arith.addf %33, %32 : vector<16x128xf32>
    %35 = arith.divf %33, %34 : vector<16x128xf32>
    %36 = arith.mulf %30, %35 : vector<16x128xf32>
    %37 = arith.truncf %36 : vector<16x128xf32> to vector<16x128xbf16>
    %c0_15 = arith.constant 0 : index
    %c0_16 = arith.constant 0 : index
    %38 = vector.load %arg6[%c0_15, %c0_16] : memref<128x32xbf16, #tpu.memory_space<vmem>>, vector<128x32xbf16>
    %cst_17 = arith.constant dense<0.000000e+00> : vector<16x32xf32>
    %39 = tpu.matmul %37, %38, %cst_17 {dimension_numbers = #tpu.dot_dimension_numbers<[1], [0], [0], [1], [0, 0, 1, 1], [], []>} : vector<16x128xbf16>, vector<128x32xbf16>, vector<16x32xf32> -> vector<16x32xf32>
    %c0_18 = arith.constant 0 : index
    %c0_19 = arith.constant 0 : index
    %40 = vector.load %arg7[%c0_18, %c0_19] : memref<1x32xf32, #tpu.memory_space<vmem>>, vector<1x32xf32>
    %41 = vector.broadcast %40 : vector<1x32xf32> to vector<16x32xf32>
    %42 = arith.addf %39, %41 : vector<16x32xf32>
    %c0_20 = arith.constant 0 : index
    %c0_21 = arith.constant 0 : index
    %43 = memref.load %arg10[%c0_20, %c0_21] : memref<1x1xf32, #tpu.memory_space<smem>>
    %cst_22 = arith.constant 5.000000e-01 : f32
    %44 = arith.mulf %cst_22, %43 : f32
    %45 = vector.broadcast %44 : f32 to vector<16x32xf32>
    %46 = arith.mulf %45, %42 : vector<16x32xf32>
    %47 = arith.addf %0, %46 : vector<16x32xf32>
    %c0_23 = arith.constant 0 : index
    %c0_24 = arith.constant 0 : index
    %48 = vector.load %arg11[%c0_23, %c0_24] : memref<16x32xf32, #tpu.memory_space<vmem>>, vector<16x32xf32>
    tpu.vector_store %arg11[%c0_23, %c0_24], %47 {strides = array<i32>} : memref<16x32xf32, #tpu.memory_space<vmem>>, vector<16x32xf32>,
    return
  }
  func.func @transform_0(%arg0: i32) -> (i32, i32) {
    %c0_i32 = arith.constant 0 : i32
    %c0_i32_0 = arith.constant 0 : i32
    return %arg0, %c0_i32 : i32, i32
  }
  func.func @transform_1(%arg0: i32) -> (i32, i32) {
    %c0_i32 = arith.constant 0 : i32
    %c0_i32_0 = arith.constant 0 : i32
    %c0_i32_1 = arith.constant 0 : i32
    return %c0_i32, %c0_i32_0 : i32, i32
  }
  func.func @transform_2(%arg0: i32) -> (i32, i32) {
    %c0_i32 = arith.constant 0 : i32
    %c0_i32_0 = arith.constant 0 : i32
    %c0_i32_1 = arith.constant 0 : i32
    return %c0_i32, %c0_i32_0 : i32, i32
  }
  func.func @transform_3(%arg0: i32) -> (i32, i32) {
    %c0_i32 = arith.constant 0 : i32
    %c0_i32_0 = arith.constant 0 : i32
    %c0_i32_1 = arith.constant 0 : i32
    return %c0_i32, %c0_i32_0 : i32, i32
  }
  func.func @transform_4(%arg0: i32) -> (i32, i32) {
    %c0_i32 = arith.constant 0 : i32
    %c0_i32_0 = arith.constant 0 : i32
    %c0_i32_1 = arith.constant 0 : i32
    return %c0_i32, %c0_i32_0 : i32, i32
  }
  func.func @transform_5(%arg0: i32) -> (i32, i32) {
    %c0_i32 = arith.constant 0 : i32
    %c0_i32_0 = arith.constant 0 : i32
    %c0_i32_1 = arith.constant 0 : i32
    return %c0_i32, %c0_i32_0 : i32, i32
  }
  func.func @transform_6(%arg0: i32) -> (i32, i32) {
    %c0_i32 = arith.constant 0 : i32
    %c0_i32_0 = arith.constant 0 : i32
    %c0_i32_1 = arith.constant 0 : i32
    return %c0_i32, %c0_i32_0 : i32, i32
  }
  func.func @transform_7(%arg0: i32) -> (i32, i32) {
    %c0_i32 = arith.constant 0 : i32
    %c0_i32_0 = arith.constant 0 : i32
    %c0_i32_1 = arith.constant 0 : i32
    return %c0_i32, %c0_i32_0 : i32, i32
  }
  func.func @transform_8(%arg0: i32) -> (i32, i32) {
    %c0_i32 = arith.constant 0 : i32
    %c0_i32_0 = arith.constant 0 : i32
    %c0_i32_1 = arith.constant 0 : i32
    return %c0_i32, %c0_i32_0 : i32, i32
  }
  func.func @transform_9(%arg0: i32) -> (i32, i32) {
    %c0_i32 = arith.constant 0 : i32
    %c0_i32_0 = arith.constant 0 : i32
    %c0_i32_1 = arith.constant 0 : i32
    return %c0_i32, %c0_i32_0 : i32, i32
  }
  func.func @transform_10(%arg0: i32) -> (i32, i32) {
    %c0_i32 = arith.constant 0 : i32
    %c0_i32_0 = arith.constant 0 : i32
    return %arg0, %c0_i32 : i32, i32
  }
}

module attributes {stable_mosaic.version = 11 : i64} {
  func.func @_mhsa_kernel(%arg0: i32, %arg1: memref<1x8x32xf32, #tpu.memory_space<vmem>>, %arg2: memref<1x32xf32, #tpu.memory_space<vmem>>, %arg3: memref<1x32xf32, #tpu.memory_space<vmem>>, %arg4: memref<32x96xbf16, #tpu.memory_space<vmem>>, %arg5: memref<1x96xf32, #tpu.memory_space<vmem>>, %arg6: memref<8x32xf32, #tpu.memory_space<vmem>>, %arg7: memref<1x32xf32, #tpu.memory_space<vmem>>, %arg8: memref<1x32xf32, #tpu.memory_space<vmem>>, %arg9: memref<32x32xbf16, #tpu.memory_space<vmem>>, %arg10: memref<1x32xf32, #tpu.memory_space<vmem>>, %arg11: memref<1x1xf32, #tpu.memory_space<smem>>, %arg12: memref<1x8x32xf32, #tpu.memory_space<vmem>>) attributes {dimension_semantics = [#tpu.dimension_semantics<parallel>], iteration_bounds = array<i64: 2>, scalar_prefetch = 0 : i64, scratch_operands = 0 : i64, tpu.core_type = #tpu.core_type<tc>, window_params = [{transform_indices = @transform_0, window_bounds = array<i64: 1, 8, 32>}, {pipeline_mode = #tpu.pipeline_mode<synchronous>, transform_indices = @transform_1, window_bounds = array<i64: 1, 32>}, {pipeline_mode = #tpu.pipeline_mode<synchronous>, transform_indices = @transform_2, window_bounds = array<i64: 1, 32>}, {pipeline_mode = #tpu.pipeline_mode<synchronous>, transform_indices = @transform_3, window_bounds = array<i64: 32, 96>}, {pipeline_mode = #tpu.pipeline_mode<synchronous>, transform_indices = @transform_4, window_bounds = array<i64: 1, 96>}, {pipeline_mode = #tpu.pipeline_mode<synchronous>, transform_indices = @transform_5, window_bounds = array<i64: 8, 32>}, {pipeline_mode = #tpu.pipeline_mode<synchronous>, transform_indices = @transform_6, window_bounds = array<i64: 1, 32>}, {pipeline_mode = #tpu.pipeline_mode<synchronous>, transform_indices = @transform_7, window_bounds = array<i64: 1, 32>}, {pipeline_mode = #tpu.pipeline_mode<synchronous>, transform_indices = @transform_8, window_bounds = array<i64: 32, 32>}, {pipeline_mode = #tpu.pipeline_mode<synchronous>, transform_indices = @transform_9, window_bounds = array<i64: 1, 32>}, {transform_indices = @transform_10, window_bounds = array<i64: 1, 1>}, {transform_indices = @transform_11, window_bounds = array<i64: 1, 8, 32>}]} {
    %c0 = arith.constant 0 : index
    %c0_0 = arith.constant 0 : index
    %c0_1 = arith.constant 0 : index
    %0 = vector.load %arg1[%c0, %c0_0, %c0_1] : memref<1x8x32xf32, #tpu.memory_space<vmem>>, vector<1x8x32xf32>
    %1 = vector.shape_cast %0 : vector<1x8x32xf32> to vector<8x32xf32>
    %c0_2 = arith.constant 0 : index
    %c0_3 = arith.constant 0 : index
    %2 = vector.load %arg2[%c0_2, %c0_3] : memref<1x32xf32, #tpu.memory_space<vmem>>, vector<1x32xf32>
    %c0_4 = arith.constant 0 : index
    %c0_5 = arith.constant 0 : index
    %3 = vector.load %arg3[%c0_4, %c0_5] : memref<1x32xf32, #tpu.memory_space<vmem>>, vector<1x32xf32>
    %cst = arith.constant dense<0.000000e+00> : vector<8xf32>
    %4 = vector.multi_reduction <add>, %1, %cst [1] : vector<8x32xf32> to vector<8xf32>
    %5 = vector.shape_cast %4 : vector<8xf32> to vector<8x1xf32>
    %cst_6 = arith.constant 3.200000e+01 : f32
    %6 = vector.broadcast %cst_6 : f32 to vector<8x1xf32>
    %7 = arith.divf %5, %6 : vector<8x1xf32>
    %8 = vector.broadcast %7 : vector<8x1xf32> to vector<8x32xf32>
    %9 = arith.subf %1, %8 : vector<8x32xf32>
    %10 = arith.mulf %9, %9 : vector<8x32xf32>
    %cst_7 = arith.constant dense<0.000000e+00> : vector<8xf32>
    %11 = vector.multi_reduction <add>, %10, %cst_7 [1] : vector<8x32xf32> to vector<8xf32>
    %12 = vector.shape_cast %11 : vector<8xf32> to vector<8x1xf32>
    %cst_8 = arith.constant 3.200000e+01 : f32
    %13 = vector.broadcast %cst_8 : f32 to vector<8x1xf32>
    %14 = arith.divf %12, %13 : vector<8x1xf32>
    %15 = vector.broadcast %7 : vector<8x1xf32> to vector<8x32xf32>
    %16 = arith.subf %1, %15 : vector<8x32xf32>
    %cst_9 = arith.constant 9.99999974E-6 : f32
    %17 = vector.broadcast %cst_9 : f32 to vector<8x1xf32>
    %18 = arith.addf %14, %17 : vector<8x1xf32>
    %19 = math.rsqrt %18 : vector<8x1xf32>
    %20 = vector.broadcast %19 : vector<8x1xf32> to vector<8x32xf32>
    %21 = arith.mulf %16, %20 : vector<8x32xf32>
    %22 = vector.broadcast %2 : vector<1x32xf32> to vector<8x32xf32>
    %23 = arith.mulf %21, %22 : vector<8x32xf32>
    %24 = vector.broadcast %3 : vector<1x32xf32> to vector<8x32xf32>
    %25 = arith.addf %23, %24 : vector<8x32xf32>
    %26 = arith.truncf %25 : vector<8x32xf32> to vector<8x32xbf16>
    %c0_10 = arith.constant 0 : index
    %c0_11 = arith.constant 0 : index
    %27 = vector.load %arg4[%c0_10, %c0_11] : memref<32x96xbf16, #tpu.memory_space<vmem>>, vector<32x96xbf16>
    %cst_12 = arith.constant dense<0.000000e+00> : vector<8x96xf32>
    %28 = tpu.matmul %26, %27, %cst_12 {dimension_numbers = #tpu.dot_dimension_numbers<[1], [0], [0], [1], [0, 0, 1, 1], [], []>} : vector<8x32xbf16>, vector<32x96xbf16>, vector<8x96xf32> -> vector<8x96xf32>
    %c0_13 = arith.constant 0 : index
    %c0_14 = arith.constant 0 : index
    %29 = vector.load %arg5[%c0_13, %c0_14] : memref<1x96xf32, #tpu.memory_space<vmem>>, vector<1x96xf32>
    %30 = vector.broadcast %29 : vector<1x96xf32> to vector<8x96xf32>
    %31 = arith.addf %28, %30 : vector<8x96xf32>
    %32 = vector.extract_strided_slice %31 {offsets = [0, 0], sizes = [8, 32], strides = [1, 1]} : vector<8x96xf32> to vector<8x32xf32>
    %cst_15 = arith.constant 0.176776692 : f32
    %33 = vector.broadcast %cst_15 : f32 to vector<8x32xf32>
    %34 = arith.mulf %32, %33 : vector<8x32xf32>
    %c0_16 = arith.constant 0 : index
    %c0_17 = arith.constant 0 : index
    %35 = vector.load %arg7[%c0_16, %c0_17] : memref<1x32xf32, #tpu.memory_space<vmem>>, vector<1x32xf32>
    %cst_18 = arith.constant 0.176776692 : f32
    %36 = vector.broadcast %cst_18 : f32 to vector<1x32xf32>
    %37 = arith.mulf %35, %36 : vector<1x32xf32>
    %c0_19 = arith.constant 0 : index
    %c0_20 = arith.constant 0 : index
    %38 = vector.load %arg8[%c0_19, %c0_20] : memref<1x32xf32, #tpu.memory_space<vmem>>, vector<1x32xf32>
    %cst_21 = arith.constant 0.176776692 : f32
    %39 = vector.broadcast %cst_21 : f32 to vector<1x32xf32>
    %40 = arith.mulf %38, %39 : vector<1x32xf32>
    %c0_22 = arith.constant 0 : index
    %c0_23 = arith.constant 0 : index
    %41 = vector.load %arg6[%c0_22, %c0_23] : memref<8x32xf32, #tpu.memory_space<vmem>>, vector<8x32xf32>
    %c0_24 = arith.constant 0 : index
    %c0_25 = arith.constant 0 : index
    %42 = vector.load %arg9[%c0_24, %c0_25] : memref<32x32xbf16, #tpu.memory_space<vmem>>, vector<32x32xbf16>
    %43 = tpu.iota {dimensions = array<i32: 0>} : vector<8x8xi32>
    %44 = tpu.iota {dimensions = array<i32: 1>} : vector<8x8xi32>
    %45 = arith.addi %44, %43 : vector<8x8xi32>
    %c8_i32 = arith.constant 8 : i32
    %46 = vector.broadcast %c8_i32 : i32 to vector<8x8xi32>
    %47 = arith.cmpi sge, %45, %46 : vector<8x8xi32>
    %c8_i32_26 = arith.constant 8 : i32
    %48 = vector.broadcast %c8_i32_26 : i32 to vector<8x8xi32>
    %49 = arith.subi %45, %48 : vector<8x8xi32>
    %50 = arith.select %47, %49, %45 : vector<8x8xi1>, vector<8x8xi32>
    %51 = arith.cmpi sle, %50, %43 : vector<8x8xi32>
    %c1_i32 = arith.constant 1 : i32
    %52 = vector.broadcast %c1_i32 : i32 to vector<8x8xi32>
    %53 = arith.addi %43, %52 : vector<8x8xi32>
    %54 = arith.cmpi eq, %44, %53 : vector<8x8xi32>
    %cst_27 = arith.constant 0.000000e+00 : f32
    %55 = vector.broadcast %cst_27 : f32 to vector<8x32xf32>
    %56 = vector.extract_strided_slice %34 {offsets = [0, 0], sizes = [8, 8], strides = [1, 1]} : vector<8x32xf32> to vector<8x8xf32>
    %57 = vector.extract_strided_slice %31 {offsets = [0, 32], sizes = [8, 8], strides = [1, 1]} : vector<8x96xf32> to vector<8x8xf32>
    %58 = arith.truncf %57 : vector<8x8xf32> to vector<8x8xbf16>
    %59 = vector.extract_strided_slice %31 {offsets = [0, 64], sizes = [8, 8], strides = [1, 1]} : vector<8x96xf32> to vector<8x8xf32>
    %60 = arith.truncf %59 : vector<8x8xf32> to vector<8x8xbf16>
    %61 = vector.extract_strided_slice %41 {offsets = [0, 0], sizes = [8, 8], strides = [1, 1]} : vector<8x32xf32> to vector<8x8xf32>
    %62 = arith.truncf %61 : vector<8x8xf32> to vector<8x8xbf16>
    %63 = vector.extract_strided_slice %37 {offsets = [0, 0], sizes = [1, 8], strides = [1, 1]} : vector<1x32xf32> to vector<1x8xf32>
    %64 = vector.broadcast %63 : vector<1x8xf32> to vector<8x8xf32>
    %65 = arith.addf %56, %64 : vector<8x8xf32>
    %66 = arith.truncf %65 : vector<8x8xf32> to vector<8x8xbf16>
    %cst_28 = arith.constant dense<0.000000e+00> : vector<8x8xf32>
    %67 = tpu.matmul %66, %58, %cst_28 {dimension_numbers = #tpu.dot_dimension_numbers<[1], [1], [0], [0], [0, 0, 1, 0], [], []>} : vector<8x8xbf16>, vector<8x8xbf16>, vector<8x8xf32> -> vector<8x8xf32>
    %68 = vector.extract_strided_slice %40 {offsets = [0, 0], sizes = [1, 8], strides = [1, 1]} : vector<1x32xf32> to vector<1x8xf32>
    %69 = vector.broadcast %68 : vector<1x8xf32> to vector<8x8xf32>
    %70 = arith.addf %56, %69 : vector<8x8xf32>
    %71 = arith.truncf %70 : vector<8x8xf32> to vector<8x8xbf16>
    %cst_29 = arith.constant dense<0.000000e+00> : vector<8x8xf32>
    %72 = tpu.matmul %71, %62, %cst_29 {dimension_numbers = #tpu.dot_dimension_numbers<[1], [1], [0], [0], [0, 0, 1, 0], [], []>} : vector<8x8xbf16>, vector<8x8xbf16>, vector<8x8xf32> -> vector<8x8xf32>
    %73 = vector.extract_strided_slice %72 {offsets = [0, 7], sizes = [8, 1], strides = [1, 1]} : vector<8x8xf32> to vector<8x1xf32>
    %74 = vector.extract_strided_slice %72 {offsets = [0, 0], sizes = [8, 7], strides = [1, 1]} : vector<8x8xf32> to vector<8x7xf32>
    %75 = tpu.concatenate %73, %74 in 1 : vector<8x1xf32>, vector<8x7xf32> -> vector<8x8xf32>
    %76 = vector.extract_strided_slice %72 {offsets = [1, 0], sizes = [7, 8], strides = [1, 1]} : vector<8x8xf32> to vector<7x8xf32>
    %77 = vector.extract_strided_slice %72 {offsets = [0, 0], sizes = [1, 8], strides = [1, 1]} : vector<8x8xf32> to vector<1x8xf32>
    %78 = tpu.concatenate %76, %77 in 0 : vector<7x8xf32>, vector<1x8xf32> -> vector<8x8xf32>
    %79 = vector.extract_strided_slice %78 {offsets = [0, 6], sizes = [8, 2], strides = [1, 1]} : vector<8x8xf32> to vector<8x2xf32>
    %80 = vector.extract_strided_slice %78 {offsets = [0, 0], sizes = [8, 6], strides = [1, 1]} : vector<8x8xf32> to vector<8x6xf32>
    %81 = tpu.concatenate %79, %80 in 1 : vector<8x2xf32>, vector<8x6xf32> -> vector<8x8xf32>
    %82 = arith.select %51, %75, %81 : vector<8x8xi1>, vector<8x8xf32>
    %c1_i32_30 = arith.constant 1 : i32
    %83 = vector.broadcast %c1_i32_30 : i32 to vector<8x8xi32>
    %84 = arith.andi %43, %83 : vector<8x8xi32>
    %c0_i32 = arith.constant 0 : i32
    %85 = vector.broadcast %c0_i32 : i32 to vector<8x8xi32>
    %86 = arith.cmpi ne, %84, %85 : vector<8x8xi32>
    %87 = vector.extract_strided_slice %82 {offsets = [0, 7], sizes = [8, 1], strides = [1, 1]} : vector<8x8xf32> to vector<8x1xf32>
    %88 = vector.extract_strided_slice %82 {offsets = [0, 0], sizes = [8, 7], strides = [1, 1]} : vector<8x8xf32> to vector<8x7xf32>
    %89 = tpu.concatenate %87, %88 in 1 : vector<8x1xf32>, vector<8x7xf32> -> vector<8x8xf32>
    %90 = arith.select %86, %89, %82 : vector<8x8xi1>, vector<8x8xf32>
    %c2_i32 = arith.constant 2 : i32
    %91 = vector.broadcast %c2_i32 : i32 to vector<8x8xi32>
    %92 = arith.andi %43, %91 : vector<8x8xi32>
    %c0_i32_31 = arith.constant 0 : i32
    %93 = vector.broadcast %c0_i32_31 : i32 to vector<8x8xi32>
    %94 = arith.cmpi ne, %92, %93 : vector<8x8xi32>
    %95 = vector.extract_strided_slice %90 {offsets = [0, 6], sizes = [8, 2], strides = [1, 1]} : vector<8x8xf32> to vector<8x2xf32>
    %96 = vector.extract_strided_slice %90 {offsets = [0, 0], sizes = [8, 6], strides = [1, 1]} : vector<8x8xf32> to vector<8x6xf32>
    %97 = tpu.concatenate %95, %96 in 1 : vector<8x2xf32>, vector<8x6xf32> -> vector<8x8xf32>
    %98 = arith.select %94, %97, %90 : vector<8x8xi1>, vector<8x8xf32>
    %c4_i32 = arith.constant 4 : i32
    %99 = vector.broadcast %c4_i32 : i32 to vector<8x8xi32>
    %100 = arith.andi %43, %99 : vector<8x8xi32>
    %c0_i32_32 = arith.constant 0 : i32
    %101 = vector.broadcast %c0_i32_32 : i32 to vector<8x8xi32>
    %102 = arith.cmpi ne, %100, %101 : vector<8x8xi32>
    %103 = vector.extract_strided_slice %98 {offsets = [0, 4], sizes = [8, 4], strides = [1, 1]} : vector<8x8xf32> to vector<8x4xf32>
    %104 = vector.extract_strided_slice %98 {offsets = [0, 0], sizes = [8, 4], strides = [1, 1]} : vector<8x8xf32> to vector<8x4xf32>
    %105 = tpu.concatenate %103, %104 in 1 : vector<8x4xf32>, vector<8x4xf32> -> vector<8x8xf32>
    %106 = arith.select %102, %105, %98 : vector<8x8xi1>, vector<8x8xf32>
    %cst_33 = arith.constant 0.000000e+00 : f32
    %107 = vector.broadcast %cst_33 : f32 to vector<8x8xf32>
    %108 = arith.select %54, %107, %106 : vector<8x8xi1>, vector<8x8xf32>
    %109 = arith.addf %67, %108 : vector<8x8xf32>
    %cst_34 = arith.constant dense<0xFF800000> : vector<8xf32>
    %110 = vector.multi_reduction <maximumf>, %109, %cst_34 [1] : vector<8x8xf32> to vector<8xf32>
    %111 = vector.shape_cast %110 : vector<8xf32> to vector<8x1xf32>
    %112 = vector.broadcast %111 : vector<8x1xf32> to vector<8x8xf32>
    %113 = arith.subf %109, %112 : vector<8x8xf32>
    %114 = math.exp %113 : vector<8x8xf32>
    %cst_35 = arith.constant dense<0.000000e+00> : vector<8xf32>
    %115 = vector.multi_reduction <add>, %114, %cst_35 [1] : vector<8x8xf32> to vector<8xf32>
    %116 = vector.shape_cast %115 : vector<8xf32> to vector<8x1xf32>
    %117 = tpu.reciprocal %116 {approx = true} : vector<8x1xf32> -> vector<8x1xf32>
    %118 = vector.broadcast %117 : vector<8x1xf32> to vector<8x8xf32>
    %119 = arith.mulf %114, %118 : vector<8x8xf32>
    %120 = arith.truncf %119 : vector<8x8xf32> to vector<8x8xbf16>
    %cst_36 = arith.constant dense<0.000000e+00> : vector<8x8xf32>
    %121 = tpu.matmul %120, %60, %cst_36 {dimension_numbers = #tpu.dot_dimension_numbers<[1], [0], [0], [1], [0, 0, 1, 1], [], []>} : vector<8x8xbf16>, vector<8x8xbf16>, vector<8x8xf32> -> vector<8x8xf32>
    %122 = arith.truncf %121 : vector<8x8xf32> to vector<8x8xbf16>
    %123 = vector.extract_strided_slice %42 {offsets = [0, 0], sizes = [8, 32], strides = [1, 1]} : vector<32x32xbf16> to vector<8x32xbf16>
    %cst_37 = arith.constant dense<0.000000e+00> : vector<8x32xf32>
    %124 = tpu.matmul %122, %123, %cst_37 {dimension_numbers = #tpu.dot_dimension_numbers<[1], [0], [0], [1], [0, 0, 1, 1], [], []>} : vector<8x8xbf16>, vector<8x32xbf16>, vector<8x32xf32> -> vector<8x32xf32>
    %125 = arith.addf %55, %124 : vector<8x32xf32>
    %126 = vector.extract_strided_slice %34 {offsets = [0, 8], sizes = [8, 8], strides = [1, 1]} : vector<8x32xf32> to vector<8x8xf32>
    %127 = vector.extract_strided_slice %31 {offsets = [0, 40], sizes = [8, 8], strides = [1, 1]} : vector<8x96xf32> to vector<8x8xf32>
    %128 = arith.truncf %127 : vector<8x8xf32> to vector<8x8xbf16>
    %129 = vector.extract_strided_slice %31 {offsets = [0, 72], sizes = [8, 8], strides = [1, 1]} : vector<8x96xf32> to vector<8x8xf32>
    %130 = arith.truncf %129 : vector<8x8xf32> to vector<8x8xbf16>
    %131 = vector.extract_strided_slice %41 {offsets = [0, 8], sizes = [8, 8], strides = [1, 1]} : vector<8x32xf32> to vector<8x8xf32>
    %132 = arith.truncf %131 : vector<8x8xf32> to vector<8x8xbf16>
    %133 = vector.extract_strided_slice %37 {offsets = [0, 8], sizes = [1, 8], strides = [1, 1]} : vector<1x32xf32> to vector<1x8xf32>
    %134 = vector.broadcast %133 : vector<1x8xf32> to vector<8x8xf32>
    %135 = arith.addf %126, %134 : vector<8x8xf32>
    %136 = arith.truncf %135 : vector<8x8xf32> to vector<8x8xbf16>
    %cst_38 = arith.constant dense<0.000000e+00> : vector<8x8xf32>
    %137 = tpu.matmul %136, %128, %cst_38 {dimension_numbers = #tpu.dot_dimension_numbers<[1], [1], [0], [0], [0, 0, 1, 0], [], []>} : vector<8x8xbf16>, vector<8x8xbf16>, vector<8x8xf32> -> vector<8x8xf32>
    %138 = vector.extract_strided_slice %40 {offsets = [0, 8], sizes = [1, 8], strides = [1, 1]} : vector<1x32xf32> to vector<1x8xf32>
    %139 = vector.broadcast %138 : vector<1x8xf32> to vector<8x8xf32>
    %140 = arith.addf %126, %139 : vector<8x8xf32>
    %141 = arith.truncf %140 : vector<8x8xf32> to vector<8x8xbf16>
    %cst_39 = arith.constant dense<0.000000e+00> : vector<8x8xf32>
    %142 = tpu.matmul %141, %132, %cst_39 {dimension_numbers = #tpu.dot_dimension_numbers<[1], [1], [0], [0], [0, 0, 1, 0], [], []>} : vector<8x8xbf16>, vector<8x8xbf16>, vector<8x8xf32> -> vector<8x8xf32>
    %143 = vector.extract_strided_slice %142 {offsets = [0, 7], sizes = [8, 1], strides = [1, 1]} : vector<8x8xf32> to vector<8x1xf32>
    %144 = vector.extract_strided_slice %142 {offsets = [0, 0], sizes = [8, 7], strides = [1, 1]} : vector<8x8xf32> to vector<8x7xf32>
    %145 = tpu.concatenate %143, %144 in 1 : vector<8x1xf32>, vector<8x7xf32> -> vector<8x8xf32>
    %146 = vector.extract_strided_slice %142 {offsets = [1, 0], sizes = [7, 8], strides = [1, 1]} : vector<8x8xf32> to vector<7x8xf32>
    %147 = vector.extract_strided_slice %142 {offsets = [0, 0], sizes = [1, 8], strides = [1, 1]} : vector<8x8xf32> to vector<1x8xf32>
    %148 = tpu.concatenate %146, %147 in 0 : vector<7x8xf32>, vector<1x8xf32> -> vector<8x8xf32>
    %149 = vector.extract_strided_slice %148 {offsets = [0, 6], sizes = [8, 2], strides = [1, 1]} : vector<8x8xf32> to vector<8x2xf32>
    %150 = vector.extract_strided_slice %148 {offsets = [0, 0], sizes = [8, 6], strides = [1, 1]} : vector<8x8xf32> to vector<8x6xf32>
    %151 = tpu.concatenate %149, %150 in 1 : vector<8x2xf32>, vector<8x6xf32> -> vector<8x8xf32>
    %152 = arith.select %51, %145, %151 : vector<8x8xi1>, vector<8x8xf32>
    %c1_i32_40 = arith.constant 1 : i32
    %153 = vector.broadcast %c1_i32_40 : i32 to vector<8x8xi32>
    %154 = arith.andi %43, %153 : vector<8x8xi32>
    %c0_i32_41 = arith.constant 0 : i32
    %155 = vector.broadcast %c0_i32_41 : i32 to vector<8x8xi32>
    %156 = arith.cmpi ne, %154, %155 : vector<8x8xi32>
    %157 = vector.extract_strided_slice %152 {offsets = [0, 7], sizes = [8, 1], strides = [1, 1]} : vector<8x8xf32> to vector<8x1xf32>
    %158 = vector.extract_strided_slice %152 {offsets = [0, 0], sizes = [8, 7], strides = [1, 1]} : vector<8x8xf32> to vector<8x7xf32>
    %159 = tpu.concatenate %157, %158 in 1 : vector<8x1xf32>, vector<8x7xf32> -> vector<8x8xf32>
    %160 = arith.select %156, %159, %152 : vector<8x8xi1>, vector<8x8xf32>
    %c2_i32_42 = arith.constant 2 : i32
    %161 = vector.broadcast %c2_i32_42 : i32 to vector<8x8xi32>
    %162 = arith.andi %43, %161 : vector<8x8xi32>
    %c0_i32_43 = arith.constant 0 : i32
    %163 = vector.broadcast %c0_i32_43 : i32 to vector<8x8xi32>
    %164 = arith.cmpi ne, %162, %163 : vector<8x8xi32>
    %165 = vector.extract_strided_slice %160 {offsets = [0, 6], sizes = [8, 2], strides = [1, 1]} : vector<8x8xf32> to vector<8x2xf32>
    %166 = vector.extract_strided_slice %160 {offsets = [0, 0], sizes = [8, 6], strides = [1, 1]} : vector<8x8xf32> to vector<8x6xf32>
    %167 = tpu.concatenate %165, %166 in 1 : vector<8x2xf32>, vector<8x6xf32> -> vector<8x8xf32>
    %168 = arith.select %164, %167, %160 : vector<8x8xi1>, vector<8x8xf32>
    %c4_i32_44 = arith.constant 4 : i32
    %169 = vector.broadcast %c4_i32_44 : i32 to vector<8x8xi32>
    %170 = arith.andi %43, %169 : vector<8x8xi32>
    %c0_i32_45 = arith.constant 0 : i32
    %171 = vector.broadcast %c0_i32_45 : i32 to vector<8x8xi32>
    %172 = arith.cmpi ne, %170, %171 : vector<8x8xi32>
    %173 = vector.extract_strided_slice %168 {offsets = [0, 4], sizes = [8, 4], strides = [1, 1]} : vector<8x8xf32> to vector<8x4xf32>
    %174 = vector.extract_strided_slice %168 {offsets = [0, 0], sizes = [8, 4], strides = [1, 1]} : vector<8x8xf32> to vector<8x4xf32>
    %175 = tpu.concatenate %173, %174 in 1 : vector<8x4xf32>, vector<8x4xf32> -> vector<8x8xf32>
    %176 = arith.select %172, %175, %168 : vector<8x8xi1>, vector<8x8xf32>
    %cst_46 = arith.constant 0.000000e+00 : f32
    %177 = vector.broadcast %cst_46 : f32 to vector<8x8xf32>
    %178 = arith.select %54, %177, %176 : vector<8x8xi1>, vector<8x8xf32>
    %179 = arith.addf %137, %178 : vector<8x8xf32>
    %cst_47 = arith.constant dense<0xFF800000> : vector<8xf32>
    %180 = vector.multi_reduction <maximumf>, %179, %cst_47 [1] : vector<8x8xf32> to vector<8xf32>
    %181 = vector.shape_cast %180 : vector<8xf32> to vector<8x1xf32>
    %182 = vector.broadcast %181 : vector<8x1xf32> to vector<8x8xf32>
    %183 = arith.subf %179, %182 : vector<8x8xf32>
    %184 = math.exp %183 : vector<8x8xf32>
    %cst_48 = arith.constant dense<0.000000e+00> : vector<8xf32>
    %185 = vector.multi_reduction <add>, %184, %cst_48 [1] : vector<8x8xf32> to vector<8xf32>
    %186 = vector.shape_cast %185 : vector<8xf32> to vector<8x1xf32>
    %187 = tpu.reciprocal %186 {approx = true} : vector<8x1xf32> -> vector<8x1xf32>
    %188 = vector.broadcast %187 : vector<8x1xf32> to vector<8x8xf32>
    %189 = arith.mulf %184, %188 : vector<8x8xf32>
    %190 = arith.truncf %189 : vector<8x8xf32> to vector<8x8xbf16>
    %cst_49 = arith.constant dense<0.000000e+00> : vector<8x8xf32>
    %191 = tpu.matmul %190, %130, %cst_49 {dimension_numbers = #tpu.dot_dimension_numbers<[1], [0], [0], [1], [0, 0, 1, 1], [], []>} : vector<8x8xbf16>, vector<8x8xbf16>, vector<8x8xf32> -> vector<8x8xf32>
    %192 = arith.truncf %191 : vector<8x8xf32> to vector<8x8xbf16>
    %193 = vector.extract_strided_slice %42 {offsets = [8, 0], sizes = [8, 32], strides = [1, 1]} : vector<32x32xbf16> to vector<8x32xbf16>
    %cst_50 = arith.constant dense<0.000000e+00> : vector<8x32xf32>
    %194 = tpu.matmul %192, %193, %cst_50 {dimension_numbers = #tpu.dot_dimension_numbers<[1], [0], [0], [1], [0, 0, 1, 1], [], []>} : vector<8x8xbf16>, vector<8x32xbf16>, vector<8x32xf32> -> vector<8x32xf32>
    %195 = arith.addf %125, %194 : vector<8x32xf32>
    %196 = vector.extract_strided_slice %34 {offsets = [0, 16], sizes = [8, 8], strides = [1, 1]} : vector<8x32xf32> to vector<8x8xf32>
    %197 = vector.extract_strided_slice %31 {offsets = [0, 48], sizes = [8, 8], strides = [1, 1]} : vector<8x96xf32> to vector<8x8xf32>
    %198 = arith.truncf %197 : vector<8x8xf32> to vector<8x8xbf16>
    %199 = vector.extract_strided_slice %31 {offsets = [0, 80], sizes = [8, 8], strides = [1, 1]} : vector<8x96xf32> to vector<8x8xf32>
    %200 = arith.truncf %199 : vector<8x8xf32> to vector<8x8xbf16>
    %201 = vector.extract_strided_slice %41 {offsets = [0, 16], sizes = [8, 8], strides = [1, 1]} : vector<8x32xf32> to vector<8x8xf32>
    %202 = arith.truncf %201 : vector<8x8xf32> to vector<8x8xbf16>
    %203 = vector.extract_strided_slice %37 {offsets = [0, 16], sizes = [1, 8], strides = [1, 1]} : vector<1x32xf32> to vector<1x8xf32>
    %204 = vector.broadcast %203 : vector<1x8xf32> to vector<8x8xf32>
    %205 = arith.addf %196, %204 : vector<8x8xf32>
    %206 = arith.truncf %205 : vector<8x8xf32> to vector<8x8xbf16>
    %cst_51 = arith.constant dense<0.000000e+00> : vector<8x8xf32>
    %207 = tpu.matmul %206, %198, %cst_51 {dimension_numbers = #tpu.dot_dimension_numbers<[1], [1], [0], [0], [0, 0, 1, 0], [], []>} : vector<8x8xbf16>, vector<8x8xbf16>, vector<8x8xf32> -> vector<8x8xf32>
    %208 = vector.extract_strided_slice %40 {offsets = [0, 16], sizes = [1, 8], strides = [1, 1]} : vector<1x32xf32> to vector<1x8xf32>
    %209 = vector.broadcast %208 : vector<1x8xf32> to vector<8x8xf32>
    %210 = arith.addf %196, %209 : vector<8x8xf32>
    %211 = arith.truncf %210 : vector<8x8xf32> to vector<8x8xbf16>
    %cst_52 = arith.constant dense<0.000000e+00> : vector<8x8xf32>
    %212 = tpu.matmul %211, %202, %cst_52 {dimension_numbers = #tpu.dot_dimension_numbers<[1], [1], [0], [0], [0, 0, 1, 0], [], []>} : vector<8x8xbf16>, vector<8x8xbf16>, vector<8x8xf32> -> vector<8x8xf32>
    %213 = vector.extract_strided_slice %212 {offsets = [0, 7], sizes = [8, 1], strides = [1, 1]} : vector<8x8xf32> to vector<8x1xf32>
    %214 = vector.extract_strided_slice %212 {offsets = [0, 0], sizes = [8, 7], strides = [1, 1]} : vector<8x8xf32> to vector<8x7xf32>
    %215 = tpu.concatenate %213, %214 in 1 : vector<8x1xf32>, vector<8x7xf32> -> vector<8x8xf32>
    %216 = vector.extract_strided_slice %212 {offsets = [1, 0], sizes = [7, 8], strides = [1, 1]} : vector<8x8xf32> to vector<7x8xf32>
    %217 = vector.extract_strided_slice %212 {offsets = [0, 0], sizes = [1, 8], strides = [1, 1]} : vector<8x8xf32> to vector<1x8xf32>
    %218 = tpu.concatenate %216, %217 in 0 : vector<7x8xf32>, vector<1x8xf32> -> vector<8x8xf32>
    %219 = vector.extract_strided_slice %218 {offsets = [0, 6], sizes = [8, 2], strides = [1, 1]} : vector<8x8xf32> to vector<8x2xf32>
    %220 = vector.extract_strided_slice %218 {offsets = [0, 0], sizes = [8, 6], strides = [1, 1]} : vector<8x8xf32> to vector<8x6xf32>
    %221 = tpu.concatenate %219, %220 in 1 : vector<8x2xf32>, vector<8x6xf32> -> vector<8x8xf32>
    %222 = arith.select %51, %215, %221 : vector<8x8xi1>, vector<8x8xf32>
    %c1_i32_53 = arith.constant 1 : i32
    %223 = vector.broadcast %c1_i32_53 : i32 to vector<8x8xi32>
    %224 = arith.andi %43, %223 : vector<8x8xi32>
    %c0_i32_54 = arith.constant 0 : i32
    %225 = vector.broadcast %c0_i32_54 : i32 to vector<8x8xi32>
    %226 = arith.cmpi ne, %224, %225 : vector<8x8xi32>
    %227 = vector.extract_strided_slice %222 {offsets = [0, 7], sizes = [8, 1], strides = [1, 1]} : vector<8x8xf32> to vector<8x1xf32>
    %228 = vector.extract_strided_slice %222 {offsets = [0, 0], sizes = [8, 7], strides = [1, 1]} : vector<8x8xf32> to vector<8x7xf32>
    %229 = tpu.concatenate %227, %228 in 1 : vector<8x1xf32>, vector<8x7xf32> -> vector<8x8xf32>
    %230 = arith.select %226, %229, %222 : vector<8x8xi1>, vector<8x8xf32>
    %c2_i32_55 = arith.constant 2 : i32
    %231 = vector.broadcast %c2_i32_55 : i32 to vector<8x8xi32>
    %232 = arith.andi %43, %231 : vector<8x8xi32>
    %c0_i32_56 = arith.constant 0 : i32
    %233 = vector.broadcast %c0_i32_56 : i32 to vector<8x8xi32>
    %234 = arith.cmpi ne, %232, %233 : vector<8x8xi32>
    %235 = vector.extract_strided_slice %230 {offsets = [0, 6], sizes = [8, 2], strides = [1, 1]} : vector<8x8xf32> to vector<8x2xf32>
    %236 = vector.extract_strided_slice %230 {offsets = [0, 0], sizes = [8, 6], strides = [1, 1]} : vector<8x8xf32> to vector<8x6xf32>
    %237 = tpu.concatenate %235, %236 in 1 : vector<8x2xf32>, vector<8x6xf32> -> vector<8x8xf32>
    %238 = arith.select %234, %237, %230 : vector<8x8xi1>, vector<8x8xf32>
    %c4_i32_57 = arith.constant 4 : i32
    %239 = vector.broadcast %c4_i32_57 : i32 to vector<8x8xi32>
    %240 = arith.andi %43, %239 : vector<8x8xi32>
    %c0_i32_58 = arith.constant 0 : i32
    %241 = vector.broadcast %c0_i32_58 : i32 to vector<8x8xi32>
    %242 = arith.cmpi ne, %240, %241 : vector<8x8xi32>
    %243 = vector.extract_strided_slice %238 {offsets = [0, 4], sizes = [8, 4], strides = [1, 1]} : vector<8x8xf32> to vector<8x4xf32>
    %244 = vector.extract_strided_slice %238 {offsets = [0, 0], sizes = [8, 4], strides = [1, 1]} : vector<8x8xf32> to vector<8x4xf32>
    %245 = tpu.concatenate %243, %244 in 1 : vector<8x4xf32>, vector<8x4xf32> -> vector<8x8xf32>
    %246 = arith.select %242, %245, %238 : vector<8x8xi1>, vector<8x8xf32>
    %cst_59 = arith.constant 0.000000e+00 : f32
    %247 = vector.broadcast %cst_59 : f32 to vector<8x8xf32>
    %248 = arith.select %54, %247, %246 : vector<8x8xi1>, vector<8x8xf32>
    %249 = arith.addf %207, %248 : vector<8x8xf32>
    %cst_60 = arith.constant dense<0xFF800000> : vector<8xf32>
    %250 = vector.multi_reduction <maximumf>, %249, %cst_60 [1] : vector<8x8xf32> to vector<8xf32>
    %251 = vector.shape_cast %250 : vector<8xf32> to vector<8x1xf32>
    %252 = vector.broadcast %251 : vector<8x1xf32> to vector<8x8xf32>
    %253 = arith.subf %249, %252 : vector<8x8xf32>
    %254 = math.exp %253 : vector<8x8xf32>
    %cst_61 = arith.constant dense<0.000000e+00> : vector<8xf32>
    %255 = vector.multi_reduction <add>, %254, %cst_61 [1] : vector<8x8xf32> to vector<8xf32>
    %256 = vector.shape_cast %255 : vector<8xf32> to vector<8x1xf32>
    %257 = tpu.reciprocal %256 {approx = true} : vector<8x1xf32> -> vector<8x1xf32>
    %258 = vector.broadcast %257 : vector<8x1xf32> to vector<8x8xf32>
    %259 = arith.mulf %254, %258 : vector<8x8xf32>
    %260 = arith.truncf %259 : vector<8x8xf32> to vector<8x8xbf16>
    %cst_62 = arith.constant dense<0.000000e+00> : vector<8x8xf32>
    %261 = tpu.matmul %260, %200, %cst_62 {dimension_numbers = #tpu.dot_dimension_numbers<[1], [0], [0], [1], [0, 0, 1, 1], [], []>} : vector<8x8xbf16>, vector<8x8xbf16>, vector<8x8xf32> -> vector<8x8xf32>
    %262 = arith.truncf %261 : vector<8x8xf32> to vector<8x8xbf16>
    %263 = vector.extract_strided_slice %42 {offsets = [16, 0], sizes = [8, 32], strides = [1, 1]} : vector<32x32xbf16> to vector<8x32xbf16>
    %cst_63 = arith.constant dense<0.000000e+00> : vector<8x32xf32>
    %264 = tpu.matmul %262, %263, %cst_63 {dimension_numbers = #tpu.dot_dimension_numbers<[1], [0], [0], [1], [0, 0, 1, 1], [], []>} : vector<8x8xbf16>, vector<8x32xbf16>, vector<8x32xf32> -> vector<8x32xf32>
    %265 = arith.addf %195, %264 : vector<8x32xf32>
    %266 = vector.extract_strided_slice %34 {offsets = [0, 24], sizes = [8, 8], strides = [1, 1]} : vector<8x32xf32> to vector<8x8xf32>
    %267 = vector.extract_strided_slice %31 {offsets = [0, 56], sizes = [8, 8], strides = [1, 1]} : vector<8x96xf32> to vector<8x8xf32>
    %268 = arith.truncf %267 : vector<8x8xf32> to vector<8x8xbf16>
    %269 = vector.extract_strided_slice %31 {offsets = [0, 88], sizes = [8, 8], strides = [1, 1]} : vector<8x96xf32> to vector<8x8xf32>
    %270 = arith.truncf %269 : vector<8x8xf32> to vector<8x8xbf16>
    %271 = vector.extract_strided_slice %41 {offsets = [0, 24], sizes = [8, 8], strides = [1, 1]} : vector<8x32xf32> to vector<8x8xf32>
    %272 = arith.truncf %271 : vector<8x8xf32> to vector<8x8xbf16>
    %273 = vector.extract_strided_slice %37 {offsets = [0, 24], sizes = [1, 8], strides = [1, 1]} : vector<1x32xf32> to vector<1x8xf32>
    %274 = vector.broadcast %273 : vector<1x8xf32> to vector<8x8xf32>
    %275 = arith.addf %266, %274 : vector<8x8xf32>
    %276 = arith.truncf %275 : vector<8x8xf32> to vector<8x8xbf16>
    %cst_64 = arith.constant dense<0.000000e+00> : vector<8x8xf32>
    %277 = tpu.matmul %276, %268, %cst_64 {dimension_numbers = #tpu.dot_dimension_numbers<[1], [1], [0], [0], [0, 0, 1, 0], [], []>} : vector<8x8xbf16>, vector<8x8xbf16>, vector<8x8xf32> -> vector<8x8xf32>
    %278 = vector.extract_strided_slice %40 {offsets = [0, 24], sizes = [1, 8], strides = [1, 1]} : vector<1x32xf32> to vector<1x8xf32>
    %279 = vector.broadcast %278 : vector<1x8xf32> to vector<8x8xf32>
    %280 = arith.addf %266, %279 : vector<8x8xf32>
    %281 = arith.truncf %280 : vector<8x8xf32> to vector<8x8xbf16>
    %cst_65 = arith.constant dense<0.000000e+00> : vector<8x8xf32>
    %282 = tpu.matmul %281, %272, %cst_65 {dimension_numbers = #tpu.dot_dimension_numbers<[1], [1], [0], [0], [0, 0, 1, 0], [], []>} : vector<8x8xbf16>, vector<8x8xbf16>, vector<8x8xf32> -> vector<8x8xf32>
    %283 = vector.extract_strided_slice %282 {offsets = [0, 7], sizes = [8, 1], strides = [1, 1]} : vector<8x8xf32> to vector<8x1xf32>
    %284 = vector.extract_strided_slice %282 {offsets = [0, 0], sizes = [8, 7], strides = [1, 1]} : vector<8x8xf32> to vector<8x7xf32>
    %285 = tpu.concatenate %283, %284 in 1 : vector<8x1xf32>, vector<8x7xf32> -> vector<8x8xf32>
    %286 = vector.extract_strided_slice %282 {offsets = [1, 0], sizes = [7, 8], strides = [1, 1]} : vector<8x8xf32> to vector<7x8xf32>
    %287 = vector.extract_strided_slice %282 {offsets = [0, 0], sizes = [1, 8], strides = [1, 1]} : vector<8x8xf32> to vector<1x8xf32>
    %288 = tpu.concatenate %286, %287 in 0 : vector<7x8xf32>, vector<1x8xf32> -> vector<8x8xf32>
    %289 = vector.extract_strided_slice %288 {offsets = [0, 6], sizes = [8, 2], strides = [1, 1]} : vector<8x8xf32> to vector<8x2xf32>
    %290 = vector.extract_strided_slice %288 {offsets = [0, 0], sizes = [8, 6], strides = [1, 1]} : vector<8x8xf32> to vector<8x6xf32>
    %291 = tpu.concatenate %289, %290 in 1 : vector<8x2xf32>, vector<8x6xf32> -> vector<8x8xf32>
    %292 = arith.select %51, %285, %291 : vector<8x8xi1>, vector<8x8xf32>
    %c1_i32_66 = arith.constant 1 : i32
    %293 = vector.broadcast %c1_i32_66 : i32 to vector<8x8xi32>
    %294 = arith.andi %43, %293 : vector<8x8xi32>
    %c0_i32_67 = arith.constant 0 : i32
    %295 = vector.broadcast %c0_i32_67 : i32 to vector<8x8xi32>
    %296 = arith.cmpi ne, %294, %295 : vector<8x8xi32>
    %297 = vector.extract_strided_slice %292 {offsets = [0, 7], sizes = [8, 1], strides = [1, 1]} : vector<8x8xf32> to vector<8x1xf32>
    %298 = vector.extract_strided_slice %292 {offsets = [0, 0], sizes = [8, 7], strides = [1, 1]} : vector<8x8xf32> to vector<8x7xf32>
    %299 = tpu.concatenate %297, %298 in 1 : vector<8x1xf32>, vector<8x7xf32> -> vector<8x8xf32>
    %300 = arith.select %296, %299, %292 : vector<8x8xi1>, vector<8x8xf32>
    %c2_i32_68 = arith.constant 2 : i32
    %301 = vector.broadcast %c2_i32_68 : i32 to vector<8x8xi32>
    %302 = arith.andi %43, %301 : vector<8x8xi32>
    %c0_i32_69 = arith.constant 0 : i32
    %303 = vector.broadcast %c0_i32_69 : i32 to vector<8x8xi32>
    %304 = arith.cmpi ne, %302, %303 : vector<8x8xi32>
    %305 = vector.extract_strided_slice %300 {offsets = [0, 6], sizes = [8, 2], strides = [1, 1]} : vector<8x8xf32> to vector<8x2xf32>
    %306 = vector.extract_strided_slice %300 {offsets = [0, 0], sizes = [8, 6], strides = [1, 1]} : vector<8x8xf32> to vector<8x6xf32>
    %307 = tpu.concatenate %305, %306 in 1 : vector<8x2xf32>, vector<8x6xf32> -> vector<8x8xf32>
    %308 = arith.select %304, %307, %300 : vector<8x8xi1>, vector<8x8xf32>
    %c4_i32_70 = arith.constant 4 : i32
    %309 = vector.broadcast %c4_i32_70 : i32 to vector<8x8xi32>
    %310 = arith.andi %43, %309 : vector<8x8xi32>
    %c0_i32_71 = arith.constant 0 : i32
    %311 = vector.broadcast %c0_i32_71 : i32 to vector<8x8xi32>
    %312 = arith.cmpi ne, %310, %311 : vector<8x8xi32>
    %313 = vector.extract_strided_slice %308 {offsets = [0, 4], sizes = [8, 4], strides = [1, 1]} : vector<8x8xf32> to vector<8x4xf32>
    %314 = vector.extract_strided_slice %308 {offsets = [0, 0], sizes = [8, 4], strides = [1, 1]} : vector<8x8xf32> to vector<8x4xf32>
    %315 = tpu.concatenate %313, %314 in 1 : vector<8x4xf32>, vector<8x4xf32> -> vector<8x8xf32>
    %316 = arith.select %312, %315, %308 : vector<8x8xi1>, vector<8x8xf32>
    %cst_72 = arith.constant 0.000000e+00 : f32
    %317 = vector.broadcast %cst_72 : f32 to vector<8x8xf32>
    %318 = arith.select %54, %317, %316 : vector<8x8xi1>, vector<8x8xf32>
    %319 = arith.addf %277, %318 : vector<8x8xf32>
    %cst_73 = arith.constant dense<0xFF800000> : vector<8xf32>
    %320 = vector.multi_reduction <maximumf>, %319, %cst_73 [1] : vector<8x8xf32> to vector<8xf32>
    %321 = vector.shape_cast %320 : vector<8xf32> to vector<8x1xf32>
    %322 = vector.broadcast %321 : vector<8x1xf32> to vector<8x8xf32>
    %323 = arith.subf %319, %322 : vector<8x8xf32>
    %324 = math.exp %323 : vector<8x8xf32>
    %cst_74 = arith.constant dense<0.000000e+00> : vector<8xf32>
    %325 = vector.multi_reduction <add>, %324, %cst_74 [1] : vector<8x8xf32> to vector<8xf32>
    %326 = vector.shape_cast %325 : vector<8xf32> to vector<8x1xf32>
    %327 = tpu.reciprocal %326 {approx = true} : vector<8x1xf32> -> vector<8x1xf32>
    %328 = vector.broadcast %327 : vector<8x1xf32> to vector<8x8xf32>
    %329 = arith.mulf %324, %328 : vector<8x8xf32>
    %330 = arith.truncf %329 : vector<8x8xf32> to vector<8x8xbf16>
    %cst_75 = arith.constant dense<0.000000e+00> : vector<8x8xf32>
    %331 = tpu.matmul %330, %270, %cst_75 {dimension_numbers = #tpu.dot_dimension_numbers<[1], [0], [0], [1], [0, 0, 1, 1], [], []>} : vector<8x8xbf16>, vector<8x8xbf16>, vector<8x8xf32> -> vector<8x8xf32>
    %332 = arith.truncf %331 : vector<8x8xf32> to vector<8x8xbf16>
    %333 = vector.extract_strided_slice %42 {offsets = [24, 0], sizes = [8, 32], strides = [1, 1]} : vector<32x32xbf16> to vector<8x32xbf16>
    %cst_76 = arith.constant dense<0.000000e+00> : vector<8x32xf32>
    %334 = tpu.matmul %332, %333, %cst_76 {dimension_numbers = #tpu.dot_dimension_numbers<[1], [0], [0], [1], [0, 0, 1, 1], [], []>} : vector<8x8xbf16>, vector<8x32xbf16>, vector<8x32xf32> -> vector<8x32xf32>
    %335 = arith.addf %265, %334 : vector<8x32xf32>
    %c0_77 = arith.constant 0 : index
    %c0_78 = arith.constant 0 : index
    %336 = vector.load %arg10[%c0_77, %c0_78] : memref<1x32xf32, #tpu.memory_space<vmem>>, vector<1x32xf32>
    %337 = vector.broadcast %336 : vector<1x32xf32> to vector<8x32xf32>
    %338 = arith.addf %335, %337 : vector<8x32xf32>
    %c0_79 = arith.constant 0 : index
    %c0_80 = arith.constant 0 : index
    %339 = memref.load %arg11[%c0_79, %c0_80] : memref<1x1xf32, #tpu.memory_space<smem>>
    %340 = vector.broadcast %339 : f32 to vector<8x32xf32>
    %341 = arith.mulf %340, %338 : vector<8x32xf32>
    %342 = arith.addf %1, %341 : vector<8x32xf32>
    %c0_81 = arith.constant 0 : index
    %c0_82 = arith.constant 0 : index
    %c0_83 = arith.constant 0 : index
    %343 = vector.load %arg12[%c0_81, %c0_82, %c0_83] : memref<1x8x32xf32, #tpu.memory_space<vmem>>, vector<1x8x32xf32>
    %344 = vector.shape_cast %343 : vector<1x8x32xf32> to vector<8x32xf32>
    %345 = vector.shape_cast %342 : vector<8x32xf32> to vector<1x8x32xf32>
    tpu.vector_store %arg12[%c0_81, %c0_82, %c0_83], %345 {strides = array<i32>} : memref<1x8x32xf32, #tpu.memory_space<vmem>>, vector<1x8x32xf32>,
    return
  }
  func.func @transform_0(%arg0: i32) -> (i32, i32, i32) {
    %c0_i32 = arith.constant 0 : i32
    %c0_i32_0 = arith.constant 0 : i32
    %c0_i32_1 = arith.constant 0 : i32
    return %arg0, %c0_i32, %c0_i32_0 : i32, i32, i32
  }
  func.func @transform_1(%arg0: i32) -> (i32, i32) {
    %c0_i32 = arith.constant 0 : i32
    %c0_i32_0 = arith.constant 0 : i32
    %c0_i32_1 = arith.constant 0 : i32
    return %c0_i32, %c0_i32_0 : i32, i32
  }
  func.func @transform_2(%arg0: i32) -> (i32, i32) {
    %c0_i32 = arith.constant 0 : i32
    %c0_i32_0 = arith.constant 0 : i32
    %c0_i32_1 = arith.constant 0 : i32
    return %c0_i32, %c0_i32_0 : i32, i32
  }
  func.func @transform_3(%arg0: i32) -> (i32, i32) {
    %c0_i32 = arith.constant 0 : i32
    %c0_i32_0 = arith.constant 0 : i32
    %c0_i32_1 = arith.constant 0 : i32
    return %c0_i32, %c0_i32_0 : i32, i32
  }
  func.func @transform_4(%arg0: i32) -> (i32, i32) {
    %c0_i32 = arith.constant 0 : i32
    %c0_i32_0 = arith.constant 0 : i32
    %c0_i32_1 = arith.constant 0 : i32
    return %c0_i32, %c0_i32_0 : i32, i32
  }
  func.func @transform_5(%arg0: i32) -> (i32, i32) {
    %c0_i32 = arith.constant 0 : i32
    %c0_i32_0 = arith.constant 0 : i32
    %c0_i32_1 = arith.constant 0 : i32
    return %c0_i32, %c0_i32_0 : i32, i32
  }
  func.func @transform_6(%arg0: i32) -> (i32, i32) {
    %c0_i32 = arith.constant 0 : i32
    %c0_i32_0 = arith.constant 0 : i32
    %c0_i32_1 = arith.constant 0 : i32
    return %c0_i32, %c0_i32_0 : i32, i32
  }
  func.func @transform_7(%arg0: i32) -> (i32, i32) {
    %c0_i32 = arith.constant 0 : i32
    %c0_i32_0 = arith.constant 0 : i32
    %c0_i32_1 = arith.constant 0 : i32
    return %c0_i32, %c0_i32_0 : i32, i32
  }
  func.func @transform_8(%arg0: i32) -> (i32, i32) {
    %c0_i32 = arith.constant 0 : i32
    %c0_i32_0 = arith.constant 0 : i32
    %c0_i32_1 = arith.constant 0 : i32
    return %c0_i32, %c0_i32_0 : i32, i32
  }
  func.func @transform_9(%arg0: i32) -> (i32, i32) {
    %c0_i32 = arith.constant 0 : i32
    %c0_i32_0 = arith.constant 0 : i32
    %c0_i32_1 = arith.constant 0 : i32
    return %c0_i32, %c0_i32_0 : i32, i32
  }
  func.func @transform_10(%arg0: i32) -> (i32, i32) {
    %c0_i32 = arith.constant 0 : i32
    %c0_i32_0 = arith.constant 0 : i32
    %c0_i32_1 = arith.constant 0 : i32
    return %c0_i32, %c0_i32_0 : i32, i32
  }
  func.func @transform_11(%arg0: i32) -> (i32, i32, i32) {
    %c0_i32 = arith.constant 0 : i32
    %c0_i32_0 = arith.constant 0 : i32
    %c0_i32_1 = arith.constant 0 : i32
    return %arg0, %c0_i32, %c0_i32_0 : i32, i32, i32
  }
}

module attributes {stable_mosaic.version = 11 : i64} {
  func.func @_matmul_kernel(%arg0: i32, %arg1: memref<8x32xf32, #tpu.memory_space<vmem>>, %arg2: memref<32x32xbf16, #tpu.memory_space<vmem>>, %arg3: memref<8x32xf32, #tpu.memory_space<vmem>>) attributes {dimension_semantics = [#tpu.dimension_semantics<parallel>], iteration_bounds = array<i64: 1>, scalar_prefetch = 0 : i64, scratch_operands = 0 : i64, tpu.core_type = #tpu.core_type<tc>, window_params = [{transform_indices = @transform_0, window_bounds = array<i64: 8, 32>}, {pipeline_mode = #tpu.pipeline_mode<synchronous>, transform_indices = @transform_1, window_bounds = array<i64: 32, 32>}, {transform_indices = @transform_2, window_bounds = array<i64: 8, 32>}]} {
    %c0 = arith.constant 0 : index
    %c0_0 = arith.constant 0 : index
    %0 = vector.load %arg1[%c0, %c0_0] : memref<8x32xf32, #tpu.memory_space<vmem>>, vector<8x32xf32>
    %1 = arith.truncf %0 : vector<8x32xf32> to vector<8x32xbf16>
    %c0_1 = arith.constant 0 : index
    %c0_2 = arith.constant 0 : index
    %2 = vector.load %arg2[%c0_1, %c0_2] : memref<32x32xbf16, #tpu.memory_space<vmem>>, vector<32x32xbf16>
    %cst = arith.constant dense<0.000000e+00> : vector<8x32xf32>
    %3 = tpu.matmul %1, %2, %cst {dimension_numbers = #tpu.dot_dimension_numbers<[1], [0], [0], [1], [0, 0, 1, 1], [], []>} : vector<8x32xbf16>, vector<32x32xbf16>, vector<8x32xf32> -> vector<8x32xf32>
    %c0_3 = arith.constant 0 : index
    %c0_4 = arith.constant 0 : index
    %4 = vector.load %arg3[%c0_3, %c0_4] : memref<8x32xf32, #tpu.memory_space<vmem>>, vector<8x32xf32>
    tpu.vector_store %arg3[%c0_3, %c0_4], %3 {strides = array<i32>} : memref<8x32xf32, #tpu.memory_space<vmem>>, vector<8x32xf32>,
    return
  }
  func.func @transform_0(%arg0: i32) -> (i32, i32) {
    %c0_i32 = arith.constant 0 : i32
    %c0_i32_0 = arith.constant 0 : i32
    return %arg0, %c0_i32 : i32, i32
  }
  func.func @transform_1(%arg0: i32) -> (i32, i32) {
    %c0_i32 = arith.constant 0 : i32
    %c0_i32_0 = arith.constant 0 : i32
    %c0_i32_1 = arith.constant 0 : i32
    return %c0_i32, %c0_i32_0 : i32, i32
  }
  func.func @transform_2(%arg0: i32) -> (i32, i32) {
    %c0_i32 = arith.constant 0 : i32
    %c0_i32_0 = arith.constant 0 : i32
    return %arg0, %c0_i32 : i32, i32
  }
}

module attributes {stable_mosaic.version = 11 : i64} {
  func.func @_conv_module_kernel(%arg0: i32, %arg1: memref<1x8x32xf32, #tpu.memory_space<vmem>>, %arg2: memref<1x32xf32, #tpu.memory_space<vmem>>, %arg3: memref<1x32xf32, #tpu.memory_space<vmem>>, %arg4: memref<32x64xbf16, #tpu.memory_space<vmem>>, %arg5: memref<1x64xf32, #tpu.memory_space<vmem>>, %arg6: memref<7x32xf32, #tpu.memory_space<vmem>>, %arg7: memref<1x32xf32, #tpu.memory_space<vmem>>, %arg8: memref<1x32xf32, #tpu.memory_space<vmem>>, %arg9: memref<1x32xf32, #tpu.memory_space<vmem>>, %arg10: memref<1x32xf32, #tpu.memory_space<vmem>>, %arg11: memref<32x32xbf16, #tpu.memory_space<vmem>>, %arg12: memref<1x32xf32, #tpu.memory_space<vmem>>, %arg13: memref<1x1xf32, #tpu.memory_space<smem>>, %arg14: memref<1x8x32xf32, #tpu.memory_space<vmem>>) attributes {dimension_semantics = [#tpu.dimension_semantics<parallel>], iteration_bounds = array<i64: 2>, scalar_prefetch = 0 : i64, scratch_operands = 0 : i64, tpu.core_type = #tpu.core_type<tc>, window_params = [{transform_indices = @transform_0, window_bounds = array<i64: 1, 8, 32>}, {pipeline_mode = #tpu.pipeline_mode<synchronous>, transform_indices = @transform_1, window_bounds = array<i64: 1, 32>}, {pipeline_mode = #tpu.pipeline_mode<synchronous>, transform_indices = @transform_2, window_bounds = array<i64: 1, 32>}, {pipeline_mode = #tpu.pipeline_mode<synchronous>, transform_indices = @transform_3, window_bounds = array<i64: 32, 64>}, {pipeline_mode = #tpu.pipeline_mode<synchronous>, transform_indices = @transform_4, window_bounds = array<i64: 1, 64>}, {pipeline_mode = #tpu.pipeline_mode<synchronous>, transform_indices = @transform_5, window_bounds = array<i64: 7, 32>}, {pipeline_mode = #tpu.pipeline_mode<synchronous>, transform_indices = @transform_6, window_bounds = array<i64: 1, 32>}, {pipeline_mode = #tpu.pipeline_mode<synchronous>, transform_indices = @transform_7, window_bounds = array<i64: 1, 32>}, {pipeline_mode = #tpu.pipeline_mode<synchronous>, transform_indices = @transform_8, window_bounds = array<i64: 1, 32>}, {pipeline_mode = #tpu.pipeline_mode<synchronous>, transform_indices = @transform_9, window_bounds = array<i64: 1, 32>}, {pipeline_mode = #tpu.pipeline_mode<synchronous>, transform_indices = @transform_10, window_bounds = array<i64: 32, 32>}, {pipeline_mode = #tpu.pipeline_mode<synchronous>, transform_indices = @transform_11, window_bounds = array<i64: 1, 32>}, {transform_indices = @transform_12, window_bounds = array<i64: 1, 1>}, {transform_indices = @transform_13, window_bounds = array<i64: 1, 8, 32>}]} {
    %c0 = arith.constant 0 : index
    %c0_0 = arith.constant 0 : index
    %c0_1 = arith.constant 0 : index
    %0 = vector.load %arg1[%c0, %c0_0, %c0_1] : memref<1x8x32xf32, #tpu.memory_space<vmem>>, vector<1x8x32xf32>
    %1 = vector.shape_cast %0 : vector<1x8x32xf32> to vector<8x32xf32>
    %c0_2 = arith.constant 0 : index
    %c0_3 = arith.constant 0 : index
    %2 = vector.load %arg2[%c0_2, %c0_3] : memref<1x32xf32, #tpu.memory_space<vmem>>, vector<1x32xf32>
    %c0_4 = arith.constant 0 : index
    %c0_5 = arith.constant 0 : index
    %3 = vector.load %arg3[%c0_4, %c0_5] : memref<1x32xf32, #tpu.memory_space<vmem>>, vector<1x32xf32>
    %cst = arith.constant dense<0.000000e+00> : vector<8xf32>
    %4 = vector.multi_reduction <add>, %1, %cst [1] : vector<8x32xf32> to vector<8xf32>
    %5 = vector.shape_cast %4 : vector<8xf32> to vector<8x1xf32>
    %cst_6 = arith.constant 3.200000e+01 : f32
    %6 = vector.broadcast %cst_6 : f32 to vector<8x1xf32>
    %7 = arith.divf %5, %6 : vector<8x1xf32>
    %8 = vector.broadcast %7 : vector<8x1xf32> to vector<8x32xf32>
    %9 = arith.subf %1, %8 : vector<8x32xf32>
    %10 = arith.mulf %9, %9 : vector<8x32xf32>
    %cst_7 = arith.constant dense<0.000000e+00> : vector<8xf32>
    %11 = vector.multi_reduction <add>, %10, %cst_7 [1] : vector<8x32xf32> to vector<8xf32>
    %12 = vector.shape_cast %11 : vector<8xf32> to vector<8x1xf32>
    %cst_8 = arith.constant 3.200000e+01 : f32
    %13 = vector.broadcast %cst_8 : f32 to vector<8x1xf32>
    %14 = arith.divf %12, %13 : vector<8x1xf32>
    %15 = vector.broadcast %7 : vector<8x1xf32> to vector<8x32xf32>
    %16 = arith.subf %1, %15 : vector<8x32xf32>
    %cst_9 = arith.constant 9.99999974E-6 : f32
    %17 = vector.broadcast %cst_9 : f32 to vector<8x1xf32>
    %18 = arith.addf %14, %17 : vector<8x1xf32>
    %19 = math.rsqrt %18 : vector<8x1xf32>
    %20 = vector.broadcast %19 : vector<8x1xf32> to vector<8x32xf32>
    %21 = arith.mulf %16, %20 : vector<8x32xf32>
    %22 = vector.broadcast %2 : vector<1x32xf32> to vector<8x32xf32>
    %23 = arith.mulf %21, %22 : vector<8x32xf32>
    %24 = vector.broadcast %3 : vector<1x32xf32> to vector<8x32xf32>
    %25 = arith.addf %23, %24 : vector<8x32xf32>
    %26 = arith.truncf %25 : vector<8x32xf32> to vector<8x32xbf16>
    %c0_10 = arith.constant 0 : index
    %c0_11 = arith.constant 0 : index
    %27 = vector.load %arg4[%c0_10, %c0_11] : memref<32x64xbf16, #tpu.memory_space<vmem>>, vector<32x64xbf16>
    %cst_12 = arith.constant dense<0.000000e+00> : vector<8x64xf32>
    %28 = tpu.matmul %26, %27, %cst_12 {dimension_numbers = #tpu.dot_dimension_numbers<[1], [0], [0], [1], [0, 0, 1, 1], [], []>} : vector<8x32xbf16>, vector<32x64xbf16>, vector<8x64xf32> -> vector<8x64xf32>
    %c0_13 = arith.constant 0 : index
    %c0_14 = arith.constant 0 : index
    %29 = vector.load %arg5[%c0_13, %c0_14] : memref<1x64xf32, #tpu.memory_space<vmem>>, vector<1x64xf32>
    %30 = vector.broadcast %29 : vector<1x64xf32> to vector<8x64xf32>
    %31 = arith.addf %28, %30 : vector<8x64xf32>
    %32 = vector.extract_strided_slice %31 {offsets = [0, 0], sizes = [8, 32], strides = [1, 1]} : vector<8x64xf32> to vector<8x32xf32>
    %33 = vector.extract_strided_slice %31 {offsets = [0, 32], sizes = [8, 32], strides = [1, 1]} : vector<8x64xf32> to vector<8x32xf32>
    %34 = arith.negf %33 : vector<8x32xf32>
    %35 = math.exp %34 : vector<8x32xf32>
    %cst_15 = arith.constant 1.000000e+00 : f32
    %36 = vector.broadcast %cst_15 : f32 to vector<8x32xf32>
    %37 = arith.addf %36, %35 : vector<8x32xf32>
    %38 = arith.divf %36, %37 : vector<8x32xf32>
    %39 = arith.mulf %32, %38 : vector<8x32xf32>
    %40 = tpu.iota {dimensions = array<i32: 0>} : vector<8x1xi32>
    %c0_16 = arith.constant 0 : index
    %c0_17 = arith.constant 0 : index
    %41 = vector.load %arg6[%c0_16, %c0_17] : memref<7x32xf32, #tpu.memory_space<vmem>>, vector<7x32xf32>
    %cst_18 = arith.constant 0.000000e+00 : f32
    %42 = vector.broadcast %cst_18 : f32 to vector<8x32xf32>
    %43 = vector.extract_strided_slice %39 {offsets = [5, 0], sizes = [3, 32], strides = [1, 1]} : vector<8x32xf32> to vector<3x32xf32>
    %44 = vector.extract_strided_slice %39 {offsets = [0, 0], sizes = [5, 32], strides = [1, 1]} : vector<8x32xf32> to vector<5x32xf32>
    %45 = tpu.concatenate %43, %44 in 0 : vector<3x32xf32>, vector<5x32xf32> -> vector<8x32xf32>
    %c3_i32 = arith.constant 3 : i32
    %46 = vector.broadcast %c3_i32 : i32 to vector<8x1xi32>
    %47 = arith.cmpi sge, %40, %46 : vector<8x1xi32>
    %c11_i32 = arith.constant 11 : i32
    %48 = vector.broadcast %c11_i32 : i32 to vector<8x1xi32>
    %49 = arith.cmpi slt, %40, %48 : vector<8x1xi32>
    %50 = arith.andi %47, %49 : vector<8x1xi1>
    %cst_19 = arith.constant 0.000000e+00 : f32
    %51 = vector.shape_cast %50 : vector<8x1xi1> to vector<8x1xi1>
    %52 = vector.broadcast %51 : vector<8x1xi1> to vector<8x32xi1>
    %53 = vector.broadcast %cst_19 : f32 to vector<8x32xf32>
    %54 = arith.select %52, %45, %53 : vector<8x32xi1>, vector<8x32xf32>
    %55 = vector.extract_strided_slice %41 {offsets = [0, 0], sizes = [1, 32], strides = [1, 1]} : vector<7x32xf32> to vector<1x32xf32>
    %56 = vector.broadcast %55 : vector<1x32xf32> to vector<8x32xf32>
    %57 = arith.mulf %54, %56 : vector<8x32xf32>
    %58 = arith.addf %42, %57 : vector<8x32xf32>
    %59 = vector.extract_strided_slice %39 {offsets = [6, 0], sizes = [2, 32], strides = [1, 1]} : vector<8x32xf32> to vector<2x32xf32>
    %60 = vector.extract_strided_slice %39 {offsets = [0, 0], sizes = [6, 32], strides = [1, 1]} : vector<8x32xf32> to vector<6x32xf32>
    %61 = tpu.concatenate %59, %60 in 0 : vector<2x32xf32>, vector<6x32xf32> -> vector<8x32xf32>
    %c2_i32 = arith.constant 2 : i32
    %62 = vector.broadcast %c2_i32 : i32 to vector<8x1xi32>
    %63 = arith.cmpi sge, %40, %62 : vector<8x1xi32>
    %c10_i32 = arith.constant 10 : i32
    %64 = vector.broadcast %c10_i32 : i32 to vector<8x1xi32>
    %65 = arith.cmpi slt, %40, %64 : vector<8x1xi32>
    %66 = arith.andi %63, %65 : vector<8x1xi1>
    %cst_20 = arith.constant 0.000000e+00 : f32
    %67 = vector.shape_cast %66 : vector<8x1xi1> to vector<8x1xi1>
    %68 = vector.broadcast %67 : vector<8x1xi1> to vector<8x32xi1>
    %69 = vector.broadcast %cst_20 : f32 to vector<8x32xf32>
    %70 = arith.select %68, %61, %69 : vector<8x32xi1>, vector<8x32xf32>
    %71 = vector.extract_strided_slice %41 {offsets = [1, 0], sizes = [1, 32], strides = [1, 1]} : vector<7x32xf32> to vector<1x32xf32>
    %72 = vector.broadcast %71 : vector<1x32xf32> to vector<8x32xf32>
    %73 = arith.mulf %70, %72 : vector<8x32xf32>
    %74 = arith.addf %58, %73 : vector<8x32xf32>
    %75 = vector.extract_strided_slice %39 {offsets = [7, 0], sizes = [1, 32], strides = [1, 1]} : vector<8x32xf32> to vector<1x32xf32>
    %76 = vector.extract_strided_slice %39 {offsets = [0, 0], sizes = [7, 32], strides = [1, 1]} : vector<8x32xf32> to vector<7x32xf32>
    %77 = tpu.concatenate %75, %76 in 0 : vector<1x32xf32>, vector<7x32xf32> -> vector<8x32xf32>
    %c1_i32 = arith.constant 1 : i32
    %78 = vector.broadcast %c1_i32 : i32 to vector<8x1xi32>
    %79 = arith.cmpi sge, %40, %78 : vector<8x1xi32>
    %c9_i32 = arith.constant 9 : i32
    %80 = vector.broadcast %c9_i32 : i32 to vector<8x1xi32>
    %81 = arith.cmpi slt, %40, %80 : vector<8x1xi32>
    %82 = arith.andi %79, %81 : vector<8x1xi1>
    %cst_21 = arith.constant 0.000000e+00 : f32
    %83 = vector.shape_cast %82 : vector<8x1xi1> to vector<8x1xi1>
    %84 = vector.broadcast %83 : vector<8x1xi1> to vector<8x32xi1>
    %85 = vector.broadcast %cst_21 : f32 to vector<8x32xf32>
    %86 = arith.select %84, %77, %85 : vector<8x32xi1>, vector<8x32xf32>
    %87 = vector.extract_strided_slice %41 {offsets = [2, 0], sizes = [1, 32], strides = [1, 1]} : vector<7x32xf32> to vector<1x32xf32>
    %88 = vector.broadcast %87 : vector<1x32xf32> to vector<8x32xf32>
    %89 = arith.mulf %86, %88 : vector<8x32xf32>
    %90 = arith.addf %74, %89 : vector<8x32xf32>
    %91 = vector.extract_strided_slice %41 {offsets = [3, 0], sizes = [1, 32], strides = [1, 1]} : vector<7x32xf32> to vector<1x32xf32>
    %92 = vector.broadcast %91 : vector<1x32xf32> to vector<8x32xf32>
    %93 = arith.mulf %39, %92 : vector<8x32xf32>
    %94 = arith.addf %90, %93 : vector<8x32xf32>
    %95 = vector.extract_strided_slice %39 {offsets = [1, 0], sizes = [7, 32], strides = [1, 1]} : vector<8x32xf32> to vector<7x32xf32>
    %96 = vector.extract_strided_slice %39 {offsets = [0, 0], sizes = [1, 32], strides = [1, 1]} : vector<8x32xf32> to vector<1x32xf32>
    %97 = tpu.concatenate %95, %96 in 0 : vector<7x32xf32>, vector<1x32xf32> -> vector<8x32xf32>
    %c-1_i32 = arith.constant -1 : i32
    %98 = vector.broadcast %c-1_i32 : i32 to vector<8x1xi32>
    %99 = arith.cmpi sge, %40, %98 : vector<8x1xi32>
    %c7_i32 = arith.constant 7 : i32
    %100 = vector.broadcast %c7_i32 : i32 to vector<8x1xi32>
    %101 = arith.cmpi slt, %40, %100 : vector<8x1xi32>
    %102 = arith.andi %99, %101 : vector<8x1xi1>
    %cst_22 = arith.constant 0.000000e+00 : f32
    %103 = vector.shape_cast %102 : vector<8x1xi1> to vector<8x1xi1>
    %104 = vector.broadcast %103 : vector<8x1xi1> to vector<8x32xi1>
    %105 = vector.broadcast %cst_22 : f32 to vector<8x32xf32>
    %106 = arith.select %104, %97, %105 : vector<8x32xi1>, vector<8x32xf32>
    %107 = vector.extract_strided_slice %41 {offsets = [4, 0], sizes = [1, 32], strides = [1, 1]} : vector<7x32xf32> to vector<1x32xf32>
    %108 = vector.broadcast %107 : vector<1x32xf32> to vector<8x32xf32>
    %109 = arith.mulf %106, %108 : vector<8x32xf32>
    %110 = arith.addf %94, %109 : vector<8x32xf32>
    %111 = vector.extract_strided_slice %39 {offsets = [2, 0], sizes = [6, 32], strides = [1, 1]} : vector<8x32xf32> to vector<6x32xf32>
    %112 = vector.extract_strided_slice %39 {offsets = [0, 0], sizes = [2, 32], strides = [1, 1]} : vector<8x32xf32> to vector<2x32xf32>
    %113 = tpu.concatenate %111, %112 in 0 : vector<6x32xf32>, vector<2x32xf32> -> vector<8x32xf32>
    %c-2_i32 = arith.constant -2 : i32
    %114 = vector.broadcast %c-2_i32 : i32 to vector<8x1xi32>
    %115 = arith.cmpi sge, %40, %114 : vector<8x1xi32>
    %c6_i32 = arith.constant 6 : i32
    %116 = vector.broadcast %c6_i32 : i32 to vector<8x1xi32>
    %117 = arith.cmpi slt, %40, %116 : vector<8x1xi32>
    %118 = arith.andi %115, %117 : vector<8x1xi1>
    %cst_23 = arith.constant 0.000000e+00 : f32
    %119 = vector.shape_cast %118 : vector<8x1xi1> to vector<8x1xi1>
    %120 = vector.broadcast %119 : vector<8x1xi1> to vector<8x32xi1>
    %121 = vector.broadcast %cst_23 : f32 to vector<8x32xf32>
    %122 = arith.select %120, %113, %121 : vector<8x32xi1>, vector<8x32xf32>
    %123 = vector.extract_strided_slice %41 {offsets = [5, 0], sizes = [1, 32], strides = [1, 1]} : vector<7x32xf32> to vector<1x32xf32>
    %124 = vector.broadcast %123 : vector<1x32xf32> to vector<8x32xf32>
    %125 = arith.mulf %122, %124 : vector<8x32xf32>
    %126 = arith.addf %110, %125 : vector<8x32xf32>
    %127 = vector.extract_strided_slice %39 {offsets = [3, 0], sizes = [5, 32], strides = [1, 1]} : vector<8x32xf32> to vector<5x32xf32>
    %128 = vector.extract_strided_slice %39 {offsets = [0, 0], sizes = [3, 32], strides = [1, 1]} : vector<8x32xf32> to vector<3x32xf32>
    %129 = tpu.concatenate %127, %128 in 0 : vector<5x32xf32>, vector<3x32xf32> -> vector<8x32xf32>
    %c-3_i32 = arith.constant -3 : i32
    %130 = vector.broadcast %c-3_i32 : i32 to vector<8x1xi32>
    %131 = arith.cmpi sge, %40, %130 : vector<8x1xi32>
    %c5_i32 = arith.constant 5 : i32
    %132 = vector.broadcast %c5_i32 : i32 to vector<8x1xi32>
    %133 = arith.cmpi slt, %40, %132 : vector<8x1xi32>
    %134 = arith.andi %131, %133 : vector<8x1xi1>
    %cst_24 = arith.constant 0.000000e+00 : f32
    %135 = vector.shape_cast %134 : vector<8x1xi1> to vector<8x1xi1>
    %136 = vector.broadcast %135 : vector<8x1xi1> to vector<8x32xi1>
    %137 = vector.broadcast %cst_24 : f32 to vector<8x32xf32>
    %138 = arith.select %136, %129, %137 : vector<8x32xi1>, vector<8x32xf32>
    %139 = vector.extract_strided_slice %41 {offsets = [6, 0], sizes = [1, 32], strides = [1, 1]} : vector<7x32xf32> to vector<1x32xf32>
    %140 = vector.broadcast %139 : vector<1x32xf32> to vector<8x32xf32>
    %141 = arith.mulf %138, %140 : vector<8x32xf32>
    %142 = arith.addf %126, %141 : vector<8x32xf32>
    %c0_25 = arith.constant 0 : index
    %c0_26 = arith.constant 0 : index
    %143 = vector.load %arg9[%c0_25, %c0_26] : memref<1x32xf32, #tpu.memory_space<vmem>>, vector<1x32xf32>
    %144 = vector.broadcast %143 : vector<1x32xf32> to vector<8x32xf32>
    %145 = arith.subf %142, %144 : vector<8x32xf32>
    %c0_27 = arith.constant 0 : index
    %c0_28 = arith.constant 0 : index
    %146 = vector.load %arg10[%c0_27, %c0_28] : memref<1x32xf32, #tpu.memory_space<vmem>>, vector<1x32xf32>
    %cst_29 = arith.constant 9.99999974E-6 : f32
    %147 = vector.broadcast %cst_29 : f32 to vector<1x32xf32>
    %148 = arith.addf %146, %147 : vector<1x32xf32>
    %149 = math.rsqrt %148 : vector<1x32xf32>
    %150 = vector.broadcast %149 : vector<1x32xf32> to vector<8x32xf32>
    %151 = arith.mulf %145, %150 : vector<8x32xf32>
    %c0_30 = arith.constant 0 : index
    %c0_31 = arith.constant 0 : index
    %152 = vector.load %arg7[%c0_30, %c0_31] : memref<1x32xf32, #tpu.memory_space<vmem>>, vector<1x32xf32>
    %153 = vector.broadcast %152 : vector<1x32xf32> to vector<8x32xf32>
    %154 = arith.mulf %151, %153 : vector<8x32xf32>
    %c0_32 = arith.constant 0 : index
    %c0_33 = arith.constant 0 : index
    %155 = vector.load %arg8[%c0_32, %c0_33] : memref<1x32xf32, #tpu.memory_space<vmem>>, vector<1x32xf32>
    %156 = vector.broadcast %155 : vector<1x32xf32> to vector<8x32xf32>
    %157 = arith.addf %154, %156 : vector<8x32xf32>
    %158 = arith.negf %157 : vector<8x32xf32>
    %159 = math.exp %158 : vector<8x32xf32>
    %cst_34 = arith.constant 1.000000e+00 : f32
    %160 = vector.broadcast %cst_34 : f32 to vector<8x32xf32>
    %161 = arith.addf %160, %159 : vector<8x32xf32>
    %162 = arith.divf %160, %161 : vector<8x32xf32>
    %163 = arith.mulf %157, %162 : vector<8x32xf32>
    %164 = arith.truncf %163 : vector<8x32xf32> to vector<8x32xbf16>
    %c0_35 = arith.constant 0 : index
    %c0_36 = arith.constant 0 : index
    %165 = vector.load %arg11[%c0_35, %c0_36] : memref<32x32xbf16, #tpu.memory_space<vmem>>, vector<32x32xbf16>
    %cst_37 = arith.constant dense<0.000000e+00> : vector<8x32xf32>
    %166 = tpu.matmul %164, %165, %cst_37 {dimension_numbers = #tpu.dot_dimension_numbers<[1], [0], [0], [1], [0, 0, 1, 1], [], []>} : vector<8x32xbf16>, vector<32x32xbf16>, vector<8x32xf32> -> vector<8x32xf32>
    %c0_38 = arith.constant 0 : index
    %c0_39 = arith.constant 0 : index
    %167 = vector.load %arg12[%c0_38, %c0_39] : memref<1x32xf32, #tpu.memory_space<vmem>>, vector<1x32xf32>
    %168 = vector.broadcast %167 : vector<1x32xf32> to vector<8x32xf32>
    %169 = arith.addf %166, %168 : vector<8x32xf32>
    %c0_40 = arith.constant 0 : index
    %c0_41 = arith.constant 0 : index
    %170 = memref.load %arg13[%c0_40, %c0_41] : memref<1x1xf32, #tpu.memory_space<smem>>
    %171 = vector.broadcast %170 : f32 to vector<8x32xf32>
    %172 = arith.mulf %171, %169 : vector<8x32xf32>
    %173 = arith.addf %1, %172 : vector<8x32xf32>
    %c0_42 = arith.constant 0 : index
    %c0_43 = arith.constant 0 : index
    %c0_44 = arith.constant 0 : index
    %174 = vector.load %arg14[%c0_42, %c0_43, %c0_44] : memref<1x8x32xf32, #tpu.memory_space<vmem>>, vector<1x8x32xf32>
    %175 = vector.shape_cast %174 : vector<1x8x32xf32> to vector<8x32xf32>
    %176 = vector.shape_cast %173 : vector<8x32xf32> to vector<1x8x32xf32>
    tpu.vector_store %arg14[%c0_42, %c0_43, %c0_44], %176 {strides = array<i32>} : memref<1x8x32xf32, #tpu.memory_space<vmem>>, vector<1x8x32xf32>,
    return
  }
  func.func @transform_0(%arg0: i32) -> (i32, i32, i32) {
    %c0_i32 = arith.constant 0 : i32
    %c0_i32_0 = arith.constant 0 : i32
    %c0_i32_1 = arith.constant 0 : i32
    return %arg0, %c0_i32, %c0_i32_0 : i32, i32, i32
  }
  func.func @transform_1(%arg0: i32) -> (i32, i32) {
    %c0_i32 = arith.constant 0 : i32
    %c0_i32_0 = arith.constant 0 : i32
    %c0_i32_1 = arith.constant 0 : i32
    return %c0_i32, %c0_i32_0 : i32, i32
  }
  func.func @transform_2(%arg0: i32) -> (i32, i32) {
    %c0_i32 = arith.constant 0 : i32
    %c0_i32_0 = arith.constant 0 : i32
    %c0_i32_1 = arith.constant 0 : i32
    return %c0_i32, %c0_i32_0 : i32, i32
  }
  func.func @transform_3(%arg0: i32) -> (i32, i32) {
    %c0_i32 = arith.constant 0 : i32
    %c0_i32_0 = arith.constant 0 : i32
    %c0_i32_1 = arith.constant 0 : i32
    return %c0_i32, %c0_i32_0 : i32, i32
  }
  func.func @transform_4(%arg0: i32) -> (i32, i32) {
    %c0_i32 = arith.constant 0 : i32
    %c0_i32_0 = arith.constant 0 : i32
    %c0_i32_1 = arith.constant 0 : i32
    return %c0_i32, %c0_i32_0 : i32, i32
  }
  func.func @transform_5(%arg0: i32) -> (i32, i32) {
    %c0_i32 = arith.constant 0 : i32
    %c0_i32_0 = arith.constant 0 : i32
    %c0_i32_1 = arith.constant 0 : i32
    return %c0_i32, %c0_i32_0 : i32, i32
  }
  func.func @transform_6(%arg0: i32) -> (i32, i32) {
    %c0_i32 = arith.constant 0 : i32
    %c0_i32_0 = arith.constant 0 : i32
    %c0_i32_1 = arith.constant 0 : i32
    return %c0_i32, %c0_i32_0 : i32, i32
  }
  func.func @transform_7(%arg0: i32) -> (i32, i32) {
    %c0_i32 = arith.constant 0 : i32
    %c0_i32_0 = arith.constant 0 : i32
    %c0_i32_1 = arith.constant 0 : i32
    return %c0_i32, %c0_i32_0 : i32, i32
  }
  func.func @transform_8(%arg0: i32) -> (i32, i32) {
    %c0_i32 = arith.constant 0 : i32
    %c0_i32_0 = arith.constant 0 : i32
    %c0_i32_1 = arith.constant 0 : i32
    return %c0_i32, %c0_i32_0 : i32, i32
  }
  func.func @transform_9(%arg0: i32) -> (i32, i32) {
    %c0_i32 = arith.constant 0 : i32
    %c0_i32_0 = arith.constant 0 : i32
    %c0_i32_1 = arith.constant 0 : i32
    return %c0_i32, %c0_i32_0 : i32, i32
  }
  func.func @transform_10(%arg0: i32) -> (i32, i32) {
    %c0_i32 = arith.constant 0 : i32
    %c0_i32_0 = arith.constant 0 : i32
    %c0_i32_1 = arith.constant 0 : i32
    return %c0_i32, %c0_i32_0 : i32, i32
  }
  func.func @transform_11(%arg0: i32) -> (i32, i32) {
    %c0_i32 = arith.constant 0 : i32
    %c0_i32_0 = arith.constant 0 : i32
    %c0_i32_1 = arith.constant 0 : i32
    return %c0_i32, %c0_i32_0 : i32, i32
  }
  func.func @transform_12(%arg0: i32) -> (i32, i32) {
    %c0_i32 = arith.constant 0 : i32
    %c0_i32_0 = arith.constant 0 : i32
    %c0_i32_1 = arith.constant 0 : i32
    return %c0_i32, %c0_i32_0 : i32, i32
  }
  func.func @transform_13(%arg0: i32) -> (i32, i32, i32) {
    %c0_i32 = arith.constant 0 : i32
    %c0_i32_0 = arith.constant 0 : i32
    %c0_i32_1 = arith.constant 0 : i32
    return %arg0, %c0_i32, %c0_i32_0 : i32, i32, i32
  }
}

module attributes {stable_mosaic.version = 11 : i64} {
  func.func @_ffn_kernel(%arg0: i32, %arg1: memref<16x32xf32, #tpu.memory_space<vmem>>, %arg2: memref<1x32xf32, #tpu.memory_space<vmem>>, %arg3: memref<1x32xf32, #tpu.memory_space<vmem>>, %arg4: memref<32x128xbf16, #tpu.memory_space<vmem>>, %arg5: memref<1x128xf32, #tpu.memory_space<vmem>>, %arg6: memref<128x32xbf16, #tpu.memory_space<vmem>>, %arg7: memref<1x32xf32, #tpu.memory_space<vmem>>, %arg8: memref<1x32xf32, #tpu.memory_space<vmem>>, %arg9: memref<1x32xf32, #tpu.memory_space<vmem>>, %arg10: memref<1x1xf32, #tpu.memory_space<smem>>, %arg11: memref<16x32xf32, #tpu.memory_space<vmem>>) attributes {dimension_semantics = [#tpu.dimension_semantics<parallel>], iteration_bounds = array<i64: 1>, scalar_prefetch = 0 : i64, scratch_operands = 0 : i64, tpu.core_type = #tpu.core_type<tc>, window_params = [{transform_indices = @transform_0, window_bounds = array<i64: 16, 32>}, {pipeline_mode = #tpu.pipeline_mode<synchronous>, transform_indices = @transform_1, window_bounds = array<i64: 1, 32>}, {pipeline_mode = #tpu.pipeline_mode<synchronous>, transform_indices = @transform_2, window_bounds = array<i64: 1, 32>}, {pipeline_mode = #tpu.pipeline_mode<synchronous>, transform_indices = @transform_3, window_bounds = array<i64: 32, 128>}, {pipeline_mode = #tpu.pipeline_mode<synchronous>, transform_indices = @transform_4, window_bounds = array<i64: 1, 128>}, {pipeline_mode = #tpu.pipeline_mode<synchronous>, transform_indices = @transform_5, window_bounds = array<i64: 128, 32>}, {pipeline_mode = #tpu.pipeline_mode<synchronous>, transform_indices = @transform_6, window_bounds = array<i64: 1, 32>}, {pipeline_mode = #tpu.pipeline_mode<synchronous>, transform_indices = @transform_7, window_bounds = array<i64: 1, 32>}, {pipeline_mode = #tpu.pipeline_mode<synchronous>, transform_indices = @transform_8, window_bounds = array<i64: 1, 32>}, {transform_indices = @transform_9, window_bounds = array<i64: 1, 1>}, {transform_indices = @transform_10, window_bounds = array<i64: 16, 32>}]} {
    %c0 = arith.constant 0 : index
    %c0_0 = arith.constant 0 : index
    %0 = vector.load %arg1[%c0, %c0_0] : memref<16x32xf32, #tpu.memory_space<vmem>>, vector<16x32xf32>
    %c0_1 = arith.constant 0 : index
    %c0_2 = arith.constant 0 : index
    %1 = vector.load %arg2[%c0_1, %c0_2] : memref<1x32xf32, #tpu.memory_space<vmem>>, vector<1x32xf32>
    %c0_3 = arith.constant 0 : index
    %c0_4 = arith.constant 0 : index
    %2 = vector.load %arg3[%c0_3, %c0_4] : memref<1x32xf32, #tpu.memory_space<vmem>>, vector<1x32xf32>
    %cst = arith.constant dense<0.000000e+00> : vector<16xf32>
    %3 = vector.multi_reduction <add>, %0, %cst [1] : vector<16x32xf32> to vector<16xf32>
    %4 = vector.shape_cast %3 : vector<16xf32> to vector<16x1xf32>
    %cst_5 = arith.constant 3.200000e+01 : f32
    %5 = vector.broadcast %cst_5 : f32 to vector<16x1xf32>
    %6 = arith.divf %4, %5 : vector<16x1xf32>
    %7 = vector.broadcast %6 : vector<16x1xf32> to vector<16x32xf32>
    %8 = arith.subf %0, %7 : vector<16x32xf32>
    %9 = arith.mulf %8, %8 : vector<16x32xf32>
    %cst_6 = arith.constant dense<0.000000e+00> : vector<16xf32>
    %10 = vector.multi_reduction <add>, %9, %cst_6 [1] : vector<16x32xf32> to vector<16xf32>
    %11 = vector.shape_cast %10 : vector<16xf32> to vector<16x1xf32>
    %cst_7 = arith.constant 3.200000e+01 : f32
    %12 = vector.broadcast %cst_7 : f32 to vector<16x1xf32>
    %13 = arith.divf %11, %12 : vector<16x1xf32>
    %14 = vector.broadcast %6 : vector<16x1xf32> to vector<16x32xf32>
    %15 = arith.subf %0, %14 : vector<16x32xf32>
    %cst_8 = arith.constant 9.99999974E-6 : f32
    %16 = vector.broadcast %cst_8 : f32 to vector<16x1xf32>
    %17 = arith.addf %13, %16 : vector<16x1xf32>
    %18 = math.rsqrt %17 : vector<16x1xf32>
    %19 = vector.broadcast %18 : vector<16x1xf32> to vector<16x32xf32>
    %20 = arith.mulf %15, %19 : vector<16x32xf32>
    %21 = vector.broadcast %1 : vector<1x32xf32> to vector<16x32xf32>
    %22 = arith.mulf %20, %21 : vector<16x32xf32>
    %23 = vector.broadcast %2 : vector<1x32xf32> to vector<16x32xf32>
    %24 = arith.addf %22, %23 : vector<16x32xf32>
    %25 = arith.truncf %24 : vector<16x32xf32> to vector<16x32xbf16>
    %c0_9 = arith.constant 0 : index
    %c0_10 = arith.constant 0 : index
    %26 = vector.load %arg4[%c0_9, %c0_10] : memref<32x128xbf16, #tpu.memory_space<vmem>>, vector<32x128xbf16>
    %cst_11 = arith.constant dense<0.000000e+00> : vector<16x128xf32>
    %27 = tpu.matmul %25, %26, %cst_11 {dimension_numbers = #tpu.dot_dimension_numbers<[1], [0], [0], [1], [0, 0, 1, 1], [], []>} : vector<16x32xbf16>, vector<32x128xbf16>, vector<16x128xf32> -> vector<16x128xf32>
    %c0_12 = arith.constant 0 : index
    %c0_13 = arith.constant 0 : index
    %28 = vector.load %arg5[%c0_12, %c0_13] : memref<1x128xf32, #tpu.memory_space<vmem>>, vector<1x128xf32>
    %29 = vector.broadcast %28 : vector<1x128xf32> to vector<16x128xf32>
    %30 = arith.addf %27, %29 : vector<16x128xf32>
    %31 = arith.negf %30 : vector<16x128xf32>
    %32 = math.exp %31 : vector<16x128xf32>
    %cst_14 = arith.constant 1.000000e+00 : f32
    %33 = vector.broadcast %cst_14 : f32 to vector<16x128xf32>
    %34 = arith.addf %33, %32 : vector<16x128xf32>
    %35 = arith.divf %33, %34 : vector<16x128xf32>
    %36 = arith.mulf %30, %35 : vector<16x128xf32>
    %37 = arith.truncf %36 : vector<16x128xf32> to vector<16x128xbf16>
    %c0_15 = arith.constant 0 : index
    %c0_16 = arith.constant 0 : index
    %38 = vector.load %arg6[%c0_15, %c0_16] : memref<128x32xbf16, #tpu.memory_space<vmem>>, vector<128x32xbf16>
    %cst_17 = arith.constant dense<0.000000e+00> : vector<16x32xf32>
    %39 = tpu.matmul %37, %38, %cst_17 {dimension_numbers = #tpu.dot_dimension_numbers<[1], [0], [0], [1], [0, 0, 1, 1], [], []>} : vector<16x128xbf16>, vector<128x32xbf16>, vector<16x32xf32> -> vector<16x32xf32>
    %c0_18 = arith.constant 0 : index
    %c0_19 = arith.constant 0 : index
    %40 = vector.load %arg7[%c0_18, %c0_19] : memref<1x32xf32, #tpu.memory_space<vmem>>, vector<1x32xf32>
    %41 = vector.broadcast %40 : vector<1x32xf32> to vector<16x32xf32>
    %42 = arith.addf %39, %41 : vector<16x32xf32>
    %c0_20 = arith.constant 0 : index
    %c0_21 = arith.constant 0 : index
    %43 = memref.load %arg10[%c0_20, %c0_21] : memref<1x1xf32, #tpu.memory_space<smem>>
    %cst_22 = arith.constant 5.000000e-01 : f32
    %44 = arith.mulf %cst_22, %43 : f32
    %45 = vector.broadcast %44 : f32 to vector<16x32xf32>
    %46 = arith.mulf %45, %42 : vector<16x32xf32>
    %47 = arith.addf %0, %46 : vector<16x32xf32>
    %c0_23 = arith.constant 0 : index
    %c0_24 = arith.constant 0 : index
    %48 = vector.load %arg8[%c0_23, %c0_24] : memref<1x32xf32, #tpu.memory_space<vmem>>, vector<1x32xf32>
    %c0_25 = arith.constant 0 : index
    %c0_26 = arith.constant 0 : index
    %49 = vector.load %arg9[%c0_25, %c0_26] : memref<1x32xf32, #tpu.memory_space<vmem>>, vector<1x32xf32>
    %cst_27 = arith.constant dense<0.000000e+00> : vector<16xf32>
    %50 = vector.multi_reduction <add>, %47, %cst_27 [1] : vector<16x32xf32> to vector<16xf32>
    %51 = vector.shape_cast %50 : vector<16xf32> to vector<16x1xf32>
    %cst_28 = arith.constant 3.200000e+01 : f32
    %52 = vector.broadcast %cst_28 : f32 to vector<16x1xf32>
    %53 = arith.divf %51, %52 : vector<16x1xf32>
    %54 = vector.broadcast %53 : vector<16x1xf32> to vector<16x32xf32>
    %55 = arith.subf %47, %54 : vector<16x32xf32>
    %56 = arith.mulf %55, %55 : vector<16x32xf32>
    %cst_29 = arith.constant dense<0.000000e+00> : vector<16xf32>
    %57 = vector.multi_reduction <add>, %56, %cst_29 [1] : vector<16x32xf32> to vector<16xf32>
    %58 = vector.shape_cast %57 : vector<16xf32> to vector<16x1xf32>
    %cst_30 = arith.constant 3.200000e+01 : f32
    %59 = vector.broadcast %cst_30 : f32 to vector<16x1xf32>
    %60 = arith.divf %58, %59 : vector<16x1xf32>
    %61 = vector.broadcast %53 : vector<16x1xf32> to vector<16x32xf32>
    %62 = arith.subf %47, %61 : vector<16x32xf32>
    %cst_31 = arith.constant 9.99999974E-6 : f32
    %63 = vector.broadcast %cst_31 : f32 to vector<16x1xf32>
    %64 = arith.addf %60, %63 : vector<16x1xf32>
    %65 = math.rsqrt %64 : vector<16x1xf32>
    %66 = vector.broadcast %65 : vector<16x1xf32> to vector<16x32xf32>
    %67 = arith.mulf %62, %66 : vector<16x32xf32>
    %68 = vector.broadcast %48 : vector<1x32xf32> to vector<16x32xf32>
    %69 = arith.mulf %67, %68 : vector<16x32xf32>
    %70 = vector.broadcast %49 : vector<1x32xf32> to vector<16x32xf32>
    %71 = arith.addf %69, %70 : vector<16x32xf32>
    %c0_32 = arith.constant 0 : index
    %c0_33 = arith.constant 0 : index
    %72 = vector.load %arg11[%c0_32, %c0_33] : memref<16x32xf32, #tpu.memory_space<vmem>>, vector<16x32xf32>
    tpu.vector_store %arg11[%c0_32, %c0_33], %71 {strides = array<i32>} : memref<16x32xf32, #tpu.memory_space<vmem>>, vector<16x32xf32>,
    return
  }
  func.func @transform_0(%arg0: i32) -> (i32, i32) {
    %c0_i32 = arith.constant 0 : i32
    %c0_i32_0 = arith.constant 0 : i32
    return %arg0, %c0_i32 : i32, i32
  }
  func.func @transform_1(%arg0: i32) -> (i32, i32) {
    %c0_i32 = arith.constant 0 : i32
    %c0_i32_0 = arith.constant 0 : i32
    %c0_i32_1 = arith.constant 0 : i32
    return %c0_i32, %c0_i32_0 : i32, i32
  }
  func.func @transform_2(%arg0: i32) -> (i32, i32) {
    %c0_i32 = arith.constant 0 : i32
    %c0_i32_0 = arith.constant 0 : i32
    %c0_i32_1 = arith.constant 0 : i32
    return %c0_i32, %c0_i32_0 : i32, i32
  }
  func.func @transform_3(%arg0: i32) -> (i32, i32) {
    %c0_i32 = arith.constant 0 : i32
    %c0_i32_0 = arith.constant 0 : i32
    %c0_i32_1 = arith.constant 0 : i32
    return %c0_i32, %c0_i32_0 : i32, i32
  }
  func.func @transform_4(%arg0: i32) -> (i32, i32) {
    %c0_i32 = arith.constant 0 : i32
    %c0_i32_0 = arith.constant 0 : i32
    %c0_i32_1 = arith.constant 0 : i32
    return %c0_i32, %c0_i32_0 : i32, i32
  }
  func.func @transform_5(%arg0: i32) -> (i32, i32) {
    %c0_i32 = arith.constant 0 : i32
    %c0_i32_0 = arith.constant 0 : i32
    %c0_i32_1 = arith.constant 0 : i32
    return %c0_i32, %c0_i32_0 : i32, i32
  }
  func.func @transform_6(%arg0: i32) -> (i32, i32) {
    %c0_i32 = arith.constant 0 : i32
    %c0_i32_0 = arith.constant 0 : i32
    %c0_i32_1 = arith.constant 0 : i32
    return %c0_i32, %c0_i32_0 : i32, i32
  }
  func.func @transform_7(%arg0: i32) -> (i32, i32) {
    %c0_i32 = arith.constant 0 : i32
    %c0_i32_0 = arith.constant 0 : i32
    %c0_i32_1 = arith.constant 0 : i32
    return %c0_i32, %c0_i32_0 : i32, i32
  }
  func.func @transform_8(%arg0: i32) -> (i32, i32) {
    %c0_i32 = arith.constant 0 : i32
    %c0_i32_0 = arith.constant 0 : i32
    %c0_i32_1 = arith.constant 0 : i32
    return %c0_i32, %c0_i32_0 : i32, i32
  }
  func.func @transform_9(%arg0: i32) -> (i32, i32) {
    %c0_i32 = arith.constant 0 : i32
    %c0_i32_0 = arith.constant 0 : i32
    %c0_i32_1 = arith.constant 0 : i32
    return %c0_i32, %c0_i32_0 : i32, i32
  }
  func.func @transform_10(%arg0: i32) -> (i32, i32) {
    %c0_i32 = arith.constant 0 : i32
    %c0_i32_0 = arith.constant 0 : i32
    return %arg0, %c0_i32 : i32, i32
  }
}

module attributes {stable_mosaic.version = 11 : i64} {
  func.func @_ffn_kernel(%arg0: i32, %arg1: memref<16x32xf32, #tpu.memory_space<vmem>>, %arg2: memref<1x32xf32, #tpu.memory_space<vmem>>, %arg3: memref<1x32xf32, #tpu.memory_space<vmem>>, %arg4: memref<32x128xbf16, #tpu.memory_space<vmem>>, %arg5: memref<1x128xf32, #tpu.memory_space<vmem>>, %arg6: memref<128x32xbf16, #tpu.memory_space<vmem>>, %arg7: memref<1x32xf32, #tpu.memory_space<vmem>>, %arg8: memref<1x32xf32, #tpu.memory_space<vmem>>, %arg9: memref<1x32xf32, #tpu.memory_space<vmem>>, %arg10: memref<1x1xf32, #tpu.memory_space<smem>>, %arg11: memref<16x32xf32, #tpu.memory_space<vmem>>) attributes {dimension_semantics = [#tpu.dimension_semantics<parallel>], iteration_bounds = array<i64: 1>, scalar_prefetch = 0 : i64, scratch_operands = 0 : i64, tpu.core_type = #tpu.core_type<tc>, window_params = [{transform_indices = @transform_0, window_bounds = array<i64: 16, 32>}, {pipeline_mode = #tpu.pipeline_mode<synchronous>, transform_indices = @transform_1, window_bounds = array<i64: 1, 32>}, {pipeline_mode = #tpu.pipeline_mode<synchronous>, transform_indices = @transform_2, window_bounds = array<i64: 1, 32>}, {pipeline_mode = #tpu.pipeline_mode<synchronous>, transform_indices = @transform_3, window_bounds = array<i64: 32, 128>}, {pipeline_mode = #tpu.pipeline_mode<synchronous>, transform_indices = @transform_4, window_bounds = array<i64: 1, 128>}, {pipeline_mode = #tpu.pipeline_mode<synchronous>, transform_indices = @transform_5, window_bounds = array<i64: 128, 32>}, {pipeline_mode = #tpu.pipeline_mode<synchronous>, transform_indices = @transform_6, window_bounds = array<i64: 1, 32>}, {pipeline_mode = #tpu.pipeline_mode<synchronous>, transform_indices = @transform_7, window_bounds = array<i64: 1, 32>}, {pipeline_mode = #tpu.pipeline_mode<synchronous>, transform_indices = @transform_8, window_bounds = array<i64: 1, 32>}, {transform_indices = @transform_9, window_bounds = array<i64: 1, 1>}, {transform_indices = @transform_10, window_bounds = array<i64: 16, 32>}]} {
    %c0 = arith.constant 0 : index
    %c0_0 = arith.constant 0 : index
    %0 = vector.load %arg1[%c0, %c0_0] : memref<16x32xf32, #tpu.memory_space<vmem>>, vector<16x32xf32>
    %c0_1 = arith.constant 0 : index
    %c0_2 = arith.constant 0 : index
    %1 = vector.load %arg2[%c0_1, %c0_2] : memref<1x32xf32, #tpu.memory_space<vmem>>, vector<1x32xf32>
    %c0_3 = arith.constant 0 : index
    %c0_4 = arith.constant 0 : index
    %2 = vector.load %arg3[%c0_3, %c0_4] : memref<1x32xf32, #tpu.memory_space<vmem>>, vector<1x32xf32>
    %cst = arith.constant dense<0.000000e+00> : vector<16xf32>
    %3 = vector.multi_reduction <add>, %0, %cst [1] : vector<16x32xf32> to vector<16xf32>
    %4 = vector.shape_cast %3 : vector<16xf32> to vector<16x1xf32>
    %cst_5 = arith.constant 3.200000e+01 : f32
    %5 = vector.broadcast %cst_5 : f32 to vector<16x1xf32>
    %6 = arith.divf %4, %5 : vector<16x1xf32>
    %7 = vector.broadcast %6 : vector<16x1xf32> to vector<16x32xf32>
    %8 = arith.subf %0, %7 : vector<16x32xf32>
    %9 = arith.mulf %8, %8 : vector<16x32xf32>
    %cst_6 = arith.constant dense<0.000000e+00> : vector<16xf32>
    %10 = vector.multi_reduction <add>, %9, %cst_6 [1] : vector<16x32xf32> to vector<16xf32>
    %11 = vector.shape_cast %10 : vector<16xf32> to vector<16x1xf32>
    %cst_7 = arith.constant 3.200000e+01 : f32
    %12 = vector.broadcast %cst_7 : f32 to vector<16x1xf32>
    %13 = arith.divf %11, %12 : vector<16x1xf32>
    %14 = vector.broadcast %6 : vector<16x1xf32> to vector<16x32xf32>
    %15 = arith.subf %0, %14 : vector<16x32xf32>
    %cst_8 = arith.constant 9.99999974E-6 : f32
    %16 = vector.broadcast %cst_8 : f32 to vector<16x1xf32>
    %17 = arith.addf %13, %16 : vector<16x1xf32>
    %18 = math.rsqrt %17 : vector<16x1xf32>
    %19 = vector.broadcast %18 : vector<16x1xf32> to vector<16x32xf32>
    %20 = arith.mulf %15, %19 : vector<16x32xf32>
    %21 = vector.broadcast %1 : vector<1x32xf32> to vector<16x32xf32>
    %22 = arith.mulf %20, %21 : vector<16x32xf32>
    %23 = vector.broadcast %2 : vector<1x32xf32> to vector<16x32xf32>
    %24 = arith.addf %22, %23 : vector<16x32xf32>
    %25 = arith.truncf %24 : vector<16x32xf32> to vector<16x32xbf16>
    %c0_9 = arith.constant 0 : index
    %c0_10 = arith.constant 0 : index
    %26 = vector.load %arg4[%c0_9, %c0_10] : memref<32x128xbf16, #tpu.memory_space<vmem>>, vector<32x128xbf16>
    %cst_11 = arith.constant dense<0.000000e+00> : vector<16x128xf32>
    %27 = tpu.matmul %25, %26, %cst_11 {dimension_numbers = #tpu.dot_dimension_numbers<[1], [0], [0], [1], [0, 0, 1, 1], [], []>} : vector<16x32xbf16>, vector<32x128xbf16>, vector<16x128xf32> -> vector<16x128xf32>
    %c0_12 = arith.constant 0 : index
    %c0_13 = arith.constant 0 : index
    %28 = vector.load %arg5[%c0_12, %c0_13] : memref<1x128xf32, #tpu.memory_space<vmem>>, vector<1x128xf32>
    %29 = vector.broadcast %28 : vector<1x128xf32> to vector<16x128xf32>
    %30 = arith.addf %27, %29 : vector<16x128xf32>
    %31 = arith.negf %30 : vector<16x128xf32>
    %32 = math.exp %31 : vector<16x128xf32>
    %cst_14 = arith.constant 1.000000e+00 : f32
    %33 = vector.broadcast %cst_14 : f32 to vector<16x128xf32>
    %34 = arith.addf %33, %32 : vector<16x128xf32>
    %35 = arith.divf %33, %34 : vector<16x128xf32>
    %36 = arith.mulf %30, %35 : vector<16x128xf32>
    %37 = arith.truncf %36 : vector<16x128xf32> to vector<16x128xbf16>
    %c0_15 = arith.constant 0 : index
    %c0_16 = arith.constant 0 : index
    %38 = vector.load %arg6[%c0_15, %c0_16] : memref<128x32xbf16, #tpu.memory_space<vmem>>, vector<128x32xbf16>
    %cst_17 = arith.constant dense<0.000000e+00> : vector<16x32xf32>
    %39 = tpu.matmul %37, %38, %cst_17 {dimension_numbers = #tpu.dot_dimension_numbers<[1], [0], [0], [1], [0, 0, 1, 1], [], []>} : vector<16x128xbf16>, vector<128x32xbf16>, vector<16x32xf32> -> vector<16x32xf32>
    %c0_18 = arith.constant 0 : index
    %c0_19 = arith.constant 0 : index
    %40 = vector.load %arg7[%c0_18, %c0_19] : memref<1x32xf32, #tpu.memory_space<vmem>>, vector<1x32xf32>
    %41 = vector.broadcast %40 : vector<1x32xf32> to vector<16x32xf32>
    %42 = arith.addf %39, %41 : vector<16x32xf32>
    %c0_20 = arith.constant 0 : index
    %c0_21 = arith.constant 0 : index
    %43 = memref.load %arg10[%c0_20, %c0_21] : memref<1x1xf32, #tpu.memory_space<smem>>
    %cst_22 = arith.constant 5.000000e-01 : f32
    %44 = arith.mulf %cst_22, %43 : f32
    %45 = vector.broadcast %44 : f32 to vector<16x32xf32>
    %46 = arith.mulf %45, %42 : vector<16x32xf32>
    %47 = arith.addf %0, %46 : vector<16x32xf32>
    %c0_23 = arith.constant 0 : index
    %c0_24 = arith.constant 0 : index
    %48 = vector.load %arg8[%c0_23, %c0_24] : memref<1x32xf32, #tpu.memory_space<vmem>>, vector<1x32xf32>
    %c0_25 = arith.constant 0 : index
    %c0_26 = arith.constant 0 : index
    %49 = vector.load %arg9[%c0_25, %c0_26] : memref<1x32xf32, #tpu.memory_space<vmem>>, vector<1x32xf32>
    %cst_27 = arith.constant dense<0.000000e+00> : vector<16xf32>
    %50 = vector.multi_reduction <add>, %47, %cst_27 [1] : vector<16x32xf32> to vector<16xf32>
    %51 = vector.shape_cast %50 : vector<16xf32> to vector<16x1xf32>
    %cst_28 = arith.constant 3.200000e+01 : f32
    %52 = vector.broadcast %cst_28 : f32 to vector<16x1xf32>
    %53 = arith.divf %51, %52 : vector<16x1xf32>
    %54 = vector.broadcast %53 : vector<16x1xf32> to vector<16x32xf32>
    %55 = arith.subf %47, %54 : vector<16x32xf32>
    %56 = arith.mulf %55, %55 : vector<16x32xf32>
    %cst_29 = arith.constant dense<0.000000e+00> : vector<16xf32>
    %57 = vector.multi_reduction <add>, %56, %cst_29 [1] : vector<16x32xf32> to vector<16xf32>
    %58 = vector.shape_cast %57 : vector<16xf32> to vector<16x1xf32>
    %cst_30 = arith.constant 3.200000e+01 : f32
    %59 = vector.broadcast %cst_30 : f32 to vector<16x1xf32>
    %60 = arith.divf %58, %59 : vector<16x1xf32>
    %61 = vector.broadcast %53 : vector<16x1xf32> to vector<16x32xf32>
    %62 = arith.subf %47, %61 : vector<16x32xf32>
    %cst_31 = arith.constant 9.99999974E-6 : f32
    %63 = vector.broadcast %cst_31 : f32 to vector<16x1xf32>
    %64 = arith.addf %60, %63 : vector<16x1xf32>
    %65 = math.rsqrt %64 : vector<16x1xf32>
    %66 = vector.broadcast %65 : vector<16x1xf32> to vector<16x32xf32>
    %67 = arith.mulf %62, %66 : vector<16x32xf32>
    %68 = vector.broadcast %48 : vector<1x32xf32> to vector<16x32xf32>
    %69 = arith.mulf %67, %68 : vector<16x32xf32>
    %70 = vector.broadcast %49 : vector<1x32xf32> to vector<16x32xf32>
    %71 = arith.addf %69, %70 : vector<16x32xf32>
    %c0_32 = arith.constant 0 : index
    %c0_33 = arith.constant 0 : index
    %72 = vector.load %arg11[%c0_32, %c0_33] : memref<16x32xf32, #tpu.memory_space<vmem>>, vector<16x32xf32>
    tpu.vector_store %arg11[%c0_32, %c0_33], %71 {strides = array<i32>} : memref<16x32xf32, #tpu.memory_space<vmem>>, vector<16x32xf32>,
    return
  }
  func.func @transform_0(%arg0: i32) -> (i32, i32) {
    %c0_i32 = arith.constant 0 : i32
    %c0_i32_0 = arith.constant 0 : i32
    return %arg0, %c0_i32 : i32, i32
  }
  func.func @transform_1(%arg0: i32) -> (i32, i32) {
    %c0_i32 = arith.constant 0 : i32
    %c0_i32_0 = arith.constant 0 : i32
    %c0_i32_1 = arith.constant 0 : i32
    return %c0_i32, %c0_i32_0 : i32, i32
  }
  func.func @transform_2(%arg0: i32) -> (i32, i32) {
    %c0_i32 = arith.constant 0 : i32
    %c0_i32_0 = arith.constant 0 : i32
    %c0_i32_1 = arith.constant 0 : i32
    return %c0_i32, %c0_i32_0 : i32, i32
  }
  func.func @transform_3(%arg0: i32) -> (i32, i32) {
    %c0_i32 = arith.constant 0 : i32
    %c0_i32_0 = arith.constant 0 : i32
    %c0_i32_1 = arith.constant 0 : i32
    return %c0_i32, %c0_i32_0 : i32, i32
  }
  func.func @transform_4(%arg0: i32) -> (i32, i32) {
    %c0_i32 = arith.constant 0 : i32
    %c0_i32_0 = arith.constant 0 : i32
    %c0_i32_1 = arith.constant 0 : i32
    return %c0_i32, %c0_i32_0 : i32, i32
  }
  func.func @transform_5(%arg0: i32) -> (i32, i32) {
    %c0_i32 = arith.constant 0 : i32
    %c0_i32_0 = arith.constant 0 : i32
    %c0_i32_1 = arith.constant 0 : i32
    return %c0_i32, %c0_i32_0 : i32, i32
  }
  func.func @transform_6(%arg0: i32) -> (i32, i32) {
    %c0_i32 = arith.constant 0 : i32
    %c0_i32_0 = arith.constant 0 : i32
    %c0_i32_1 = arith.constant 0 : i32
    return %c0_i32, %c0_i32_0 : i32, i32
  }
  func.func @transform_7(%arg0: i32) -> (i32, i32) {
    %c0_i32 = arith.constant 0 : i32
    %c0_i32_0 = arith.constant 0 : i32
    %c0_i32_1 = arith.constant 0 : i32
    return %c0_i32, %c0_i32_0 : i32, i32
  }
  func.func @transform_8(%arg0: i32) -> (i32, i32) {
    %c0_i32 = arith.constant 0 : i32
    %c0_i32_0 = arith.constant 0 : i32
    %c0_i32_1 = arith.constant 0 : i32
    return %c0_i32, %c0_i32_0 : i32, i32
  }
  func.func @transform_9(%arg0: i32) -> (i32, i32) {
    %c0_i32 = arith.constant 0 : i32
    %c0_i32_0 = arith.constant 0 : i32
    %c0_i32_1 = arith.constant 0 : i32
    return %c0_i32, %c0_i32_0 : i32, i32
  }
  func.func @transform_10(%arg0: i32) -> (i32, i32) {
    %c0_i32 = arith.constant 0 : i32
    %c0_i32_0 = arith.constant 0 : i32
    return %arg0, %c0_i32 : i32, i32
  }
}

</mosaic_0001>

<llo_original>
// kernel: binary_conformer_forward.12
$region0: #{binary_conformer_forward.12}
  #allocation0 [shape = 'u32[]', space=smem, size = 0x4, offset = 0x4, fixed_abs, tag = 'smem constant byte address 0x4 - core index']
  #allocation1 [shape = 'u32[72,128]{1,0:T(1,128)}', space=vmem, size = 0x9000, scoped, tag = 'internal scratch']
  %s0 = inlined_call_operand.vmem [shape: f32[128,9], index: 0, kind: input, shape index: {}]
  %s1 = inlined_call_operand.vmem [shape: bf16[9,32], index: 1, kind: input, shape index: {}]
  %s2 = inlined_call_operand.vmem [shape: f32[1,32], index: 2, kind: input, shape index: {}]
  %s3 = inlined_call_operand.vmem [shape: f32[128,32], index: 3, kind: output, shape index: {}]
  %s4 = sld [smem:[#allocation0]]
  $region22: #{binary_conformer_forward.12} parent=0
    _
  %s6 = ssub.s32 1, %s4
  %s7 = scalar_select 0, %s6, %s4
  // Predicated region
  $region2: #{binary_conformer_forward.12} parent=0 // pred_check
    _
  $region3: #{binary_conformer_forward.12} parent=0 // pred_check_branch
    %9 = sbr.rel (0) target = $region5
  $region4: #{binary_conformer_forward.12} parent=0 // pred_region
    _
  $region5: #{binary_conformer_forward.12} parent=0 // pred_fallthru
    _
  // Predicated region
  $region6: #{binary_conformer_forward.12} parent=0 // pred_check
    _
  $region7: #{binary_conformer_forward.12} parent=0 // pred_check_branch
    %11 = sbr.rel (0) target = $region9
  $region8: #{binary_conformer_forward.12} parent=0 // pred_region
    _
  $region9: #{binary_conformer_forward.12} parent=0 // pred_fallthru
    _
  // Predicated region
  $region10: #{binary_conformer_forward.12} parent=0 // pred_check
    _
  $region11: #{binary_conformer_forward.12} parent=0 // pred_check_branch
    %13 = sbr.rel (0) target = $region13
  $region12: #{binary_conformer_forward.12} parent=0 // pred_region
    _
  $region13: #{binary_conformer_forward.12} parent=0 // pred_fallthru
    _
  %v15 = vld [vmem:[%s0] sm:$0xff]
  %v16 = vld [vmem:[%s0 + $0x8] sm:$0xff]
  %v17 = vld [vmem:[%s0 + $0x10] sm:$0xff]
  %v18 = vld [vmem:[%s0 + $0x18] sm:$0xff]
  %v19 = vld [vmem:[%s0 + $0x20] sm:$0xff]
  %v20 = vld [vmem:[%s0 + $0x28] sm:$0xff]
  %v21 = vld [vmem:[%s0 + $0x30] sm:$0xff]
  %v22 = vld [vmem:[%s0 + $0x38] sm:$0xff]
  %v23 = vld [vmem:[%s0 + $0x40] sm:$0xff]
  %v24 = vld [vmem:[%s0 + $0x48] sm:$0xff]
  %v25 = vld [vmem:[%s0 + $0x50] sm:$0xff]
  %v26 = vld [vmem:[%s0 + $0x58] sm:$0xff]
  %v27 = vld [vmem:[%s0 + $0x60] sm:$0xff]
  %v28 = vld [vmem:[%s0 + $0x68] sm:$0xff]
  %v29 = vld [vmem:[%s0 + $0x70] sm:$0xff]
  %v30 = vld [vmem:[%s0 + $0x78] sm:$0xff]
  %v31 = vpack.c.bf16 %v16, %v15
  %v32 = vpack.c.bf16 %v18, %v17
  %v33 = vpack.c.bf16 %v20, %v19
  %v34 = vpack.c.bf16 %v22, %v21
  %v35 = vpack.c.bf16 %v24, %v23
  %v36 = vpack.c.bf16 %v26, %v25
  %v37 = vpack.c.bf16 %v28, %v27
  %v38 = vpack.c.bf16 %v30, %v29
  %v39 = vld [vmem:[%s1] sm:$0xf]
  %v40 = vld [vmem:[%s1 + $0x4] sm:$0x1]
  %v41 = vld [vmem:[%s2] sm:$0x1]
  %v43 = vperm.slane %v41, 0
  %v47 = vunpack.c.l.b16 %v39
  %v48 = vunpack.c.l.b16 %v40
  %v49 = vpack.c.b16 %v48, %v47
  %vm50 = vcmask 72704
  %v52 = vsel %vm50, %v31, 0
  %v55 = vsel %vm50, %v32, 0
  %v58 = vsel %vm50, %v33, 0
  %v61 = vsel %vm50, %v34, 0
  %v64 = vsel %vm50, %v35, 0
  %v67 = vsel %vm50, %v36, 0
  %v70 = vsel %vm50, %v37, 0
  %v73 = vsel %vm50, %v38, 0
  %vm75 = vcmask 1043456
  %vm76 = vcmask 1044480
  %v77 = vsel %vm75, 4294967295, 65535
  %v78 = vsel %vm76, %v77, 0
  %v80 = vand.u32 %v49, %v78
  %82 = vmatpush.bf16.msra.mxu0 0
  %83 = vmatpush.bf16.msra.mxu0 0
  %84 = vmatpush.bf16.msra.mxu0 0
  %85 = vmatpush.bf16.msra.mxu0 0
  %86 = vmatpush.bf16.msra.mxu0 0
  %87 = vmatpush.bf16.msra.mxu0 0
  %88 = vmatpush.bf16.msra.mxu0 0
  %89 = vmatpush.bf16.msra.mxu0 %v80
  %90 = vmatmul.bf16.gmra.mxu0 %v52
  %v91 = vpop.f32.mrf.mxu0
  %v92 = vadd.f32 %v43, %v91
  %v93 = vpop.f32.mrf.mxu0
  %v94 = vadd.f32 %v43, %v93
  %95 = vmatmul.bf16.gmra.mxu0 %v55
  %v96 = vpop.f32.mrf.mxu0
  %v97 = vadd.f32 %v43, %v96
  %v98 = vpop.f32.mrf.mxu0
  %v99 = vadd.f32 %v43, %v98
  %100 = vmatmul.bf16.gmra.mxu0 %v58
  %v101 = vpop.f32.mrf.mxu0
  %v102 = vadd.f32 %v43, %v101
  %v103 = vpop.f32.mrf.mxu0
  %v104 = vadd.f32 %v43, %v103
  %105 = vmatmul.bf16.gmra.mxu0 %v61
  %v106 = vpop.f32.mrf.mxu0
  %v107 = vadd.f32 %v43, %v106
  %v108 = vpop.f32.mrf.mxu0
  %v109 = vadd.f32 %v43, %v108
  %110 = vmatmul.bf16.gmra.mxu0 %v64
  %v111 = vpop.f32.mrf.mxu0
  %v112 = vadd.f32 %v43, %v111
  %v113 = vpop.f32.mrf.mxu0
  %v114 = vadd.f32 %v43, %v113
  %115 = vmatmul.bf16.gmra.mxu0 %v67
  %v116 = vpop.f32.mrf.mxu0
  %v117 = vadd.f32 %v43, %v116
  %v118 = vpop.f32.mrf.mxu0
  %v119 = vadd.f32 %v43, %v118
  %120 = vmatmul.bf16.gmra.mxu0 %v70
  %v121 = vpop.f32.mrf.mxu0
  %v122 = vadd.f32 %v43, %v121
  %v123 = vpop.f32.mrf.mxu0
  %v124 = vadd.f32 %v43, %v123
  %125 = vmatmul.bf16.gmra.mxu0 %v73
  %v126 = vpop.f32.mrf.mxu0
  %v127 = vadd.f32 %v43, %v126
  %v128 = vpop.f32.mrf.mxu0
  %v129 = vadd.f32 %v43, %v128
  %130 = vdwg.mxu0
  %v131 = vmax.f32 %v92, 0.0
  %v132 = vmax.f32 %v94, 0.0
  %v133 = vmax.f32 %v97, 0.0
  %v134 = vmax.f32 %v99, 0.0
  %v135 = vmax.f32 %v102, 0.0
  %v136 = vmax.f32 %v104, 0.0
  %v137 = vmax.f32 %v107, 0.0
  %v138 = vmax.f32 %v109, 0.0
  %v139 = vmax.f32 %v112, 0.0
  %v140 = vmax.f32 %v114, 0.0
  %v141 = vmax.f32 %v117, 0.0
  %v142 = vmax.f32 %v119, 0.0
  %v143 = vmax.f32 %v122, 0.0
  %v144 = vmax.f32 %v124, 0.0
  %v145 = vmax.f32 %v127, 0.0
  %v146 = vmax.f32 %v129, 0.0
  %vm147 = vcmask 261120
  %148 = vst.msk [vmem:[%s3] sm:$0xff] %vm147, %v131
  %149 = vst.msk [vmem:[%s3 + $0x8] sm:$0xff] %vm147, %v132
  %150 = vst.msk [vmem:[%s3 + $0x10] sm:$0xff] %vm147, %v133
  %151 = vst.msk [vmem:[%s3 + $0x18] sm:$0xff] %vm147, %v134
  %152 = vst.msk [vmem:[%s3 + $0x20] sm:$0xff] %vm147, %v135
  %153 = vst.msk [vmem:[%s3 + $0x28] sm:$0xff] %vm147, %v136
  %154 = vst.msk [vmem:[%s3 + $0x30] sm:$0xff] %vm147, %v137
  %155 = vst.msk [vmem:[%s3 + $0x38] sm:$0xff] %vm147, %v138
  %156 = vst.msk [vmem:[%s3 + $0x40] sm:$0xff] %vm147, %v139
  %157 = vst.msk [vmem:[%s3 + $0x48] sm:$0xff] %vm147, %v140
  %158 = vst.msk [vmem:[%s3 + $0x50] sm:$0xff] %vm147, %v141
  %159 = vst.msk [vmem:[%s3 + $0x58] sm:$0xff] %vm147, %v142
  %160 = vst.msk [vmem:[%s3 + $0x60] sm:$0xff] %vm147, %v143
  %161 = vst.msk [vmem:[%s3 + $0x68] sm:$0xff] %vm147, %v144
  %162 = vst.msk [vmem:[%s3 + $0x70] sm:$0xff] %vm147, %v145
  %163 = vst.msk [vmem:[%s3 + $0x78] sm:$0xff] %vm147, %v146
  // Predicated region
  $region14: #{binary_conformer_forward.12} parent=0 // pred_check
    _
  $region15: #{binary_conformer_forward.12} parent=0 // pred_check_branch
    %165 = sbr.rel (0) target = $region17
  $region16: #{binary_conformer_forward.12} parent=0 // pred_region
    _
  $region17: #{binary_conformer_forward.12} parent=0 // pred_fallthru
    _
  // Predicated region
  $region18: #{binary_conformer_forward.12} parent=0 // pred_check
    _
  $region19: #{binary_conformer_forward.12} parent=0 // pred_check_branch
    %167 = sbr.rel (0) target = $region21
  $region20: #{binary_conformer_forward.12} parent=0 // pred_region
    _
  $region21: #{binary_conformer_forward.12} parent=0 // pred_fallthru
    _

// kernel: binary_conformer_forward.13
$region0: #{binary_conformer_forward.13}
  #allocation0 [shape = 'u32[]', space=smem, size = 0x4, offset = 0x4, fixed_abs, tag = 'smem constant byte address 0x4 - core index']
  #allocation1 [shape = 'u32[72,128]{1,0:T(1,128)}', space=vmem, size = 0x9000, scoped, tag = 'internal scratch']
  %s0 = inlined_call_operand.vmem [shape: f32[16,256], index: 0, kind: input, shape index: {}]
  %s1 = inlined_call_operand.vmem [shape: bf16[256,32], index: 1, kind: input, shape index: {}]
  %s2 = inlined_call_operand.vmem [shape: f32[1,32], index: 2, kind: input, shape index: {}]
  %s3 = inlined_call_operand.vmem [shape: f32[16,32], index: 3, kind: output, shape index: {}]
  %s4 = sld [smem:[#allocation0]]
  $region22: #{binary_conformer_forward.13} parent=0
    _
  %s6 = ssub.s32 1, %s4
  %s7 = scalar_select 0, %s6, %s4
  // Predicated region
  $region2: #{binary_conformer_forward.13} parent=0 // pred_check
    _
  $region3: #{binary_conformer_forward.13} parent=0 // pred_check_branch
    %9 = sbr.rel (0) target = $region5
  $region4: #{binary_conformer_forward.13} parent=0 // pred_region
    _
  $region5: #{binary_conformer_forward.13} parent=0 // pred_fallthru
    _
  // Predicated region
  $region6: #{binary_conformer_forward.13} parent=0 // pred_check
    _
  $region7: #{binary_conformer_forward.13} parent=0 // pred_check_branch
    %11 = sbr.rel (0) target = $region9
  $region8: #{binary_conformer_forward.13} parent=0 // pred_region
    _
  $region9: #{binary_conformer_forward.13} parent=0 // pred_fallthru
    _
  // Predicated region
  $region10: #{binary_conformer_forward.13} parent=0 // pred_check
    _
  $region11: #{binary_conformer_forward.13} parent=0 // pred_check_branch
    %13 = sbr.rel (0) target = $region13
  $region12: #{binary_conformer_forward.13} parent=0 // pred_region
    _
  $region13: #{binary_conformer_forward.13} parent=0 // pred_fallthru
    _
  %v14 = vld [vmem:[%s0] sm:$0xff]
  %v15 = vld [vmem:[%s0 + $0x8] sm:$0xff]
  %v16 = vld [vmem:[%s0 + $0x10] sm:$0xff]
  %v17 = vld [vmem:[%s0 + $0x18] sm:$0xff]
  %v18 = vpack.c.bf16 %v16, %v14
  %v19 = vpack.c.bf16 %v17, %v15
  %v20 = vld [vmem:[%s1] sm:$0xf]
  %v21 = vld [vmem:[%s1 + $0x4] sm:$0xf]
  %v22 = vld [vmem:[%s1 + $0x8] sm:$0xf]
  %v23 = vld [vmem:[%s1 + $0xc] sm:$0xf]
  %v24 = vld [vmem:[%s1 + $0x10] sm:$0xf]
  %v25 = vld [vmem:[%s1 + $0x14] sm:$0xf]
  %v26 = vld [vmem:[%s1 + $0x18] sm:$0xf]
  %v27 = vld [vmem:[%s1 + $0x1c] sm:$0xf]
  %v28 = vld [vmem:[%s1 + $0x20] sm:$0xf]
  %v29 = vld [vmem:[%s1 + $0x24] sm:$0xf]
  %v30 = vld [vmem:[%s1 + $0x28] sm:$0xf]
  %v31 = vld [vmem:[%s1 + $0x2c] sm:$0xf]
  %v32 = vld [vmem:[%s1 + $0x30] sm:$0xf]
  %v33 = vld [vmem:[%s1 + $0x34] sm:$0xf]
  %v34 = vld [vmem:[%s1 + $0x38] sm:$0xf]
  %v35 = vld [vmem:[%s1 + $0x3c] sm:$0xf]
  %v36 = vld [vmem:[%s1 + $0x40] sm:$0xf]
  %v37 = vld [vmem:[%s1 + $0x44] sm:$0xf]
  %v38 = vld [vmem:[%s1 + $0x48] sm:$0xf]
  %v39 = vld [vmem:[%s1 + $0x4c] sm:$0xf]
  %v40 = vld [vmem:[%s1 + $0x50] sm:$0xf]
  %v41 = vld [vmem:[%s1 + $0x54] sm:$0xf]
  %v42 = vld [vmem:[%s1 + $0x58] sm:$0xf]
  %v43 = vld [vmem:[%s1 + $0x5c] sm:$0xf]
  %v44 = vld [vmem:[%s1 + $0x60] sm:$0xf]
  %v45 = vld [vmem:[%s1 + $0x64] sm:$0xf]
  %v46 = vld [vmem:[%s1 + $0x68] sm:$0xf]
  %v47 = vld [vmem:[%s1 + $0x6c] sm:$0xf]
  %v48 = vld [vmem:[%s1 + $0x70] sm:$0xf]
  %v49 = vld [vmem:[%s1 + $0x74] sm:$0xf]
  %v50 = vld [vmem:[%s1 + $0x78] sm:$0xf]
  %v51 = vld [vmem:[%s1 + $0x7c] sm:$0xf]
  %v52 = vld [vmem:[%s2] sm:$0x1]
  %v54 = vperm.slane %v52, 0
  %v88 = vunpack.c.l.b16 %v20
  %v89 = vunpack.c.l.b16 %v21
  %v90 = vunpack.c.l.b16 %v22
  %v91 = vunpack.c.l.b16 %v23
  %v92 = vunpack.c.l.b16 %v24
  %v93 = vunpack.c.l.b16 %v25
  %v94 = vunpack.c.l.b16 %v26
  %v95 = vunpack.c.l.b16 %v27
  %v96 = vunpack.c.l.b16 %v28
  %v97 = vunpack.c.l.b16 %v29
  %v98 = vunpack.c.l.b16 %v30
  %v99 = vunpack.c.l.b16 %v31
  %v100 = vunpack.c.l.b16 %v32
  %v101 = vunpack.c.l.b16 %v33
  %v102 = vunpack.c.l.b16 %v34
  %v103 = vunpack.c.l.b16 %v35
  %v104 = vunpack.c.l.b16 %v36
  %v105 = vunpack.c.l.b16 %v37
  %v106 = vunpack.c.l.b16 %v38
  %v107 = vunpack.c.l.b16 %v39
  %v108 = vunpack.c.l.b16 %v40
  %v109 = vunpack.c.l.b16 %v41
  %v110 = vunpack.c.l.b16 %v42
  %v111 = vunpack.c.l.b16 %v43
  %v112 = vunpack.c.l.b16 %v44
  %v113 = vunpack.c.l.b16 %v45
  %v114 = vunpack.c.l.b16 %v46
  %v115 = vunpack.c.l.b16 %v47
  %v116 = vunpack.c.l.b16 %v48
  %v117 = vunpack.c.l.b16 %v49
  %v118 = vunpack.c.l.b16 %v50
  %v119 = vunpack.c.l.b16 %v51
  %v120 = vpack.c.b16 %v89, %v88
  %v121 = vpack.c.b16 %v91, %v90
  %v122 = vpack.c.b16 %v93, %v92
  %v123 = vpack.c.b16 %v95, %v94
  %v124 = vpack.c.b16 %v97, %v96
  %v125 = vpack.c.b16 %v99, %v98
  %v126 = vpack.c.b16 %v101, %v100
  %v127 = vpack.c.b16 %v103, %v102
  %v128 = vpack.c.b16 %v105, %v104
  %v129 = vpack.c.b16 %v107, %v106
  %v130 = vpack.c.b16 %v109, %v108
  %v131 = vpack.c.b16 %v111, %v110
  %v132 = vpack.c.b16 %v113, %v112
  %v133 = vpack.c.b16 %v115, %v114
  %v134 = vpack.c.b16 %v117, %v116
  %v135 = vpack.c.b16 %v119, %v118
  %152 = vmatpush.bf16.msra.mxu0 %v127
  %153 = vmatpush.bf16.msra.mxu0 %v126
  %154 = vmatpush.bf16.msra.mxu0 %v125
  %155 = vmatpush.bf16.msra.mxu0 %v124
  %156 = vmatpush.bf16.msra.mxu0 %v123
  %157 = vmatpush.bf16.msra.mxu0 %v122
  %158 = vmatpush.bf16.msra.mxu0 %v121
  %159 = vmatpush.bf16.msra.mxu0 %v120
  %160 = vmatmul.bf16.gmra.mxu0 %v18
  %v161 = vpop.f32.mrf.mxu0
  %v162 = vadd.f32 %v54, %v161
  %v163 = vpop.f32.mrf.mxu0
  %v164 = vadd.f32 %v54, %v163
  %165 = vdwg.mxu0
  %166 = vmatpush.bf16.msra.mxu0 %v135
  %167 = vmatpush.bf16.msra.mxu0 %v134
  %168 = vmatpush.bf16.msra.mxu0 %v133
  %169 = vmatpush.bf16.msra.mxu0 %v132
  %170 = vmatpush.bf16.msra.mxu0 %v131
  %171 = vmatpush.bf16.msra.mxu0 %v130
  %172 = vmatpush.bf16.msra.mxu0 %v129
  %173 = vmatpush.bf16.msra.mxu0 %v128
  %174 = vmatmul.bf16.gmra.mxu0 %v19
  %v175 = vpop.f32.mrf.mxu0
  %v176 = vadd.f32 %v162, %v175
  %v177 = vpop.f32.mrf.mxu0
  %v178 = vadd.f32 %v164, %v177
  %179 = vdwg.mxu0
  %vm180 = vcmask 261120
  %181 = vst.msk [vmem:[%s3] sm:$0xff] %vm180, %v176
  %182 = vst.msk [vmem:[%s3 + $0x8] sm:$0xff] %vm180, %v178
  // Predicated region
  $region14: #{binary_conformer_forward.13} parent=0 // pred_check
    _
  $region15: #{binary_conformer_forward.13} parent=0 // pred_check_branch
    %184 = sbr.rel (0) target = $region17
  $region16: #{binary_conformer_forward.13} parent=0 // pred_region
    _
  $region17: #{binary_conformer_forward.13} parent=0 // pred_fallthru
    _
  // Predicated region
  $region18: #{binary_conformer_forward.13} parent=0 // pred_check
    _
  $region19: #{binary_conformer_forward.13} parent=0 // pred_check_branch
    %186 = sbr.rel (0) target = $region21
  $region20: #{binary_conformer_forward.13} parent=0 // pred_region
    _
  $region21: #{binary_conformer_forward.13} parent=0 // pred_fallthru
    _

// kernel: binary_conformer_forward.14
$region0: #{binary_conformer_forward.14}
  #allocation0 [shape = 'u32[]', space=smem, size = 0x4, offset = 0x4, fixed_abs, tag = 'smem constant byte address 0x4 - core index']
  #allocation1 [shape = 'u32[72,128]{1,0:T(1,128)}', space=vmem, size = 0x9000, scoped, tag = 'internal scratch']
  #allocation2 [shape = 'f32[1,1]{1,0:T(1,128)S(6)}', space=smem, size = 0x200, scoped, tag = 'scoped memory for binary_conformer_forward.14']
  %s0 = inlined_call_operand.vmem [shape: f32[16,32], index: 0, kind: input, shape index: {}]
  %s1 = inlined_call_operand.vmem [shape: f32[1,32], index: 1, kind: input, shape index: {}, may-alias: {1,7}]
  %s2 = inlined_call_operand.vmem [shape: f32[1,32], index: 2, kind: input, shape index: {}, may-alias: {2,8}]
  %s3 = inlined_call_operand.vmem [shape: bf16[32,128], index: 3, kind: input, shape index: {}]
  %s4 = inlined_call_operand.vmem [shape: f32[1,128], index: 4, kind: input, shape index: {}]
  %s5 = inlined_call_operand.vmem [shape: bf16[128,32], index: 5, kind: input, shape index: {}]
  %s6 = inlined_call_operand.vmem [shape: f32[1,32], index: 6, kind: input, shape index: {}]
  %s7 = inlined_call_operand.vmem [shape: f32[1,32], index: 7, kind: input, shape index: {}, may-alias: {1,7}]
  %s8 = inlined_call_operand.vmem [shape: f32[1,32], index: 8, kind: input, shape index: {}, may-alias: {2,8}]
  %s9 = inlined_call_operand.<no memory space> [shape: f32[1,1], index: 9, kind: input, shape index: {}]
  %s10 = inlined_call_operand.vmem [shape: f32[16,32], index: 10, kind: output, shape index: {}]
  %s11 = sld [smem:[#allocation0]]
  $region50: #{binary_conformer_forward.14} parent=0
    _
  %s13 = ssub.s32 1, %s11
  %s14 = scalar_select 0, %s13, %s11
  %15 = sst [smem:[#allocation2]] %s9
  // Predicated region
  $region2: #{binary_conformer_forward.14} parent=0 // pred_check
    _
  $region3: #{binary_conformer_forward.14} parent=0 // pred_check_branch
    %17 = sbr.rel (0) target = $region5
  $region4: #{binary_conformer_forward.14} parent=0 // pred_region
    _
  $region5: #{binary_conformer_forward.14} parent=0 // pred_fallthru
    _
  // Predicated region
  $region6: #{binary_conformer_forward.14} parent=0 // pred_check
    _
  $region7: #{binary_conformer_forward.14} parent=0 // pred_check_branch
    %19 = sbr.rel (0) target = $region9
  $region8: #{binary_conformer_forward.14} parent=0 // pred_region
    _
  $region9: #{binary_conformer_forward.14} parent=0 // pred_fallthru
    _
  // Predicated region
  $region10: #{binary_conformer_forward.14} parent=0 // pred_check
    _
  $region11: #{binary_conformer_forward.14} parent=0 // pred_check_branch
    %21 = sbr.rel (0) target = $region13
  $region12: #{binary_conformer_forward.14} parent=0 // pred_region
    _
  $region13: #{binary_conformer_forward.14} parent=0 // pred_fallthru
    _
  // Predicated region
  $region14: #{binary_conformer_forward.14} parent=0 // pred_check
    _
  $region15: #{binary_conformer_forward.14} parent=0 // pred_check_branch
    %23 = sbr.rel (0) target = $region17
  $region16: #{binary_conformer_forward.14} parent=0 // pred_region
    _
  $region17: #{binary_conformer_forward.14} parent=0 // pred_fallthru
    _
  // Predicated region
  $region18: #{binary_conformer_forward.14} parent=0 // pred_check
    _
  $region19: #{binary_conformer_forward.14} parent=0 // pred_check_branch
    %25 = sbr.rel (0) target = $region21
  $region20: #{binary_conformer_forward.14} parent=0 // pred_region
    _
  $region21: #{binary_conformer_forward.14} parent=0 // pred_fallthru
    _
  // Predicated region
  $region22: #{binary_conformer_forward.14} parent=0 // pred_check
    _
  $region23: #{binary_conformer_forward.14} parent=0 // pred_check_branch
    %27 = sbr.rel (0) target = $region25
  $region24: #{binary_conformer_forward.14} parent=0 // pred_region
    _
  $region25: #{binary_conformer_forward.14} parent=0 // pred_fallthru
    _
  // Predicated region
  $region26: #{binary_conformer_forward.14} parent=0 // pred_check
    _
  $region27: #{binary_conformer_forward.14} parent=0 // pred_check_branch
    %29 = sbr.rel (0) target = $region29
  $region28: #{binary_conformer_forward.14} parent=0 // pred_region
    _
  $region29: #{binary_conformer_forward.14} parent=0 // pred_fallthru
    _
  // Predicated region
  $region30: #{binary_conformer_forward.14} parent=0 // pred_check
    _
  $region31: #{binary_conformer_forward.14} parent=0 // pred_check_branch
    %31 = sbr.rel (0) target = $region33
  $region32: #{binary_conformer_forward.14} parent=0 // pred_region
    _
  $region33: #{binary_conformer_forward.14} parent=0 // pred_fallthru
    _
  // Predicated region
  $region34: #{binary_conformer_forward.14} parent=0 // pred_check
    _
  $region35: #{binary_conformer_forward.14} parent=0 // pred_check_branch
    %33 = sbr.rel (0) target = $region37
  $region36: #{binary_conformer_forward.14} parent=0 // pred_region
    _
  $region37: #{binary_conformer_forward.14} parent=0 // pred_fallthru
    _
  // Predicated region
  $region38: #{binary_conformer_forward.14} parent=0 // pred_check
    _
  $region39: #{binary_conformer_forward.14} parent=0 // pred_check_branch
    %35 = sbr.rel (0) target = $region41
  $region40: #{binary_conformer_forward.14} parent=0 // pred_region
    _
  $region41: #{binary_conformer_forward.14} parent=0 // pred_fallthru
    _
  %v37 = vld [vmem:[%s0] sm:$0xff]
  %v38 = vld [vmem:[%s0 + $0x8] sm:$0xff]
  %v39 = vld [vmem:[%s1] sm:$0x1]
  %v40 = vld [vmem:[%s2] sm:$0x1]
  %vm41 = vcmask 261120
  %v42 = vsel %vm41, %v37, 0.0
  %43 = vadd.xlane.f32.xlu0 %v42
  %v44 = vpop.xlane.xlu0 %43
  %v45 = vsel %vm41, %v38, 0.0
  %46 = vadd.xlane.f32.xlu0 %v45
  %v47 = vpop.xlane.xlu0 %46
  %v48 = vrcp.pop 32.0
  %v49 = vmul.f32 32.0, %v48
  %v50 = vsub.f32 1.0, %v49
  %v51 = vmul.f32 %v48, %v50
  %v52 = vadd.f32 %v48, %v51
  %vm53 = vweird.f32 %v48
  %v54 = vsel %vm53, %v48, %v52
  %v55 = vmul.f32 %v44, %v54
  %v56 = vmul.f32 %v47, %v54
  %v57 = vsub.f32 %v37, %v55
  %v58 = vsub.f32 %v38, %v56
  %v59 = vmul.f32 %v57, %v57
  %v60 = vmul.f32 %v58, %v58
  %v61 = vsel %vm41, %v59, 0.0
  %62 = vadd.xlane.f32.xlu0 %v61
  %v63 = vpop.xlane.xlu0 %62
  %v64 = vsel %vm41, %v60, 0.0
  %65 = vadd.xlane.f32.xlu0 %v64
  %v66 = vpop.xlane.xlu0 %65
  %v67 = vmul.f32 %v63, %v54
  %v68 = vmul.f32 %v66, %v54
  %v69 = vadd.f32 %v67, 1e-05
  %v70 = vadd.f32 %v68, 1e-05
  %v71 = vrsqrt.pop %v69
  %v72 = vmul.f32 %v71, %v69
  %v73 = vmul.f32 %v72, %v71
  %v74 = vmul.f32 0.5, %v73
  %v75 = vsub.f32 1.5, %v74
  %v76 = vmul.f32 %v71, %v75
  %vm77 = vweird.f32 %v69
  %vm78 = vweird.f32 %v71
  %vm79 = vmor %vm77, %vm78
  %v80 = vsel %vm79, %v71, %v76
  %v81 = vrsqrt.pop %v70
  %v82 = vmul.f32 %v81, %v70
  %v83 = vmul.f32 %v82, %v81
  %v84 = vmul.f32 0.5, %v83
  %v85 = vsub.f32 1.5, %v84
  %v86 = vmul.f32 %v81, %v85
  %vm87 = vweird.f32 %v70
  %vm88 = vweird.f32 %v81
  %vm89 = vmor %vm87, %vm88
  %v90 = vsel %vm89, %v81, %v86
  %v91 = vmul.f32 %v57, %v80
  %v92 = vmul.f32 %v58, %v90
  %v94 = vperm.slane %v39, 0
  %v96 = vmul.f32 %v91, %v94
  %v97 = vmul.f32 %v92, %v94
  %v99 = vperm.slane %v40, 0
  %v101 = vadd.f32 %v96, %v99
  %v102 = vadd.f32 %v97, %v99
  %v103 = vpack.c.bf16 %v102, %v101
  %v104 = vld [vmem:[%s3] sm:$0xf]
  %v105 = vld [vmem:[%s3 + $0x4] sm:$0xf]
  %v106 = vld [vmem:[%s3 + $0x8] sm:$0xf]
  %v107 = vld [vmem:[%s3 + $0xc] sm:$0xf]
  %v108 = vld [vmem:[%s4] sm:$0x1]
  %v110 = vperm.slane %v108, 0
  %v116 = vunpack.c.l.b16 %v104
  %v117 = vunpack.c.l.b16 %v105
  %v118 = vunpack.c.l.b16 %v106
  %v119 = vunpack.c.l.b16 %v107
  %v120 = vpack.c.b16 %v117, %v116
  %v121 = vpack.c.b16 %v119, %v118
  %v125 = vsel %vm41, %v103, 0
  %127 = vmatpush.bf16.msra.mxu0 0
  %128 = vmatpush.bf16.msra.mxu0 0
  %129 = vmatpush.bf16.msra.mxu0 0
  %130 = vmatpush.bf16.msra.mxu0 0
  %131 = vmatpush.bf16.msra.mxu0 0
  %132 = vmatpush.bf16.msra.mxu0 0
  %133 = vmatpush.bf16.msra.mxu0 %v121
  %134 = vmatpush.bf16.msra.mxu0 %v120
  %135 = vmatmul.bf16.gmra.mxu0 %v125
  %v136 = vpop.f32.mrf.mxu0
  %v137 = vadd.f32 %v110, %v136
  %v138 = vpop.f32.mrf.mxu0
  %v139 = vadd.f32 %v110, %v138
  %140 = vdwg.mxu0
  %v141 = vxor.u32 %v137, 2147483648
  %v142 = vxor.u32 %v139, 2147483648
  %v143 = vmul.f32 %v141, 1.442695
  %v144 = vpow.pop %v143
  %v145 = vmul.f32 %v142, 1.442695
  %v146 = vpow.pop %v145
  %v147 = vadd.f32 %v144, 1.0
  %v148 = vadd.f32 %v146, 1.0
  %v149 = vrcp.pop %v147
  %v150 = vmul.f32 %v147, %v149
  %v151 = vsub.f32 1.0, %v150
  %v152 = vmul.f32 %v149, %v151
  %v153 = vadd.f32 %v149, %v152
  %vm154 = vweird.f32 %v147
  %vm155 = vweird.f32 %v149
  %vm156 = vmor %vm154, %vm155
  %v157 = vsel %vm156, %v149, %v153
  %v158 = vand.u32 2147483647, %v147
  %vm159 = vcmp.eq.f32.partialorder %v158, 8.507059e+37
  %v160 = vand.u32 %v147, 2147483648
  %v161 = vor.u32 1.1754944e-38, %v160
  %v162 = vsel %vm159, %v161, %v157
  %v163 = vmul.f32 1.0, %v162
  %v164 = vrcp.pop %v148
  %v165 = vmul.f32 %v148, %v164
  %v166 = vsub.f32 1.0, %v165
  %v167 = vmul.f32 %v164, %v166
  %v168 = vadd.f32 %v164, %v167
  %vm169 = vweird.f32 %v148
  %vm170 = vweird.f32 %v164
  %vm171 = vmor %vm169, %vm170
  %v172 = vsel %vm171, %v164, %v168
  %v173 = vand.u32 2147483647, %v148
  %vm174 = vcmp.eq.f32.partialorder %v173, 8.507059e+37
  %v175 = vand.u32 %v148, 2147483648
  %v176 = vor.u32 1.1754944e-38, %v175
  %v177 = vsel %vm174, %v176, %v172
  %v178 = vmul.f32 1.0, %v177
  %v179 = vmul.f32 %v137, %v163
  %v180 = vmul.f32 %v139, %v178
  %v181 = vpack.c.bf16 %v180, %v179
  %v182 = vld [vmem:[%s5] sm:$0xf]
  %v183 = vld [vmem:[%s5 + $0x4] sm:$0xf]
  %v184 = vld [vmem:[%s5 + $0x8] sm:$0xf]
  %v185 = vld [vmem:[%s5 + $0xc] sm:$0xf]
  %v186 = vld [vmem:[%s5 + $0x10] sm:$0xf]
  %v187 = vld [vmem:[%s5 + $0x14] sm:$0xf]
  %v188 = vld [vmem:[%s5 + $0x18] sm:$0xf]
  %v189 = vld [vmem:[%s5 + $0x1c] sm:$0xf]
  %v190 = vld [vmem:[%s5 + $0x20] sm:$0xf]
  %v191 = vld [vmem:[%s5 + $0x24] sm:$0xf]
  %v192 = vld [vmem:[%s5 + $0x28] sm:$0xf]
  %v193 = vld [vmem:[%s5 + $0x2c] sm:$0xf]
  %v194 = vld [vmem:[%s5 + $0x30] sm:$0xf]
  %v195 = vld [vmem:[%s5 + $0x34] sm:$0xf]
  %v196 = vld [vmem:[%s5 + $0x38] sm:$0xf]
  %v197 = vld [vmem:[%s5 + $0x3c] sm:$0xf]
  %v198 = vld [vmem:[%s6] sm:$0x1]
  %v200 = vperm.slane %v198, 0
  %v218 = vunpack.c.l.b16 %v182
  %v219 = vunpack.c.l.b16 %v183
  %v220 = vunpack.c.l.b16 %v184
  %v221 = vunpack.c.l.b16 %v185
  %v222 = vunpack.c.l.b16 %v186
  %v223 = vunpack.c.l.b16 %v187
  %v224 = vunpack.c.l.b16 %v188
  %v225 = vunpack.c.l.b16 %v189
  %v226 = vunpack.c.l.b16 %v190
  %v227 = vunpack.c.l.b16 %v191
  %v228 = vunpack.c.l.b16 %v192
  %v229 = vunpack.c.l.b16 %v193
  %v230 = vunpack.c.l.b16 %v194
  %v231 = vunpack.c.l.b16 %v195
  %v232 = vunpack.c.l.b16 %v196
  %v233 = vunpack.c.l.b16 %v197
  %v234 = vpack.c.b16 %v219, %v218
  %v235 = vpack.c.b16 %v221, %v220
  %v236 = vpack.c.b16 %v223, %v222
  %v237 = vpack.c.b16 %v225, %v224
  %v238 = vpack.c.b16 %v227, %v226
  %v239 = vpack.c.b16 %v229, %v228
  %v240 = vpack.c.b16 %v231, %v230
  %v241 = vpack.c.b16 %v233, %v232
  %250 = vmatpush.bf16.msra.mxu0 %v241
  %251 = vmatpush.bf16.msra.mxu0 %v240
  %252 = vmatpush.bf16.msra.mxu0 %v239
  %253 = vmatpush.bf16.msra.mxu0 %v238
  %254 = vmatpush.bf16.msra.mxu0 %v237
  %255 = vmatpush.bf16.msra.mxu0 %v236
  %256 = vmatpush.bf16.msra.mxu0 %v235
  %257 = vmatpush.bf16.msra.mxu0 %v234
  %258 = vmatmul.bf16.gmra.mxu0 %v181
  %v259 = vpop.f32.mrf.mxu0
  %v260 = vadd.f32 %v200, %v259
  %v261 = vpop.f32.mrf.mxu0
  %v262 = vadd.f32 %v200, %v261
  %263 = vdwg.mxu0
  %s264 = sld [smem:[#allocation2]]
  %s265 = smul.f32 %s264, 0.5
  %v266 = vstv %s265
  %v267 = vmul.f32 %v266, %v260
  %v268 = vmul.f32 %v266, %v262
  %v269 = vadd.f32 %v37, %v267
  %v270 = vadd.f32 %v38, %v268
  %271 = vst.msk [vmem:[%s10] sm:$0xff] %vm41, %v269
  %272 = vst.msk [vmem:[%s10 + $0x8] sm:$0xff] %vm41, %v270
  // Predicated region
  $region42: #{binary_conformer_forward.14} parent=0 // pred_check
    _
  $region43: #{binary_conformer_forward.14} parent=0 // pred_check_branch
    %274 = sbr.rel (0) target = $region45
  $region44: #{binary_conformer_forward.14} parent=0 // pred_region
    _
  $region45: #{binary_conformer_forward.14} parent=0 // pred_fallthru
    _
  // Predicated region
  $region46: #{binary_conformer_forward.14} parent=0 // pred_check
    _
  $region47: #{binary_conformer_forward.14} parent=0 // pred_check_branch
    %276 = sbr.rel (0) target = $region49
  $region48: #{binary_conformer_forward.14} parent=0 // pred_region
    _
  $region49: #{binary_conformer_forward.14} parent=0 // pred_fallthru
    _

// kernel: binary_conformer_forward.15
$region0: #{binary_conformer_forward.15}
  #allocation0 [shape = 'u32[]', space=smem, size = 0x4, offset = 0x4, fixed_abs, tag = 'smem constant byte address 0x4 - core index']
  #allocation1 [shape = 'u32[72,128]{1,0:T(1,128)}', space=vmem, size = 0x9000, scoped, tag = 'internal scratch']
  %s0 = inlined_call_operand.vmem [shape: f32[8,32], index: 0, kind: input, shape index: {}]
  %s1 = inlined_call_operand.vmem [shape: bf16[32,32], index: 1, kind: input, shape index: {}]
  %s2 = inlined_call_operand.vmem [shape: f32[8,32], index: 2, kind: output, shape index: {}]
  %s3 = sld [smem:[#allocation0]]
  $region18: #{binary_conformer_forward.15} parent=0
    _
  %s5 = ssub.s32 1, %s3
  %s6 = scalar_select 0, %s5, %s3
  // Predicated region
  $region2: #{binary_conformer_forward.15} parent=0 // pred_check
    _
  $region3: #{binary_conformer_forward.15} parent=0 // pred_check_branch
    %8 = sbr.rel (0) target = $region5
  $region4: #{binary_conformer_forward.15} parent=0 // pred_region
    _
  $region5: #{binary_conformer_forward.15} parent=0 // pred_fallthru
    _
  // Predicated region
  $region6: #{binary_conformer_forward.15} parent=0 // pred_check
    _
  $region7: #{binary_conformer_forward.15} parent=0 // pred_check_branch
    %10 = sbr.rel (0) target = $region9
  $region8: #{binary_conformer_forward.15} parent=0 // pred_region
    _
  $region9: #{binary_conformer_forward.15} parent=0 // pred_fallthru
    _
  %v12 = vld [vmem:[%s0] sm:$0xff]
  %v13 = vpack.c.bf16 %v12, %v12
  %v14 = vld [vmem:[%s1] sm:$0xf]
  %v15 = vld [vmem:[%s1 + $0x4] sm:$0xf]
  %v16 = vld [vmem:[%s1 + $0x8] sm:$0xf]
  %v17 = vld [vmem:[%s1 + $0xc] sm:$0xf]
  %v22 = vunpack.c.l.b16 %v14
  %v23 = vunpack.c.l.b16 %v15
  %v24 = vunpack.c.l.b16 %v16
  %v25 = vunpack.c.l.b16 %v17
  %v26 = vpack.c.b16 %v23, %v22
  %v27 = vpack.c.b16 %v25, %v24
  %vm30 = vcmask 261120
  %v32 = vsel %vm30, %v13, 0
  %34 = vmatpush.bf16.msra.mxu0 0
  %35 = vmatpush.bf16.msra.mxu0 0
  %36 = vmatpush.bf16.msra.mxu0 0
  %37 = vmatpush.bf16.msra.mxu0 0
  %38 = vmatpush.bf16.msra.mxu0 0
  %39 = vmatpush.bf16.msra.mxu0 0
  %40 = vmatpush.bf16.msra.mxu0 %v27
  %41 = vmatpush.bf16.msra.mxu0 %v26
  %42 = vmatmul.bf16.gmra.mxu0 %v32
  %v43 = vpop.f32.mrf.mxu0
  %v44 = vadd.f32 0.0, %v43
  %v45 = vpop.f32.mrf.mxu0
  %46 = vdwg.mxu0
  %47 = vst.msk [vmem:[%s2] sm:$0xff] %vm30, %v44
  // Predicated region
  $region10: #{binary_conformer_forward.15} parent=0 // pred_check
    _
  $region11: #{binary_conformer_forward.15} parent=0 // pred_check_branch
    %49 = sbr.rel (0) target = $region13
  $region12: #{binary_conformer_forward.15} parent=0 // pred_region
    _
  $region13: #{binary_conformer_forward.15} parent=0 // pred_fallthru
    _
  // Predicated region
  $region14: #{binary_conformer_forward.15} parent=0 // pred_check
    _
  $region15: #{binary_conformer_forward.15} parent=0 // pred_check_branch
    %51 = sbr.rel (0) target = $region17
  $region16: #{binary_conformer_forward.15} parent=0 // pred_region
    _
  $region17: #{binary_conformer_forward.15} parent=0 // pred_fallthru
    _

// kernel: binary_conformer_forward.16
$region0: #{binary_conformer_forward.16}
  #allocation0 [shape = 'u32[]', space=smem, size = 0x4, offset = 0x4, fixed_abs, tag = 'smem constant byte address 0x4 - core index']
  #allocation1 [shape = 'u32[72,128]{1,0:T(1,128)}', space=vmem, size = 0x9000, scoped, tag = 'internal scratch']
  #allocation2 [shape = 'f32[1,1]{1,0:T(1,128)S(6)}', space=smem, size = 0x200, scoped, tag = 'scoped memory for binary_conformer_forward.16']
  %s0 = inlined_call_operand.vmem [shape: f32[2,8,32], index: 0, kind: input, shape index: {}]
  %s1 = inlined_call_operand.vmem [shape: f32[1,32], index: 1, kind: input, shape index: {}]
  %s2 = inlined_call_operand.vmem [shape: f32[1,32], index: 2, kind: input, shape index: {}]
  %s3 = inlined_call_operand.vmem [shape: bf16[32,96], index: 3, kind: input, shape index: {}]
  %s4 = inlined_call_operand.vmem [shape: f32[1,96], index: 4, kind: input, shape index: {}]
  %s5 = inlined_call_operand.vmem [shape: f32[8,32], index: 5, kind: input, shape index: {}]
  %s6 = inlined_call_operand.vmem [shape: f32[1,32], index: 6, kind: input, shape index: {}]
  %s7 = inlined_call_operand.vmem [shape: f32[1,32], index: 7, kind: input, shape index: {}]
  %s8 = inlined_call_operand.vmem [shape: bf16[32,32], index: 8, kind: input, shape index: {}]
  %s9 = inlined_call_operand.vmem [shape: f32[1,32], index: 9, kind: input, shape index: {}]
  %s10 = inlined_call_operand.<no memory space> [shape: f32[1,1], index: 10, kind: input, shape index: {}]
  %s11 = inlined_call_operand.vmem [shape: f32[2,8,32], index: 11, kind: output, shape index: {}]
  %s12 = sld [smem:[#allocation0]]
  $region77: #{binary_conformer_forward.16} parent=0
    _
  %s14 = ssub.s32 1, %s12
  %s15 = scalar_select 0, %s14, %s12
  %16 = sst [smem:[#allocation2]] %s10
  loop: start=0, step=1, limit=4
  $region2: #{binary_conformer_forward.16} parent=0 // loop_pre_header
    _
  $region3: #{binary_conformer_forward.16} parent=0 // loop_header
    %s18 = sphi 0, %s22
    %p19 = scmp.ge.s32.totalorder %s18, 4
    %s28 = sphi 0, %s30
    %s31 = sphi 0, %s28
    %s32 = sphi 0, %s31
    %s48 = sphi 0, %s32
    %s52 = sphi 0, %s52
    %s54 = sphi 0, %s52
    %s55 = sphi 0, %s54
    %s69 = sphi 0, %s55
    %s73 = sphi 0, %s73
    %s75 = sphi 0, %s73
    %s76 = sphi 0, %s75
    %s90 = sphi 0, %s76
    %s94 = sphi 0, %s94
    %s96 = sphi 0, %s94
    %s97 = sphi 0, %s96
    %s111 = sphi 0, %s97
    %s115 = sphi 0, %s115
    %s117 = sphi 0, %s115
    %s118 = sphi 0, %s117
    %s132 = sphi 0, %s118
    %s136 = sphi 0, %s136
    %s138 = sphi 0, %s136
    %s139 = sphi 0, %s138
    %s153 = sphi 0, %s139
    %s157 = sphi 0, %s157
    %s159 = sphi 0, %s157
    %s160 = sphi 0, %s159
    %s174 = sphi 0, %s160
    %s178 = sphi 0, %s178
    %s180 = sphi 0, %s178
    %s181 = sphi 0, %s180
    %s195 = sphi 0, %s181
    %s199 = sphi 0, %s199
    %s201 = sphi 0, %s199
    %s202 = sphi 0, %s201
    %s216 = sphi 0, %s202
    %s220 = sphi 0, %s220
    %s222 = sphi 0, %s220
    %s223 = sphi 0, %s222
    %s237 = sphi 0, %s223
    %s241 = sphi 0, %s241
    %s243 = sphi 0, %s241
    %s244 = sphi 0, %s243
    %s258 = sphi 0, %s244
    %s264 = sphi 0, %s266
    %s267 = sphi 0, %s264
    %s268 = sphi 0, %s267
    %s284 = sphi 0, %s268
  $region4: #{binary_conformer_forward.16} parent=0 // loop_header_branch
    %21 = sbr.rel (%p19) target = $region8
  $region5: #{binary_conformer_forward.16} parent=0 // loop_body
    %s23 = ssub.s32 %s18, 1
    %s24 = ssub.s32 %s18, 2
    %s25 = sadd.s32 %s18, 1
    %s26 = ssub.s32 %s18, %s25
    %p27 = scmp.eq.s32.totalorder %s26, 0
    %s29 = sadd.s32 %s28, 1
    %s30 = scalar_select %p27, %s28, %s29
    %p33 = pneg %p27
    %p34 = scmp.eq.s32.totalorder %s18, 1
    %p35 = por %p33, %p34
    %p36 = scmp.ne.s32.totalorder %s28, %s31
    %p37 = scmp.eq.s32.totalorder %s18, 0
    %p38 = por %p36, %p37
    %p39 = scmp.ne.s32.totalorder %s28, %s31
    %p40 = scmp.eq.s32.totalorder %s23, 1
    %p41 = por %p39, %p40
    %p42 = scmp.ne.s32.totalorder %s31, %s32
    %p43 = scmp.eq.s32.totalorder %s23, 0
    %p44 = por %p42, %p43
    %p45 = scmp.ne.s32.totalorder %s31, %s32
    %p46 = scmp.eq.s32.totalorder %s24, 1
    %p47 = por %p45, %p46
    %p49 = scmp.ne.s32.totalorder %s32, %s48
    %p50 = scmp.eq.s32.totalorder %s24, 0
    %p51 = por %p49, %p50
    %s53 = sadd.s32 %s52, 1
    %p56 = scmp.eq.s32.totalorder %s18, 1
    %p57 = scmp.ne.s32.totalorder %s52, %s54
    %p58 = scmp.eq.s32.totalorder %s18, 0
    %p59 = por %p57, %p58
    %p60 = scmp.ne.s32.totalorder %s52, %s54
    %p61 = scmp.eq.s32.totalorder %s23, 1
    %p62 = por %p60, %p61
    %p63 = scmp.ne.s32.totalorder %s54, %s55
    %p64 = scmp.eq.s32.totalorder %s23, 0
    %p65 = por %p63, %p64
    %p66 = scmp.ne.s32.totalorder %s54, %s55
    %p67 = scmp.eq.s32.totalorder %s24, 1
    %p68 = por %p66, %p67
    %p70 = scmp.ne.s32.totalorder %s55, %s69
    %p71 = scmp.eq.s32.totalorder %s24, 0
    %p72 = por %p70, %p71
    %s74 = sadd.s32 %s73, 1
    %p77 = scmp.eq.s32.totalorder %s18, 1
    %p78 = scmp.ne.s32.totalorder %s73, %s75
    %p79 = scmp.eq.s32.totalorder %s18, 0
    %p80 = por %p78, %p79
    %p81 = scmp.ne.s32.totalorder %s73, %s75
    %p82 = scmp.eq.s32.totalorder %s23, 1
    %p83 = por %p81, %p82
    %p84 = scmp.ne.s32.totalorder %s75, %s76
    %p85 = scmp.eq.s32.totalorder %s23, 0
    %p86 = por %p84, %p85
    %p87 = scmp.ne.s32.totalorder %s75, %s76
    %p88 = scmp.eq.s32.totalorder %s24, 1
    %p89 = por %p87, %p88
    %p91 = scmp.ne.s32.totalorder %s76, %s90
    %p92 = scmp.eq.s32.totalorder %s24, 0
    %p93 = por %p91, %p92
    %s95 = sadd.s32 %s94, 1
    %p98 = scmp.eq.s32.totalorder %s18, 1
    %p99 = scmp.ne.s32.totalorder %s94, %s96
    %p100 = scmp.eq.s32.totalorder %s18, 0
    %p101 = por %p99, %p100
    %p102 = scmp.ne.s32.totalorder %s94, %s96
    %p103 = scmp.eq.s32.totalorder %s23, 1
    %p104 = por %p102, %p103
    %p105 = scmp.ne.s32.totalorder %s96, %s97
    %p106 = scmp.eq.s32.totalorder %s23, 0
    %p107 = por %p105, %p106
    %p108 = scmp.ne.s32.totalorder %s96, %s97
    %p109 = scmp.eq.s32.totalorder %s24, 1
    %p110 = por %p108, %p109
    %p112 = scmp.ne.s32.totalorder %s97, %s111
    %p113 = scmp.eq.s32.totalorder %s24, 0
    %p114 = por %p112, %p113
    %s116 = sadd.s32 %s115, 1
    %p119 = scmp.eq.s32.totalorder %s18, 1
    %p120 = scmp.ne.s32.totalorder %s115, %s117
    %p121 = scmp.eq.s32.totalorder %s18, 0
    %p122 = por %p120, %p121
    %p123 = scmp.ne.s32.totalorder %s115, %s117
    %p124 = scmp.eq.s32.totalorder %s23, 1
    %p125 = por %p123, %p124
    %p126 = scmp.ne.s32.totalorder %s117, %s118
    %p127 = scmp.eq.s32.totalorder %s23, 0
    %p128 = por %p126, %p127
    %p129 = scmp.ne.s32.totalorder %s117, %s118
    %p130 = scmp.eq.s32.totalorder %s24, 1
    %p131 = por %p129, %p130
    %p133 = scmp.ne.s32.totalorder %s118, %s132
    %p134 = scmp.eq.s32.totalorder %s24, 0
    %p135 = por %p133, %p134
    %s137 = sadd.s32 %s136, 1
    %p140 = scmp.eq.s32.totalorder %s18, 1
    %p141 = scmp.ne.s32.totalorder %s136, %s138
    %p142 = scmp.eq.s32.totalorder %s18, 0
    %p143 = por %p141, %p142
    %p144 = scmp.ne.s32.totalorder %s136, %s138
    %p145 = scmp.eq.s32.totalorder %s23, 1
    %p146 = por %p144, %p145
    %p147 = scmp.ne.s32.totalorder %s138, %s139
    %p148 = scmp.eq.s32.totalorder %s23, 0
    %p149 = por %p147, %p148
    %p150 = scmp.ne.s32.totalorder %s138, %s139
    %p151 = scmp.eq.s32.totalorder %s24, 1
    %p152 = por %p150, %p151
    %p154 = scmp.ne.s32.totalorder %s139, %s153
    %p155 = scmp.eq.s32.totalorder %s24, 0
    %p156 = por %p154, %p155
    %s158 = sadd.s32 %s157, 1
    %p161 = scmp.eq.s32.totalorder %s18, 1
    %p162 = scmp.ne.s32.totalorder %s157, %s159
    %p163 = scmp.eq.s32.totalorder %s18, 0
    %p164 = por %p162, %p163
    %p165 = scmp.ne.s32.totalorder %s157, %s159
    %p166 = scmp.eq.s32.totalorder %s23, 1
    %p167 = por %p165, %p166
    %p168 = scmp.ne.s32.totalorder %s159, %s160
    %p169 = scmp.eq.s32.totalorder %s23, 0
    %p170 = por %p168, %p169
    %p171 = scmp.ne.s32.totalorder %s159, %s160
    %p172 = scmp.eq.s32.totalorder %s24, 1
    %p173 = por %p171, %p172
    %p175 = scmp.ne.s32.totalorder %s160, %s174
    %p176 = scmp.eq.s32.totalorder %s24, 0
    %p177 = por %p175, %p176
    %s179 = sadd.s32 %s178, 1
    %p182 = scmp.eq.s32.totalorder %s18, 1
    %p183 = scmp.ne.s32.totalorder %s178, %s180
    %p184 = scmp.eq.s32.totalorder %s18, 0
    %p185 = por %p183, %p184
    %p186 = scmp.ne.s32.totalorder %s178, %s180
    %p187 = scmp.eq.s32.totalorder %s23, 1
    %p188 = por %p186, %p187
    %p189 = scmp.ne.s32.totalorder %s180, %s181
    %p190 = scmp.eq.s32.totalorder %s23, 0
    %p191 = por %p189, %p190
    %p192 = scmp.ne.s32.totalorder %s180, %s181
    %p193 = scmp.eq.s32.totalorder %s24, 1
    %p194 = por %p192, %p193
    %p196 = scmp.ne.s32.totalorder %s181, %s195
    %p197 = scmp.eq.s32.totalorder %s24, 0
    %p198 = por %p196, %p197
    %s200 = sadd.s32 %s199, 1
    %p203 = scmp.eq.s32.totalorder %s18, 1
    %p204 = scmp.ne.s32.totalorder %s199, %s201
    %p205 = scmp.eq.s32.totalorder %s18, 0
    %p206 = por %p204, %p205
    %p207 = scmp.ne.s32.totalorder %s199, %s201
    %p208 = scmp.eq.s32.totalorder %s23, 1
    %p209 = por %p207, %p208
    %p210 = scmp.ne.s32.totalorder %s201, %s202
    %p211 = scmp.eq.s32.totalorder %s23, 0
    %p212 = por %p210, %p211
    %p213 = scmp.ne.s32.totalorder %s201, %s202
    %p214 = scmp.eq.s32.totalorder %s24, 1
    %p215 = por %p213, %p214
    %p217 = scmp.ne.s32.totalorder %s202, %s216
    %p218 = scmp.eq.s32.totalorder %s24, 0
    %p219 = por %p217, %p218
    %s221 = sadd.s32 %s220, 1
    %p224 = scmp.eq.s32.totalorder %s18, 1
    %p225 = scmp.ne.s32.totalorder %s220, %s222
    %p226 = scmp.eq.s32.totalorder %s18, 0
    %p227 = por %p225, %p226
    %p228 = scmp.ne.s32.totalorder %s220, %s222
    %p229 = scmp.eq.s32.totalorder %s23, 1
    %p230 = por %p228, %p229
    %p231 = scmp.ne.s32.totalorder %s222, %s223
    %p232 = scmp.eq.s32.totalorder %s23, 0
    %p233 = por %p231, %p232
    %p234 = scmp.ne.s32.totalorder %s222, %s223
    %p235 = scmp.eq.s32.totalorder %s24, 1
    %p236 = por %p234, %p235
    %p238 = scmp.ne.s32.totalorder %s223, %s237
    %p239 = scmp.eq.s32.totalorder %s24, 0
    %p240 = por %p238, %p239
    %s242 = sadd.s32 %s241, 1
    %p245 = scmp.eq.s32.totalorder %s18, 1
    %p246 = scmp.ne.s32.totalorder %s241, %s243
    %p247 = scmp.eq.s32.totalorder %s18, 0
    %p248 = por %p246, %p247
    %p249 = scmp.ne.s32.totalorder %s241, %s243
    %p250 = scmp.eq.s32.totalorder %s23, 1
    %p251 = por %p249, %p250
    %p252 = scmp.ne.s32.totalorder %s243, %s244
    %p253 = scmp.eq.s32.totalorder %s23, 0
    %p254 = por %p252, %p253
    %p255 = scmp.ne.s32.totalorder %s243, %s244
    %p256 = scmp.eq.s32.totalorder %s24, 1
    %p257 = por %p255, %p256
    %p259 = scmp.ne.s32.totalorder %s244, %s258
    %p260 = scmp.eq.s32.totalorder %s24, 0
    %p261 = por %p259, %p260
    %s262 = ssub.s32 %s18, %s25
    %p263 = scmp.eq.s32.totalorder %s262, 0
    %s265 = sadd.s32 %s264, 1
    %s266 = scalar_select %p263, %s264, %s265
    %p269 = pneg %p263
    %p270 = scmp.eq.s32.totalorder %s18, 1
    %p271 = por %p269, %p270
    %p272 = scmp.ne.s32.totalorder %s264, %s267
    %p273 = scmp.eq.s32.totalorder %s18, 0
    %p274 = por %p272, %p273
    %p275 = scmp.ne.s32.totalorder %s264, %s267
    %p276 = scmp.eq.s32.totalorder %s23, 1
    %p277 = por %p275, %p276
    %p278 = scmp.ne.s32.totalorder %s267, %s268
    %p279 = scmp.eq.s32.totalorder %s23, 0
    %p280 = por %p278, %p279
    %p281 = scmp.ne.s32.totalorder %s267, %s268
    %p282 = scmp.eq.s32.totalorder %s24, 1
    %p283 = por %p281, %p282
    %p285 = scmp.ne.s32.totalorder %s268, %s284
    %p286 = scmp.eq.s32.totalorder %s24, 0
    %p287 = por %p285, %p286
    %p288 = scmp.le.s32.totalorder 1, %s18
    %p289 = scmp.lt.s32.totalorder %s18, 3
    %p290 = pnand %p288, %p289
    %p291 = pneg %p290
    // Predicated region
    $region9: #{binary_conformer_forward.16} parent=5 // pred_check
      _
    $region10: #{binary_conformer_forward.16} parent=5 // pred_check_branch
      %293 = sbr.rel (%p290) target = $region12
    $region11: #{binary_conformer_forward.16} parent=5 // pred_region
      %s294 = ssub.s32 %s18, 1
      // Predicated region
      $region13: #{binary_conformer_forward.16} parent=11 // pred_check
        %p295 = pneg %p65
      $region14: #{binary_conformer_forward.16} parent=11 // pred_check_branch
        %297 = sbr.rel (%p295) target = $region16
      $region15: #{binary_conformer_forward.16} parent=11 // pred_region
        _
      $region16: #{binary_conformer_forward.16} parent=11 // pred_fallthru
        _
      // Predicated region
      $region17: #{binary_conformer_forward.16} parent=11 // pred_check
        %p298 = pneg %p86
      $region18: #{binary_conformer_forward.16} parent=11 // pred_check_branch
        %300 = sbr.rel (%p298) target = $region20
      $region19: #{binary_conformer_forward.16} parent=11 // pred_region
        _
      $region20: #{binary_conformer_forward.16} parent=11 // pred_fallthru
        _
      // Predicated region
      $region21: #{binary_conformer_forward.16} parent=11 // pred_check
        %p301 = pneg %p107
      $region22: #{binary_conformer_forward.16} parent=11 // pred_check_branch
        %303 = sbr.rel (%p301) target = $region24
      $region23: #{binary_conformer_forward.16} parent=11 // pred_region
        _
      $region24: #{binary_conformer_forward.16} parent=11 // pred_fallthru
        _
      // Predicated region
      $region25: #{binary_conformer_forward.16} parent=11 // pred_check
        %p304 = pneg %p128
      $region26: #{binary_conformer_forward.16} parent=11 // pred_check_branch
        %306 = sbr.rel (%p304) target = $region28
      $region27: #{binary_conformer_forward.16} parent=11 // pred_region
        _
      $region28: #{binary_conformer_forward.16} parent=11 // pred_fallthru
        _
      // Predicated region
      $region29: #{binary_conformer_forward.16} parent=11 // pred_check
        %p307 = pneg %p149
      $region30: #{binary_conformer_forward.16} parent=11 // pred_check_branch
        %309 = sbr.rel (%p307) target = $region32
      $region31: #{binary_conformer_forward.16} parent=11 // pred_region
        _
      $region32: #{binary_conformer_forward.16} parent=11 // pred_fallthru
        _
      // Predicated region
      $region33: #{binary_conformer_forward.16} parent=11 // pred_check
        %p310 = pneg %p170
      $region34: #{binary_conformer_forward.16} parent=11 // pred_check_branch
        %312 = sbr.rel (%p310) target = $region36
      $region35: #{binary_conformer_forward.16} parent=11 // pred_region
        _
      $region36: #{binary_conformer_forward.16} parent=11 // pred_fallthru
        _
      // Predicated region
      $region37: #{binary_conformer_forward.16} parent=11 // pred_check
        %p313 = pneg %p191
      $region38: #{binary_conformer_forward.16} parent=11 // pred_check_branch
        %315 = sbr.rel (%p313) target = $region40
      $region39: #{binary_conformer_forward.16} parent=11 // pred_region
        _
      $region40: #{binary_conformer_forward.16} parent=11 // pred_fallthru
        _
      // Predicated region
      $region41: #{binary_conformer_forward.16} parent=11 // pred_check
        %p316 = pneg %p212
      $region42: #{binary_conformer_forward.16} parent=11 // pred_check_branch
        %318 = sbr.rel (%p316) target = $region44
      $region43: #{binary_conformer_forward.16} parent=11 // pred_region
        _
      $region44: #{binary_conformer_forward.16} parent=11 // pred_fallthru
        _
      // Predicated region
      $region45: #{binary_conformer_forward.16} parent=11 // pred_check
        %p319 = pneg %p233
      $region46: #{binary_conformer_forward.16} parent=11 // pred_check_branch
        %321 = sbr.rel (%p319) target = $region48
      $region47: #{binary_conformer_forward.16} parent=11 // pred_region
        _
      $region48: #{binary_conformer_forward.16} parent=11 // pred_fallthru
        _
      // Predicated region
      $region49: #{binary_conformer_forward.16} parent=11 // pred_check
        %p322 = pneg %p254
      $region50: #{binary_conformer_forward.16} parent=11 // pred_check_branch
        %324 = sbr.rel (%p322) target = $region52
      $region51: #{binary_conformer_forward.16} parent=11 // pred_region
        _
      $region52: #{binary_conformer_forward.16} parent=11 // pred_fallthru
        _
    $region12: #{binary_conformer_forward.16} parent=5 // pred_fallthru
      _
    %p325 = scmp.lt.s32.totalorder %s18, 2
    // Predicated region
    $region53: #{binary_conformer_forward.16} parent=5 // pred_check
      %p326 = pneg %p325
    $region54: #{binary_conformer_forward.16} parent=5 // pred_check_branch
      %328 = sbr.rel (%p326) target = $region56
    $region55: #{binary_conformer_forward.16} parent=5 // pred_region
      // Predicated region
      $region57: #{binary_conformer_forward.16} parent=55 // pred_check
        %p329 = pneg %p38
      $region58: #{binary_conformer_forward.16} parent=55 // pred_check_branch
        %331 = sbr.rel (%p329) target = $region60
      $region59: #{binary_conformer_forward.16} parent=55 // pred_region
        %p332 = scmp.lt.s32.totalorder %s18, 1
        %s333 = scalar_select %p332, %s18, 1
        %s334 = smul.addr %s333, 8
        %s335 = scalar_lea.vmem %s0, %s334
      $region60: #{binary_conformer_forward.16} parent=55 // pred_fallthru
        _
    $region56: #{binary_conformer_forward.16} parent=5 // pred_fallthru
      _
    %p336 = scmp.le.s32.totalorder 1, %s18
    %p337 = scmp.lt.s32.totalorder %s18, 3
    %p338 = pnand %p336, %p337
    %p339 = pneg %p338
    // Predicated region
    $region61: #{binary_conformer_forward.16} parent=5 // pred_check
      _
    $region62: #{binary_conformer_forward.16} parent=5 // pred_check_branch
      %341 = sbr.rel (%p338) target = $region64
    $region63: #{binary_conformer_forward.16} parent=5 // pred_region
      %s342 = ssub.s32 %s18, 1
      %p343 = scmp.lt.s32.totalorder %s23, 1
      %s344 = scalar_select %p343, %s23, 1
      %s345 = smul.addr %s344, 8
      %s346 = scalar_lea.vmem %s0, %s345
      %p347 = pneg %p44
      %p348 = pneg %p41
      %p349 = pneg %p65
      %p350 = pneg %p62
      %p351 = pneg %p86
      %p352 = pneg %p83
      %p353 = pneg %p107
      %p354 = pneg %p104
      %p355 = pneg %p128
      %p356 = pneg %p125
      %p357 = pneg %p149
      %p358 = pneg %p146
      %p359 = pneg %p170
      %p360 = pneg %p167
      %p361 = pneg %p191
      %p362 = pneg %p188
      %p363 = pneg %p212
      %p364 = pneg %p209
      %p365 = pneg %p233
      %p366 = pneg %p230
      %p367 = pneg %p254
      %p368 = pneg %p251
      %p369 = pneg %p280
      %p370 = pneg %p277
      %p371 = scmp.lt.s32.totalorder %s23, 1
      %s372 = scalar_select %p371, %s23, 1
      %s373 = smul.addr %s372, 8
      %s374 = scalar_lea.vmem %s11, %s373
      %p375 = scmp.lt.s32.totalorder %s23, 1
      %s376 = scalar_select %p375, %s23, 1
      %s377 = smul.addr %s376, 8
      %s378 = scalar_lea.vmem %s0, %s377
      %p379 = scmp.lt.s32.totalorder %s23, 1
      %s380 = scalar_select %p379, %s23, 1
      %s381 = smul.addr %s380, 8
      %s382 = scalar_lea.vmem %s11, %s381
      %v384 = vld [vmem:[%s378] sm:$0xff]
      %v385 = vld [vmem:[%s1] sm:$0x1]
      %v386 = vld [vmem:[%s2] sm:$0x1]
      %vm387 = vcmask 261120
      %v388 = vsel %vm387, %v384, 0.0
      %389 = vadd.xlane.f32.xlu0 %v388
      %v390 = vpop.xlane.xlu0 %389
      %v391 = vrcp.pop 32.0
      %v392 = vmul.f32 32.0, %v391
      %v393 = vsub.f32 1.0, %v392
      %v394 = vmul.f32 %v391, %v393
      %v395 = vadd.f32 %v391, %v394
      %vm396 = vweird.f32 %v391
      %v397 = vsel %vm396, %v391, %v395
      %v398 = vmul.f32 %v390, %v397
      %v399 = vsub.f32 %v384, %v398
      %v400 = vmul.f32 %v399, %v399
      %v401 = vsel %vm387, %v400, 0.0
      %402 = vadd.xlane.f32.xlu0 %v401
      %v403 = vpop.xlane.xlu0 %402
      %v404 = vmul.f32 %v403, %v397
      %v405 = vadd.f32 %v404, 1e-05
      %v406 = vrsqrt.pop %v405
      %v407 = vmul.f32 %v406, %v405
      %v408 = vmul.f32 %v407, %v406
      %v409 = vmul.f32 0.5, %v408
      %v410 = vsub.f32 1.5, %v409
      %v411 = vmul.f32 %v406, %v410
      %vm412 = vweird.f32 %v405
      %vm413 = vweird.f32 %v406
      %vm414 = vmor %vm412, %vm413
      %v415 = vsel %vm414, %v406, %v411
      %v416 = vmul.f32 %v399, %v415
      %v418 = vperm.slane %v385, 0
      %v420 = vmul.f32 %v416, %v418
      %v422 = vperm.slane %v386, 0
      %v424 = vadd.f32 %v420, %v422
      %v425 = vpack.c.bf16 %v424, %v424
      %v426 = vld [vmem:[%s3] sm:$0xf]
      %v427 = vld [vmem:[%s3 + $0x4] sm:$0xf]
      %v428 = vld [vmem:[%s3 + $0x8] sm:$0xf]
      %v429 = vld [vmem:[%s3 + $0xc] sm:$0xf]
      %v430 = vld [vmem:[%s4] sm:$0x1]
      %v432 = vperm.slane %v430, 0
      %v438 = vunpack.c.l.b16 %v426
      %v439 = vunpack.c.l.b16 %v427
      %v440 = vunpack.c.l.b16 %v428
      %v441 = vunpack.c.l.b16 %v429
      %v442 = vpack.c.b16 %v439, %v438
      %v443 = vpack.c.b16 %v441, %v440
      %v447 = vsel %vm387, %v425, 0
      %449 = vmatpush.bf16.msra.mxu0 0
      %450 = vmatpush.bf16.msra.mxu0 0
      %451 = vmatpush.bf16.msra.mxu0 0
      %452 = vmatpush.bf16.msra.mxu0 0
      %453 = vmatpush.bf16.msra.mxu0 0
      %454 = vmatpush.bf16.msra.mxu0 0
      %455 = vmatpush.bf16.msra.mxu0 %v443
      %456 = vmatpush.bf16.msra.mxu0 %v442
      %457 = vmatmul.bf16.gmra.mxu0 %v447
      %v458 = vpop.f32.mrf.mxu0
      %v459 = vadd.f32 %v432, %v458
      %v460 = vpop.f32.mrf.mxu0
      %461 = vdwg.mxu0
      %v462 = vmul.f32 %v459, 0.17677669
      %v463 = vld [vmem:[%s6] sm:$0x1]
      %v464 = vmul.f32 %v463, 0.17677669
      %v465 = vld [vmem:[%s7] sm:$0x1]
      %v466 = vmul.f32 %v465, 0.17677669
      %v467 = vld [vmem:[%s5] sm:$0xff]
      %v468 = vld [vmem:[%s8] sm:$0xf]
      %v469 = vld [vmem:[%s8 + $0x4] sm:$0xf]
      %v470 = vld [vmem:[%s8 + $0x8] sm:$0xf]
      %v471 = vld [vmem:[%s8 + $0xc] sm:$0xf]
      %v472 = vlaneseq
      %v473 = vshrl.u32 %v472, 7
      %v474 = vlaneseq
      %v475 = vand.u32 %v474, 127
      %v476 = vadd.s32 %v475, %v473
      %vm477 = vcmp.ge.s32.totalorder %v476, 8
      %v478 = vsub.s32 %v476, 8
      %v479 = vsel %vm477, %v478, %v476
      %vm480 = vcmp.le.s32.totalorder %v479, %v473
      %v481 = vadd.s32 %v473, 1
      %vm482 = vcmp.eq.s32.totalorder %v475, %v481
      %v483 = vpack.c.bf16 %v459, %v459
      %v484 = vpack.c.bf16 %v467, %v467
      %v486 = vperm.slane %v464, 0
      %v488 = vadd.f32 %v462, %v486
      %v489 = vpack.c.bf16 %v488, %v488
      %v491 = vperm.slane %v466, 0
      %v493 = vadd.f32 %v462, %v491
      %v494 = vpack.c.bf16 %v493, %v493
      %vm495 = vcmask 64512
      %v497 = vsel %vm495, %v494, 0
      %v500 = vsel %vm495, %v484, 0
      %502 = vmatpush.bf16.xpose.msra.mxu0 0
      %503 = vmatpush.bf16.xpose.msra.mxu0 0
      %504 = vmatpush.bf16.xpose.msra.mxu0 0
      %505 = vmatpush.bf16.xpose.msra.mxu0 0
      %506 = vmatpush.bf16.xpose.msra.mxu0 0
      %507 = vmatpush.bf16.xpose.msra.mxu0 0
      %508 = vmatpush.bf16.xpose.msra.mxu0 0
      %509 = vmatpush.bf16.xpose.msra.mxu0 %v500
      %510 = vmatmul.bf16.gmra.mxu0 %v497
      %v511 = vpop.f32.mrf.mxu0
      %v512 = vadd.f32 0.0, %v511
      %v513 = vpop.f32.mrf.mxu0
      %514 = vdwg.mxu0
      %516 = vrot.lane.b32.xlu0 %v512, 121
      %v517 = vpop.permute.xlu0 %516
      %519 = vrot.lane.b32.xlu0 %v512, 1
      %v520 = vpop.permute.xlu0 %519
      %vm522 = vcmask 7168
      %v523 = vsel %vm522, %v517, %v520
      %v524 = vrot.slane %v512, 1
      %vm526 = vcmask 1046528
      %v527 = vsel %vm526, %v524, %v524
      %529 = vrot.lane.b32.xlu0 %v527, 122
      %v530 = vpop.permute.xlu0 %529
      %532 = vrot.lane.b32.xlu0 %v527, 2
      %v533 = vpop.permute.xlu0 %532
      %vm535 = vcmask 15360
      %v536 = vsel %vm535, %v530, %v533
      %v537 = vsel %vm480, %v523, %v536
      %v538 = vand.u32 %v473, 1
      %vm539 = vcmp.ne.s32.totalorder %v538, 0
      %541 = vrot.lane.b32.xlu0 %v537, 121
      %v542 = vpop.permute.xlu0 %541
      %544 = vrot.lane.b32.xlu0 %v537, 1
      %v545 = vpop.permute.xlu0 %544
      %v547 = vsel %vm522, %v542, %v545
      %v548 = vsel %vm539, %v547, %v537
      %v549 = vand.u32 %v473, 2
      %vm550 = vcmp.ne.s32.totalorder %v549, 0
      %552 = vrot.lane.b32.xlu0 %v548, 122
      %v553 = vpop.permute.xlu0 %552
      %555 = vrot.lane.b32.xlu0 %v548, 2
      %v556 = vpop.permute.xlu0 %555
      %v558 = vsel %vm535, %v553, %v556
      %v559 = vsel %vm550, %v558, %v548
      %v560 = vand.u32 %v473, 4
      %vm561 = vcmp.ne.s32.totalorder %v560, 0
      %563 = vrot.lane.b32.xlu0 %v559, 124
      %v564 = vpop.permute.xlu0 %563
      %566 = vrot.lane.b32.xlu0 %v559, 4
      %v567 = vpop.permute.xlu0 %566
      %vm569 = vcmask 31744
      %v570 = vsel %vm569, %v564, %v567
      %v571 = vsel %vm561, %v570, %v559
      %v572 = vsel %vm482, 0.0, %v571
      %574 = vrot.lane.b32.xlu0 %v483, 96
      %v575 = vpop.permute.xlu0 %574
      %v577 = vsel %vm495, %v489, 0
      %v580 = vsel %vm495, %v575, 0
      %582 = vmatpush.bf16.xpose.msra.mxu0 0
      %583 = vmatpush.bf16.xpose.msra.mxu0 0
      %584 = vmatpush.bf16.xpose.msra.mxu0 0
      %585 = vmatpush.bf16.xpose.msra.mxu0 0
      %586 = vmatpush.bf16.xpose.msra.mxu0 0
      %587 = vmatpush.bf16.xpose.msra.mxu0 0
      %588 = vmatpush.bf16.xpose.msra.mxu0 0
      %589 = vmatpush.bf16.xpose.msra.mxu0 %v580
      %590 = vmatmul.bf16.gmra.mxu0 %v577
      %v591 = vpop.f32.mrf.mxu0
      %v592 = vadd.f32 %v572, %v591
      %v593 = vpop.f32.mrf.mxu0
      %594 = vdwg.mxu0
      %v595 = vsel %vm495, %v592, -inf
      %596 = vmax.xlane.f32.xlu0 %v595
      %v597 = vpop.xlane.xlu0 %596
      %v598 = vsub.f32 %v592, %v597
      %v599 = vmul.f32 %v598, 1.442695
      %v600 = vpow.pop %v599
      %v601 = vsel %vm495, %v600, 0.0
      %602 = vadd.xlane.f32.xlu0 %v601
      %v603 = vpop.xlane.xlu0 %602
      %v604 = vrcp.pop %v603
      %v605 = vmul.f32 %v600, %v604
      %v606 = vpack.c.bf16 %v605, %v605
      %607 = vrot.lane.b32.xlu0 %v483, 64
      %v608 = vpop.permute.xlu0 %607
      %v610 = vsel %vm495, %v606, 0
      %vm612 = vcmask 1043456
      %v614 = vsel %vm612, %v608, 0
      %616 = vmatpush.bf16.msra.mxu0 0
      %617 = vmatpush.bf16.msra.mxu0 0
      %618 = vmatpush.bf16.msra.mxu0 0
      %619 = vmatpush.bf16.msra.mxu0 0
      %620 = vmatpush.bf16.msra.mxu0 0
      %621 = vmatpush.bf16.msra.mxu0 0
      %622 = vmatpush.bf16.msra.mxu0 0
      %623 = vmatpush.bf16.msra.mxu0 %v614
      %624 = vmatmul.bf16.gmra.mxu0 %v610
      %v625 = vpop.f32.mrf.mxu0
      %v626 = vadd.f32 0.0, %v625
      %v627 = vpop.f32.mrf.mxu0
      %628 = vdwg.mxu0
      %v629 = vpack.c.bf16 %v626, %v626
      %631 = vrot.lane.b32.xlu0 %v494, 120
      %v632 = vpop.permute.xlu0 %631
      %634 = vrot.lane.b32.xlu0 %v484, 120
      %v635 = vpop.permute.xlu0 %634
      %v637 = vsel %vm495, %v632, 0
      %v640 = vsel %vm495, %v635, 0
      %642 = vmatpush.bf16.xpose.msra.mxu0 0
      %643 = vmatpush.bf16.xpose.msra.mxu0 0
      %644 = vmatpush.bf16.xpose.msra.mxu0 0
      %645 = vmatpush.bf16.xpose.msra.mxu0 0
      %646 = vmatpush.bf16.xpose.msra.mxu0 0
      %647 = vmatpush.bf16.xpose.msra.mxu0 0
      %648 = vmatpush.bf16.xpose.msra.mxu0 0
      %649 = vmatpush.bf16.xpose.msra.mxu0 %v640
      %650 = vmatmul.bf16.gmra.mxu0 %v637
      %v651 = vpop.f32.mrf.mxu0
      %v652 = vadd.f32 0.0, %v651
      %v653 = vpop.f32.mrf.mxu0
      %654 = vdwg.mxu0
      %656 = vrot.lane.b32.xlu0 %v652, 121
      %v657 = vpop.permute.xlu0 %656
      %659 = vrot.lane.b32.xlu0 %v652, 1
      %v660 = vpop.permute.xlu0 %659
      %v662 = vsel %vm522, %v657, %v660
      %v663 = vrot.slane %v652, 1
      %v665 = vsel %vm526, %v663, %v663
      %667 = vrot.lane.b32.xlu0 %v665, 122
      %v668 = vpop.permute.xlu0 %667
      %670 = vrot.lane.b32.xlu0 %v665, 2
      %v671 = vpop.permute.xlu0 %670
      %v673 = vsel %vm535, %v668, %v671
      %v674 = vsel %vm480, %v662, %v673
      %676 = vrot.lane.b32.xlu0 %v674, 121
      %v677 = vpop.permute.xlu0 %676
      %679 = vrot.lane.b32.xlu0 %v674, 1
      %v680 = vpop.permute.xlu0 %679
      %v682 = vsel %vm522, %v677, %v680
      %v683 = vsel %vm539, %v682, %v674
      %685 = vrot.lane.b32.xlu0 %v683, 122
      %v686 = vpop.permute.xlu0 %685
      %688 = vrot.lane.b32.xlu0 %v683, 2
      %v689 = vpop.permute.xlu0 %688
      %v691 = vsel %vm535, %v686, %v689
      %v692 = vsel %vm550, %v691, %v683
      %694 = vrot.lane.b32.xlu0 %v692, 124
      %v695 = vpop.permute.xlu0 %694
      %697 = vrot.lane.b32.xlu0 %v692, 4
      %v698 = vpop.permute.xlu0 %697
      %v700 = vsel %vm569, %v695, %v698
      %v701 = vsel %vm561, %v700, %v692
      %v702 = vsel %vm482, 0.0, %v701
      %704 = vrot.lane.b32.xlu0 %v489, 120
      %v705 = vpop.permute.xlu0 %704
      %706 = vrot.lane.b32.xlu0 %v483, 88
      %v707 = vpop.permute.xlu0 %706
      %v709 = vsel %vm495, %v705, 0
      %v712 = vsel %vm495, %v707, 0
      %714 = vmatpush.bf16.xpose.msra.mxu0 0
      %715 = vmatpush.bf16.xpose.msra.mxu0 0
      %716 = vmatpush.bf16.xpose.msra.mxu0 0
      %717 = vmatpush.bf16.xpose.msra.mxu0 0
      %718 = vmatpush.bf16.xpose.msra.mxu0 0
      %719 = vmatpush.bf16.xpose.msra.mxu0 0
      %720 = vmatpush.bf16.xpose.msra.mxu0 0
      %721 = vmatpush.bf16.xpose.msra.mxu0 %v712
      %722 = vmatmul.bf16.gmra.mxu0 %v709
      %v723 = vpop.f32.mrf.mxu0
      %v724 = vadd.f32 %v702, %v723
      %v725 = vpop.f32.mrf.mxu0
      %726 = vdwg.mxu0
      %v727 = vsel %vm495, %v724, -inf
      %728 = vmax.xlane.f32.xlu0 %v727
      %v729 = vpop.xlane.xlu0 %728
      %v730 = vsub.f32 %v724, %v729
      %v731 = vmul.f32 %v730, 1.442695
      %v732 = vpow.pop %v731
      %v733 = vsel %vm495, %v732, 0.0
      %734 = vadd.xlane.f32.xlu0 %v733
      %v735 = vpop.xlane.xlu0 %734
      %v736 = vrcp.pop %v735
      %v737 = vmul.f32 %v732, %v736
      %v738 = vpack.c.bf16 %v737, %v737
      %739 = vrot.lane.b32.xlu0 %v483, 56
      %v740 = vpop.permute.xlu0 %739
      %v742 = vsel %vm495, %v738, 0
      %v745 = vsel %vm612, %v740, 0
      %747 = vmatpush.bf16.msra.mxu0 0
      %748 = vmatpush.bf16.msra.mxu0 0
      %749 = vmatpush.bf16.msra.mxu0 0
      %750 = vmatpush.bf16.msra.mxu0 0
      %751 = vmatpush.bf16.msra.mxu0 0
      %752 = vmatpush.bf16.msra.mxu0 0
      %753 = vmatpush.bf16.msra.mxu0 0
      %754 = vmatpush.bf16.msra.mxu0 %v745
      %755 = vmatmul.bf16.gmra.mxu0 %v742
      %v756 = vpop.f32.mrf.mxu0
      %v757 = vadd.f32 0.0, %v756
      %v758 = vpop.f32.mrf.mxu0
      %759 = vdwg.mxu0
      %v760 = vpack.c.bf16 %v757, %v757
      %v762 = vsel %vm495, %v760, 0
      %v765 = vsel %vm612, %v469, 0
      %767 = vmatpush.bf16.msra.mxu0 0
      %768 = vmatpush.bf16.msra.mxu0 0
      %769 = vmatpush.bf16.msra.mxu0 0
      %770 = vmatpush.bf16.msra.mxu0 0
      %771 = vmatpush.bf16.msra.mxu0 0
      %772 = vmatpush.bf16.msra.mxu0 0
      %773 = vmatpush.bf16.msra.mxu0 0
      %774 = vmatpush.bf16.msra.mxu0 %v765
      %775 = vmatmul.bf16.gmra.mxu0 %v762
      %v776 = vpop.f32.mrf.mxu0
      %v777 = vadd.f32 0.0, %v776
      %v778 = vpop.f32.mrf.mxu0
      %779 = vdwg.mxu0
      %v781 = vsel %vm495, %v629, 0
      %v784 = vsel %vm612, %v468, 0
      %786 = vmatpush.bf16.msra.mxu0 0
      %787 = vmatpush.bf16.msra.mxu0 0
      %788 = vmatpush.bf16.msra.mxu0 0
      %789 = vmatpush.bf16.msra.mxu0 0
      %790 = vmatpush.bf16.msra.mxu0 0
      %791 = vmatpush.bf16.msra.mxu0 0
      %792 = vmatpush.bf16.msra.mxu0 0
      %793 = vmatpush.bf16.msra.mxu0 %v784
      %794 = vmatmul.bf16.gmra.mxu0 %v781
      %v795 = vpop.f32.mrf.mxu0
      %v796 = vadd.f32 %v777, %v795
      %v797 = vpop.f32.mrf.mxu0
      %798 = vdwg.mxu0
      %799 = vrot.lane.b32.xlu0 %v494, 112
      %v800 = vpop.permute.xlu0 %799
      %801 = vrot.lane.b32.xlu0 %v484, 112
      %v802 = vpop.permute.xlu0 %801
      %v804 = vsel %vm495, %v800, 0
      %v807 = vsel %vm495, %v802, 0
      %809 = vmatpush.bf16.xpose.msra.mxu0 0
      %810 = vmatpush.bf16.xpose.msra.mxu0 0
      %811 = vmatpush.bf16.xpose.msra.mxu0 0
      %812 = vmatpush.bf16.xpose.msra.mxu0 0
      %813 = vmatpush.bf16.xpose.msra.mxu0 0
      %814 = vmatpush.bf16.xpose.msra.mxu0 0
      %815 = vmatpush.bf16.xpose.msra.mxu0 0
      %816 = vmatpush.bf16.xpose.msra.mxu0 %v807
      %817 = vmatmul.bf16.gmra.mxu0 %v804
      %v818 = vpop.f32.mrf.mxu0
      %v819 = vadd.f32 0.0, %v818
      %v820 = vpop.f32.mrf.mxu0
      %821 = vdwg.mxu0
      %823 = vrot.lane.b32.xlu0 %v819, 121
      %v824 = vpop.permute.xlu0 %823
      %826 = vrot.lane.b32.xlu0 %v819, 1
      %v827 = vpop.permute.xlu0 %826
      %v829 = vsel %vm522, %v824, %v827
      %v830 = vrot.slane %v819, 1
      %v832 = vsel %vm526, %v830, %v830
      %834 = vrot.lane.b32.xlu0 %v832, 122
      %v835 = vpop.permute.xlu0 %834
      %837 = vrot.lane.b32.xlu0 %v832, 2
      %v838 = vpop.permute.xlu0 %837
      %v840 = vsel %vm535, %v835, %v838
      %v841 = vsel %vm480, %v829, %v840
      %843 = vrot.lane.b32.xlu0 %v841, 121
      %v844 = vpop.permute.xlu0 %843
      %846 = vrot.lane.b32.xlu0 %v841, 1
      %v847 = vpop.permute.xlu0 %846
      %v849 = vsel %vm522, %v844, %v847
      %v850 = vsel %vm539, %v849, %v841
      %852 = vrot.lane.b32.xlu0 %v850, 122
      %v853 = vpop.permute.xlu0 %852
      %855 = vrot.lane.b32.xlu0 %v850, 2
      %v856 = vpop.permute.xlu0 %855
      %v858 = vsel %vm535, %v853, %v856
      %v859 = vsel %vm550, %v858, %v850
      %861 = vrot.lane.b32.xlu0 %v859, 124
      %v862 = vpop.permute.xlu0 %861
      %864 = vrot.lane.b32.xlu0 %v859, 4
      %v865 = vpop.permute.xlu0 %864
      %v867 = vsel %vm569, %v862, %v865
      %v868 = vsel %vm561, %v867, %v859
      %v869 = vsel %vm482, 0.0, %v868
      %870 = vrot.lane.b32.xlu0 %v489, 112
      %v871 = vpop.permute.xlu0 %870
      %872 = vrot.lane.b32.xlu0 %v483, 80
      %v873 = vpop.permute.xlu0 %872
      %v875 = vsel %vm495, %v871, 0
      %v878 = vsel %vm495, %v873, 0
      %880 = vmatpush.bf16.xpose.msra.mxu0 0
      %881 = vmatpush.bf16.xpose.msra.mxu0 0
      %882 = vmatpush.bf16.xpose.msra.mxu0 0
      %883 = vmatpush.bf16.xpose.msra.mxu0 0
      %884 = vmatpush.bf16.xpose.msra.mxu0 0
      %885 = vmatpush.bf16.xpose.msra.mxu0 0
      %886 = vmatpush.bf16.xpose.msra.mxu0 0
      %887 = vmatpush.bf16.xpose.msra.mxu0 %v878
      %888 = vmatmul.bf16.gmra.mxu0 %v875
      %v889 = vpop.f32.mrf.mxu0
      %v890 = vadd.f32 %v869, %v889
      %v891 = vpop.f32.mrf.mxu0
      %892 = vdwg.mxu0
      %v893 = vsel %vm495, %v890, -inf
      %894 = vmax.xlane.f32.xlu0 %v893
      %v895 = vpop.xlane.xlu0 %894
      %v896 = vsub.f32 %v890, %v895
      %v897 = vmul.f32 %v896, 1.442695
      %v898 = vpow.pop %v897
      %v899 = vsel %vm495, %v898, 0.0
      %900 = vadd.xlane.f32.xlu0 %v899
      %v901 = vpop.xlane.xlu0 %900
      %v902 = vrcp.pop %v901
      %v903 = vmul.f32 %v898, %v902
      %v904 = vpack.c.bf16 %v903, %v903
      %905 = vrot.lane.b32.xlu0 %v483, 48
      %v906 = vpop.permute.xlu0 %905
      %v908 = vsel %vm495, %v904, 0
      %v911 = vsel %vm612, %v906, 0
      %913 = vmatpush.bf16.msra.mxu0 0
      %914 = vmatpush.bf16.msra.mxu0 0
      %915 = vmatpush.bf16.msra.mxu0 0
      %916 = vmatpush.bf16.msra.mxu0 0
      %917 = vmatpush.bf16.msra.mxu0 0
      %918 = vmatpush.bf16.msra.mxu0 0
      %919 = vmatpush.bf16.msra.mxu0 0
      %920 = vmatpush.bf16.msra.mxu0 %v911
      %921 = vmatmul.bf16.gmra.mxu0 %v908
      %v922 = vpop.f32.mrf.mxu0
      %v923 = vadd.f32 0.0, %v922
      %v924 = vpop.f32.mrf.mxu0
      %925 = vdwg.mxu0
      %v926 = vpack.c.bf16 %v923, %v923
      %v928 = vsel %vm495, %v926, 0
      %v931 = vsel %vm612, %v470, 0
      %933 = vmatpush.bf16.msra.mxu0 0
      %934 = vmatpush.bf16.msra.mxu0 0
      %935 = vmatpush.bf16.msra.mxu0 0
      %936 = vmatpush.bf16.msra.mxu0 0
      %937 = vmatpush.bf16.msra.mxu0 0
      %938 = vmatpush.bf16.msra.mxu0 0
      %939 = vmatpush.bf16.msra.mxu0 0
      %940 = vmatpush.bf16.msra.mxu0 %v931
      %941 = vmatmul.bf16.gmra.mxu0 %v928
      %v942 = vpop.f32.mrf.mxu0
      %v943 = vadd.f32 0.0, %v942
      %v944 = vpop.f32.mrf.mxu0
      %945 = vdwg.mxu0
      %v946 = vadd.f32 %v796, %v943
      %947 = vrot.lane.b32.xlu0 %v494, 104
      %v948 = vpop.permute.xlu0 %947
      %949 = vrot.lane.b32.xlu0 %v484, 104
      %v950 = vpop.permute.xlu0 %949
      %v952 = vsel %vm495, %v948, 0
      %v955 = vsel %vm495, %v950, 0
      %957 = vmatpush.bf16.xpose.msra.mxu0 0
      %958 = vmatpush.bf16.xpose.msra.mxu0 0
      %959 = vmatpush.bf16.xpose.msra.mxu0 0
      %960 = vmatpush.bf16.xpose.msra.mxu0 0
      %961 = vmatpush.bf16.xpose.msra.mxu0 0
      %962 = vmatpush.bf16.xpose.msra.mxu0 0
      %963 = vmatpush.bf16.xpose.msra.mxu0 0
      %964 = vmatpush.bf16.xpose.msra.mxu0 %v955
      %965 = vmatmul.bf16.gmra.mxu0 %v952
      %v966 = vpop.f32.mrf.mxu0
      %v967 = vadd.f32 0.0, %v966
      %v968 = vpop.f32.mrf.mxu0
      %969 = vdwg.mxu0
      %971 = vrot.lane.b32.xlu0 %v967, 121
      %v972 = vpop.permute.xlu0 %971
      %974 = vrot.lane.b32.xlu0 %v967, 1
      %v975 = vpop.permute.xlu0 %974
      %v977 = vsel %vm522, %v972, %v975
      %v978 = vrot.slane %v967, 1
      %v980 = vsel %vm526, %v978, %v978
      %982 = vrot.lane.b32.xlu0 %v980, 122
      %v983 = vpop.permute.xlu0 %982
      %985 = vrot.lane.b32.xlu0 %v980, 2
      %v986 = vpop.permute.xlu0 %985
      %v988 = vsel %vm535, %v983, %v986
      %v989 = vsel %vm480, %v977, %v988
      %991 = vrot.lane.b32.xlu0 %v989, 121
      %v992 = vpop.permute.xlu0 %991
      %994 = vrot.lane.b32.xlu0 %v989, 1
      %v995 = vpop.permute.xlu0 %994
      %v997 = vsel %vm522, %v992, %v995
      %v998 = vsel %vm539, %v997, %v989
      %1000 = vrot.lane.b32.xlu0 %v998, 122
      %v1001 = vpop.permute.xlu0 %1000
      %1003 = vrot.lane.b32.xlu0 %v998, 2
      %v1004 = vpop.permute.xlu0 %1003
      %v1006 = vsel %vm535, %v1001, %v1004
      %v1007 = vsel %vm550, %v1006, %v998
      %1009 = vrot.lane.b32.xlu0 %v1007, 124
      %v1010 = vpop.permute.xlu0 %1009
      %1012 = vrot.lane.b32.xlu0 %v1007, 4
      %v1013 = vpop.permute.xlu0 %1012
      %v1015 = vsel %vm569, %v1010, %v1013
      %v1016 = vsel %vm561, %v1015, %v1007
      %v1017 = vsel %vm482, 0.0, %v1016
      %1018 = vrot.lane.b32.xlu0 %v489, 104
      %v1019 = vpop.permute.xlu0 %1018
      %1020 = vrot.lane.b32.xlu0 %v483, 72
      %v1021 = vpop.permute.xlu0 %1020
      %v1023 = vsel %vm495, %v1019, 0
      %v1026 = vsel %vm495, %v1021, 0
      %1028 = vmatpush.bf16.xpose.msra.mxu0 0
      %1029 = vmatpush.bf16.xpose.msra.mxu0 0
      %1030 = vmatpush.bf16.xpose.msra.mxu0 0
      %1031 = vmatpush.bf16.xpose.msra.mxu0 0
      %1032 = vmatpush.bf16.xpose.msra.mxu0 0
      %1033 = vmatpush.bf16.xpose.msra.mxu0 0
      %1034 = vmatpush.bf16.xpose.msra.mxu0 0
      %1035 = vmatpush.bf16.xpose.msra.mxu0 %v1026
      %1036 = vmatmul.bf16.gmra.mxu0 %v1023
      %v1037 = vpop.f32.mrf.mxu0
      %v1038 = vadd.f32 %v1017, %v1037
      %v1039 = vpop.f32.mrf.mxu0
      %1040 = vdwg.mxu0
      %v1041 = vsel %vm495, %v1038, -inf
      %1042 = vmax.xlane.f32.xlu0 %v1041
      %v1043 = vpop.xlane.xlu0 %1042
      %v1044 = vsub.f32 %v1038, %v1043
      %v1045 = vmul.f32 %v1044, 1.442695
      %v1046 = vpow.pop %v1045
      %v1047 = vsel %vm495, %v1046, 0.0
      %1048 = vadd.xlane.f32.xlu0 %v1047
      %v1049 = vpop.xlane.xlu0 %1048
      %v1050 = vrcp.pop %v1049
      %v1051 = vmul.f32 %v1046, %v1050
      %v1052 = vpack.c.bf16 %v1051, %v1051
      %1053 = vrot.lane.b32.xlu0 %v483, 40
      %v1054 = vpop.permute.xlu0 %1053
      %v1056 = vsel %vm495, %v1052, 0
      %v1059 = vsel %vm612, %v1054, 0
      %1061 = vmatpush.bf16.msra.mxu0 0
      %1062 = vmatpush.bf16.msra.mxu0 0
      %1063 = vmatpush.bf16.msra.mxu0 0
      %1064 = vmatpush.bf16.msra.mxu0 0
      %1065 = vmatpush.bf16.msra.mxu0 0
      %1066 = vmatpush.bf16.msra.mxu0 0
      %1067 = vmatpush.bf16.msra.mxu0 0
      %1068 = vmatpush.bf16.msra.mxu0 %v1059
      %1069 = vmatmul.bf16.gmra.mxu0 %v1056
      %v1070 = vpop.f32.mrf.mxu0
      %v1071 = vadd.f32 0.0, %v1070
      %v1072 = vpop.f32.mrf.mxu0
      %1073 = vdwg.mxu0
      %v1074 = vpack.c.bf16 %v1071, %v1071
      %v1076 = vsel %vm495, %v1074, 0
      %v1079 = vsel %vm612, %v471, 0
      %1081 = vmatpush.bf16.msra.mxu0 0
      %1082 = vmatpush.bf16.msra.mxu0 0
      %1083 = vmatpush.bf16.msra.mxu0 0
      %1084 = vmatpush.bf16.msra.mxu0 0
      %1085 = vmatpush.bf16.msra.mxu0 0
      %1086 = vmatpush.bf16.msra.mxu0 0
      %1087 = vmatpush.bf16.msra.mxu0 0
      %1088 = vmatpush.bf16.msra.mxu0 %v1079
      %1089 = vmatmul.bf16.gmra.mxu0 %v1076
      %v1090 = vpop.f32.mrf.mxu0
      %v1091 = vadd.f32 0.0, %v1090
      %v1092 = vpop.f32.mrf.mxu0
      %1093 = vdwg.mxu0
      %v1094 = vadd.f32 %v946, %v1091
      %v1095 = vld [vmem:[%s9] sm:$0x1]
      %v1097 = vperm.slane %v1095, 0
      %v1099 = vadd.f32 %v1094, %v1097
      %s1100 = sld [smem:[#allocation2]]
      %v1101 = vstv %s1100
      %v1102 = vmul.f32 %v1101, %v1099
      %v1103 = vadd.f32 %v384, %v1102
      %1104 = vst.msk [vmem:[%s382] sm:$0xff] %vm387, %v1103
      %p1105 = scmp.lt.s32.totalorder %s23, 1
      %s1106 = scalar_select %p1105, %s23, 1
      %s1107 = smul.addr %s1106, 8
      %s1108 = scalar_lea.vmem %s11, %s1107
      // Predicated region
      $region65: #{binary_conformer_forward.16} parent=63 // pred_check
        %p1109 = pneg %p277
      $region66: #{binary_conformer_forward.16} parent=63 // pred_check_branch
        %1111 = sbr.rel (%p1109) target = $region68
      $region67: #{binary_conformer_forward.16} parent=63 // pred_region
        _
      $region68: #{binary_conformer_forward.16} parent=63 // pred_fallthru
        _
    $region64: #{binary_conformer_forward.16} parent=5 // pred_fallthru
      _
    %p1112 = scmp.le.s32.totalorder 2, %s18
    // Predicated region
    $region69: #{binary_conformer_forward.16} parent=5 // pred_check
      %p1113 = pneg %p1112
    $region70: #{binary_conformer_forward.16} parent=5 // pred_check_branch
      %1115 = sbr.rel (%p1113) target = $region72
    $region71: #{binary_conformer_forward.16} parent=5 // pred_region
      %s1116 = ssub.s32 %s18, 2
      // Predicated region
      $region73: #{binary_conformer_forward.16} parent=71 // pred_check
        %p1117 = pneg %p283
      $region74: #{binary_conformer_forward.16} parent=71 // pred_check_branch
        %1119 = sbr.rel (%p1117) target = $region76
      $region75: #{binary_conformer_forward.16} parent=71 // pred_region
        %p1120 = scmp.lt.s32.totalorder %s24, 1
        %s1121 = scalar_select %p1120, %s24, 1
        %s1122 = smul.addr %s1121, 8
        %s1123 = scalar_lea.vmem %s11, %s1122
      $region76: #{binary_conformer_forward.16} parent=71 // pred_fallthru
        _
    $region72: #{binary_conformer_forward.16} parent=5 // pred_fallthru
      _
  $region6: #{binary_conformer_forward.16} parent=0 // loop_footer
    %s22 = sadd.s32 1, %s18
  $region7: #{binary_conformer_forward.16} parent=0 // loop_footer_branch
    %17 = sbr.rel target = $region3
  $region8: #{binary_conformer_forward.16} parent=0 // loop_exit
    _

// kernel: binary_conformer_forward.23
$region0: #{binary_conformer_forward.23}
  #allocation0 [shape = 'u32[]', space=smem, size = 0x4, offset = 0x4, fixed_abs, tag = 'smem constant byte address 0x4 - core index']
  #allocation1 [shape = 'u32[72,128]{1,0:T(1,128)}', space=vmem, size = 0x9000, scoped, tag = 'internal scratch']
  #allocation2 [shape = 'f32[1,1]{1,0:T(1,128)S(6)}', space=smem, size = 0x200, scoped, tag = 'scoped memory for binary_conformer_forward.23']
  %s0 = inlined_call_operand.vmem [shape: f32[16,32], index: 0, kind: input, shape index: {}]
  %s1 = inlined_call_operand.vmem [shape: f32[1,32], index: 1, kind: input, shape index: {}]
  %s2 = inlined_call_operand.vmem [shape: f32[1,32], index: 2, kind: input, shape index: {}]
  %s3 = inlined_call_operand.vmem [shape: bf16[32,128], index: 3, kind: input, shape index: {}]
  %s4 = inlined_call_operand.vmem [shape: f32[1,128], index: 4, kind: input, shape index: {}]
  %s5 = inlined_call_operand.vmem [shape: bf16[128,32], index: 5, kind: input, shape index: {}]
  %s6 = inlined_call_operand.vmem [shape: f32[1,32], index: 6, kind: input, shape index: {}]
  %s7 = inlined_call_operand.vmem [shape: f32[1,32], index: 7, kind: input, shape index: {}]
  %s8 = inlined_call_operand.vmem [shape: f32[1,32], index: 8, kind: input, shape index: {}]
  %s9 = inlined_call_operand.<no memory space> [shape: f32[1,1], index: 9, kind: input, shape index: {}]
  %s10 = inlined_call_operand.hbm [shape: f32[16,32], index: 10, kind: output, shape index: {}]
  %s11 = sld [smem:[#allocation0]]
  $region50: #{binary_conformer_forward.23} parent=0
    _
  %s13 = ssub.s32 1, %s11
  %s14 = scalar_select 0, %s13, %s11
  %15 = sst [smem:[#allocation2]] %s9
  $region1: #{binary_conformer_forward.23} parent=0
    #allocation3 [shape = 'u8[8192]{0}', space=vmem, size = 0x2000, scoped, tag = 'output window, operand 0, single buffered']
    #allocation4 [shape = 's32[1]{0}', space=sflag, size = 0x4, scoped, tag = 'scoped memory for binary_conformer_forward.23']
    %16 = vsyncpa [#allocation4], 0
    // Predicated region
    $region2: #{binary_conformer_forward.23} parent=1 // pred_check
      _
    $region3: #{binary_conformer_forward.23} parent=1 // pred_check_branch
      %18 = sbr.rel (0) target = $region5
    $region4: #{binary_conformer_forward.23} parent=1 // pred_region
      _
    $region5: #{binary_conformer_forward.23} parent=1 // pred_fallthru
      _
    // Predicated region
    $region6: #{binary_conformer_forward.23} parent=1 // pred_check
      _
    $region7: #{binary_conformer_forward.23} parent=1 // pred_check_branch
      %20 = sbr.rel (0) target = $region9
    $region8: #{binary_conformer_forward.23} parent=1 // pred_region
      _
    $region9: #{binary_conformer_forward.23} parent=1 // pred_fallthru
      _
    // Predicated region
    $region10: #{binary_conformer_forward.23} parent=1 // pred_check
      _
    $region11: #{binary_conformer_forward.23} parent=1 // pred_check_branch
      %22 = sbr.rel (0) target = $region13
    $region12: #{binary_conformer_forward.23} parent=1 // pred_region
      _
    $region13: #{binary_conformer_forward.23} parent=1 // pred_fallthru
      _
    // Predicated region
    $region14: #{binary_conformer_forward.23} parent=1 // pred_check
      _
    $region15: #{binary_conformer_forward.23} parent=1 // pred_check_branch
      %24 = sbr.rel (0) target = $region17
    $region16: #{binary_conformer_forward.23} parent=1 // pred_region
      _
    $region17: #{binary_conformer_forward.23} parent=1 // pred_fallthru
      _
    // Predicated region
    $region18: #{binary_conformer_forward.23} parent=1 // pred_check
      _
    $region19: #{binary_conformer_forward.23} parent=1 // pred_check_branch
      %26 = sbr.rel (0) target = $region21
    $region20: #{binary_conformer_forward.23} parent=1 // pred_region
      _
    $region21: #{binary_conformer_forward.23} parent=1 // pred_fallthru
      _
    // Predicated region
    $region22: #{binary_conformer_forward.23} parent=1 // pred_check
      _
    $region23: #{binary_conformer_forward.23} parent=1 // pred_check_branch
      %28 = sbr.rel (0) target = $region25
    $region24: #{binary_conformer_forward.23} parent=1 // pred_region
      _
    $region25: #{binary_conformer_forward.23} parent=1 // pred_fallthru
      _
    // Predicated region
    $region26: #{binary_conformer_forward.23} parent=1 // pred_check
      _
    $region27: #{binary_conformer_forward.23} parent=1 // pred_check_branch
      %30 = sbr.rel (0) target = $region29
    $region28: #{binary_conformer_forward.23} parent=1 // pred_region
      _
    $region29: #{binary_conformer_forward.23} parent=1 // pred_fallthru
      _
    // Predicated region
    $region30: #{binary_conformer_forward.23} parent=1 // pred_check
      _
    $region31: #{binary_conformer_forward.23} parent=1 // pred_check_branch
      %32 = sbr.rel (0) target = $region33
    $region32: #{binary_conformer_forward.23} parent=1 // pred_region
      _
    $region33: #{binary_conformer_forward.23} parent=1 // pred_fallthru
      _
    // Predicated region
    $region34: #{binary_conformer_forward.23} parent=1 // pred_check
      _
    $region35: #{binary_conformer_forward.23} parent=1 // pred_check_branch
      %34 = sbr.rel (0) target = $region37
    $region36: #{binary_conformer_forward.23} parent=1 // pred_region
      _
    $region37: #{binary_conformer_forward.23} parent=1 // pred_fallthru
      _
    // Predicated region
    $region38: #{binary_conformer_forward.23} parent=1 // pred_check
      _
    $region39: #{binary_conformer_forward.23} parent=1 // pred_check_branch
      %36 = sbr.rel (0) target = $region41
    $region40: #{binary_conformer_forward.23} parent=1 // pred_region
      _
    $region41: #{binary_conformer_forward.23} parent=1 // pred_fallthru
      _
    %v38 = vld [vmem:[%s0] sm:$0xff]
    %v39 = vld [vmem:[%s0 + $0x8] sm:$0xff]
    %v40 = vld [vmem:[%s1] sm:$0x1]
    %v41 = vld [vmem:[%s2] sm:$0x1]
    %vm42 = vcmask 261120
    %v43 = vsel %vm42, %v38, 0.0
    %44 = vadd.xlane.f32.xlu0 %v43
    %v45 = vpop.xlane.xlu0 %44
    %v46 = vsel %vm42, %v39, 0.0
    %47 = vadd.xlane.f32.xlu0 %v46
    %v48 = vpop.xlane.xlu0 %47
    %v49 = vrcp.pop 32.0
    %v50 = vmul.f32 32.0, %v49
    %v51 = vsub.f32 1.0, %v50
    %v52 = vmul.f32 %v49, %v51
    %v53 = vadd.f32 %v49, %v52
    %vm54 = vweird.f32 %v49
    %v55 = vsel %vm54, %v49, %v53
    %v56 = vmul.f32 %v45, %v55
    %v57 = vmul.f32 %v48, %v55
    %v58 = vsub.f32 %v38, %v56
    %v59 = vsub.f32 %v39, %v57
    %v60 = vmul.f32 %v58, %v58
    %v61 = vmul.f32 %v59, %v59
    %v62 = vsel %vm42, %v60, 0.0
    %63 = vadd.xlane.f32.xlu0 %v62
    %v64 = vpop.xlane.xlu0 %63
    %v65 = vsel %vm42, %v61, 0.0
    %66 = vadd.xlane.f32.xlu0 %v65
    %v67 = vpop.xlane.xlu0 %66
    %v68 = vmul.f32 %v64, %v55
    %v69 = vmul.f32 %v67, %v55
    %v70 = vadd.f32 %v68, 1e-05
    %v71 = vadd.f32 %v69, 1e-05
    %v72 = vrsqrt.pop %v70
    %v73 = vmul.f32 %v72, %v70
    %v74 = vmul.f32 %v73, %v72
    %v75 = vmul.f32 0.5, %v74
    %v76 = vsub.f32 1.5, %v75
    %v77 = vmul.f32 %v72, %v76
    %vm78 = vweird.f32 %v70
    %vm79 = vweird.f32 %v72
    %vm80 = vmor %vm78, %vm79
    %v81 = vsel %vm80, %v72, %v77
    %v82 = vrsqrt.pop %v71
    %v83 = vmul.f32 %v82, %v71
    %v84 = vmul.f32 %v83, %v82
    %v85 = vmul.f32 0.5, %v84
    %v86 = vsub.f32 1.5, %v85
    %v87 = vmul.f32 %v82, %v86
    %vm88 = vweird.f32 %v71
    %vm89 = vweird.f32 %v82
    %vm90 = vmor %vm88, %vm89
    %v91 = vsel %vm90, %v82, %v87
    %v92 = vmul.f32 %v58, %v81
    %v93 = vmul.f32 %v59, %v91
    %v95 = vperm.slane %v40, 0
    %v97 = vmul.f32 %v92, %v95
    %v98 = vmul.f32 %v93, %v95
    %v100 = vperm.slane %v41, 0
    %v102 = vadd.f32 %v97, %v100
    %v103 = vadd.f32 %v98, %v100
    %v104 = vpack.c.bf16 %v103, %v102
    %v105 = vld [vmem:[%s3] sm:$0xf]
    %v106 = vld [vmem:[%s3 + $0x4] sm:$0xf]
    %v107 = vld [vmem:[%s3 + $0x8] sm:$0xf]
    %v108 = vld [vmem:[%s3 + $0xc] sm:$0xf]
    %v109 = vld [vmem:[%s4] sm:$0x1]
    %v111 = vperm.slane %v109, 0
    %v117 = vunpack.c.l.b16 %v105
    %v118 = vunpack.c.l.b16 %v106
    %v119 = vunpack.c.l.b16 %v107
    %v120 = vunpack.c.l.b16 %v108
    %v121 = vpack.c.b16 %v118, %v117
    %v122 = vpack.c.b16 %v120, %v119
    %v126 = vsel %vm42, %v104, 0
    %128 = vmatpush.bf16.msra.mxu0 0
    %129 = vmatpush.bf16.msra.mxu0 0
    %130 = vmatpush.bf16.msra.mxu0 0
    %131 = vmatpush.bf16.msra.mxu0 0
    %132 = vmatpush.bf16.msra.mxu0 0
    %133 = vmatpush.bf16.msra.mxu0 0
    %134 = vmatpush.bf16.msra.mxu0 %v122
    %135 = vmatpush.bf16.msra.mxu0 %v121
    %136 = vmatmul.bf16.gmra.mxu0 %v126
    %v137 = vpop.f32.mrf.mxu0
    %v138 = vadd.f32 %v111, %v137
    %v139 = vpop.f32.mrf.mxu0
    %v140 = vadd.f32 %v111, %v139
    %141 = vdwg.mxu0
    %v142 = vxor.u32 %v138, 2147483648
    %v143 = vxor.u32 %v140, 2147483648
    %v144 = vmul.f32 %v142, 1.442695
    %v145 = vpow.pop %v144
    %v146 = vmul.f32 %v143, 1.442695
    %v147 = vpow.pop %v146
    %v148 = vadd.f32 %v145, 1.0
    %v149 = vadd.f32 %v147, 1.0
    %v150 = vrcp.pop %v148
    %v151 = vmul.f32 %v148, %v150
    %v152 = vsub.f32 1.0, %v151
    %v153 = vmul.f32 %v150, %v152
    %v154 = vadd.f32 %v150, %v153
    %vm155 = vweird.f32 %v148
    %vm156 = vweird.f32 %v150
    %vm157 = vmor %vm155, %vm156
    %v158 = vsel %vm157, %v150, %v154
    %v159 = vand.u32 2147483647, %v148
    %vm160 = vcmp.eq.f32.partialorder %v159, 8.507059e+37
    %v161 = vand.u32 %v148, 2147483648
    %v162 = vor.u32 1.1754944e-38, %v161
    %v163 = vsel %vm160, %v162, %v158
    %v164 = vmul.f32 1.0, %v163
    %v165 = vrcp.pop %v149
    %v166 = vmul.f32 %v149, %v165
    %v167 = vsub.f32 1.0, %v166
    %v168 = vmul.f32 %v165, %v167
    %v169 = vadd.f32 %v165, %v168
    %vm170 = vweird.f32 %v149
    %vm171 = vweird.f32 %v165
    %vm172 = vmor %vm170, %vm171
    %v173 = vsel %vm172, %v165, %v169
    %v174 = vand.u32 2147483647, %v149
    %vm175 = vcmp.eq.f32.partialorder %v174, 8.507059e+37
    %v176 = vand.u32 %v149, 2147483648
    %v177 = vor.u32 1.1754944e-38, %v176
    %v178 = vsel %vm175, %v177, %v173
    %v179 = vmul.f32 1.0, %v178
    %v180 = vmul.f32 %v138, %v164
    %v181 = vmul.f32 %v140, %v179
    %v182 = vpack.c.bf16 %v181, %v180
    %v183 = vld [vmem:[%s5] sm:$0xf]
    %v184 = vld [vmem:[%s5 + $0x4] sm:$0xf]
    %v185 = vld [vmem:[%s5 + $0x8] sm:$0xf]
    %v186 = vld [vmem:[%s5 + $0xc] sm:$0xf]
    %v187 = vld [vmem:[%s5 + $0x10] sm:$0xf]
    %v188 = vld [vmem:[%s5 + $0x14] sm:$0xf]
    %v189 = vld [vmem:[%s5 + $0x18] sm:$0xf]
    %v190 = vld [vmem:[%s5 + $0x1c] sm:$0xf]
    %v191 = vld [vmem:[%s5 + $0x20] sm:$0xf]
    %v192 = vld [vmem:[%s5 + $0x24] sm:$0xf]
    %v193 = vld [vmem:[%s5 + $0x28] sm:$0xf]
    %v194 = vld [vmem:[%s5 + $0x2c] sm:$0xf]
    %v195 = vld [vmem:[%s5 + $0x30] sm:$0xf]
    %v196 = vld [vmem:[%s5 + $0x34] sm:$0xf]
    %v197 = vld [vmem:[%s5 + $0x38] sm:$0xf]
    %v198 = vld [vmem:[%s5 + $0x3c] sm:$0xf]
    %v199 = vld [vmem:[%s6] sm:$0x1]
    %v201 = vperm.slane %v199, 0
    %v219 = vunpack.c.l.b16 %v183
    %v220 = vunpack.c.l.b16 %v184
    %v221 = vunpack.c.l.b16 %v185
    %v222 = vunpack.c.l.b16 %v186
    %v223 = vunpack.c.l.b16 %v187
    %v224 = vunpack.c.l.b16 %v188
    %v225 = vunpack.c.l.b16 %v189
    %v226 = vunpack.c.l.b16 %v190
    %v227 = vunpack.c.l.b16 %v191
    %v228 = vunpack.c.l.b16 %v192
    %v229 = vunpack.c.l.b16 %v193
    %v230 = vunpack.c.l.b16 %v194
    %v231 = vunpack.c.l.b16 %v195
    %v232 = vunpack.c.l.b16 %v196
    %v233 = vunpack.c.l.b16 %v197
    %v234 = vunpack.c.l.b16 %v198
    %v235 = vpack.c.b16 %v220, %v219
    %v236 = vpack.c.b16 %v222, %v221
    %v237 = vpack.c.b16 %v224, %v223
    %v238 = vpack.c.b16 %v226, %v225
    %v239 = vpack.c.b16 %v228, %v227
    %v240 = vpack.c.b16 %v230, %v229
    %v241 = vpack.c.b16 %v232, %v231
    %v242 = vpack.c.b16 %v234, %v233
    %251 = vmatpush.bf16.msra.mxu0 %v242
    %252 = vmatpush.bf16.msra.mxu0 %v241
    %253 = vmatpush.bf16.msra.mxu0 %v240
    %254 = vmatpush.bf16.msra.mxu0 %v239
    %255 = vmatpush.bf16.msra.mxu0 %v238
    %256 = vmatpush.bf16.msra.mxu0 %v237
    %257 = vmatpush.bf16.msra.mxu0 %v236
    %258 = vmatpush.bf16.msra.mxu0 %v235
    %259 = vmatmul.bf16.gmra.mxu0 %v182
    %v260 = vpop.f32.mrf.mxu0
    %v261 = vadd.f32 %v201, %v260
    %v262 = vpop.f32.mrf.mxu0
    %v263 = vadd.f32 %v201, %v262
    %264 = vdwg.mxu0
    %s265 = sld [smem:[#allocation2]]
    %s266 = smul.f32 %s265, 0.5
    %v267 = vstv %s266
    %v268 = vmul.f32 %v267, %v261
    %v269 = vmul.f32 %v267, %v263
    %v270 = vadd.f32 %v38, %v268
    %v271 = vadd.f32 %v39, %v269
    %v272 = vld [vmem:[%s7] sm:$0x1]
    %v273 = vld [vmem:[%s8] sm:$0x1]
    %v274 = vsel %vm42, %v270, 0.0
    %275 = vadd.xlane.f32.xlu0 %v274
    %v276 = vpop.xlane.xlu0 %275
    %v277 = vsel %vm42, %v271, 0.0
    %278 = vadd.xlane.f32.xlu0 %v277
    %v279 = vpop.xlane.xlu0 %278
    %v280 = vmul.f32 %v276, %v55
    %v281 = vmul.f32 %v279, %v55
    %v282 = vsub.f32 %v270, %v280
    %v283 = vsub.f32 %v271, %v281
    %v284 = vmul.f32 %v282, %v282
    %v285 = vmul.f32 %v283, %v283
    %v286 = vsel %vm42, %v284, 0.0
    %287 = vadd.xlane.f32.xlu0 %v286
    %v288 = vpop.xlane.xlu0 %287
    %v289 = vsel %vm42, %v285, 0.0
    %290 = vadd.xlane.f32.xlu0 %v289
    %v291 = vpop.xlane.xlu0 %290
    %v292 = vmul.f32 %v288, %v55
    %v293 = vmul.f32 %v291, %v55
    %v294 = vadd.f32 %v292, 1e-05
    %v295 = vadd.f32 %v293, 1e-05
    %v296 = vrsqrt.pop %v294
    %v297 = vmul.f32 %v296, %v294
    %v298 = vmul.f32 %v297, %v296
    %v299 = vmul.f32 0.5, %v298
    %v300 = vsub.f32 1.5, %v299
    %v301 = vmul.f32 %v296, %v300
    %vm302 = vweird.f32 %v294
    %vm303 = vweird.f32 %v296
    %vm304 = vmor %vm302, %vm303
    %v305 = vsel %vm304, %v296, %v301
    %v306 = vrsqrt.pop %v295
    %v307 = vmul.f32 %v306, %v295
    %v308 = vmul.f32 %v307, %v306
    %v309 = vmul.f32 0.5, %v308
    %v310 = vsub.f32 1.5, %v309
    %v311 = vmul.f32 %v306, %v310
    %vm312 = vweird.f32 %v295
    %vm313 = vweird.f32 %v306
    %vm314 = vmor %vm312, %vm313
    %v315 = vsel %vm314, %v306, %v311
    %v316 = vmul.f32 %v282, %v305
    %v317 = vmul.f32 %v283, %v315
    %v319 = vperm.slane %v272, 0
    %v321 = vmul.f32 %v316, %v319
    %v322 = vmul.f32 %v317, %v319
    %v324 = vperm.slane %v273, 0
    %v326 = vadd.f32 %v321, %v324
    %v327 = vadd.f32 %v322, %v324
    %328 = vst.msk [vmem:[#allocation3] sm:$0xff] %vm42, %v326
    %329 = vst.msk [vmem:[#allocation3 + $0x8] sm:$0xff] %vm42, %v327
    // Predicated region
    $region42: #{binary_conformer_forward.23} parent=1 // pred_check
      _
    $region43: #{binary_conformer_forward.23} parent=1 // pred_check_branch
      %331 = sbr.rel (0) target = $region45
    $region44: #{binary_conformer_forward.23} parent=1 // pred_region
      %333 = vsyncadd [#allocation4], 0
      %s334 = sshll.u32 [#allocation3], 4
      %s335 = int_to_ptr.vmem [resolvable:$true] %s334
      %s336 = sshll.u32 %s10, 4
      %s337 = int_to_ptr.hbm [resolvable:$true] %s336
      %342 = dma.vmem_to_hbm [thread:$0]  %s335, 256, %s337, [#allocation4], 128, 128, 8
    $region45: #{binary_conformer_forward.23} parent=1 // pred_fallthru
      _
    // Predicated region
    $region46: #{binary_conformer_forward.23} parent=1 // pred_check
      _
    $region47: #{binary_conformer_forward.23} parent=1 // pred_check_branch
      %344 = sbr.rel (0) target = $region49
    $region48: #{binary_conformer_forward.23} parent=1 // pred_region
      %346 = dma.done [#allocation4], 256
    $region49: #{binary_conformer_forward.23} parent=1 // pred_fallthru
      _
    %347 = vsyncpa [#allocation4], 1

// kernel: binary_conformer_forward.18
$region0: #{binary_conformer_forward.18}
  #allocation0 [shape = 'u32[]', space=smem, size = 0x4, offset = 0x4, fixed_abs, tag = 'smem constant byte address 0x4 - core index']
  #allocation1 [shape = 'u32[72,128]{1,0:T(1,128)}', space=vmem, size = 0x9000, scoped, tag = 'internal scratch']
  #allocation2 [shape = 'f32[1,1]{1,0:T(1,128)S(6)}', space=smem, size = 0x200, scoped, tag = 'scoped memory for binary_conformer_forward.18']
  %s0 = inlined_call_operand.vmem [shape: f32[16,32], index: 0, kind: input, shape index: {}]
  %s1 = inlined_call_operand.vmem [shape: f32[1,32], index: 1, kind: input, shape index: {}]
  %s2 = inlined_call_operand.vmem [shape: f32[1,32], index: 2, kind: input, shape index: {}]
  %s3 = inlined_call_operand.vmem [shape: bf16[32,128], index: 3, kind: input, shape index: {}]
  %s4 = inlined_call_operand.vmem [shape: f32[1,128], index: 4, kind: input, shape index: {}]
  %s5 = inlined_call_operand.vmem [shape: bf16[128,32], index: 5, kind: input, shape index: {}]
  %s6 = inlined_call_operand.vmem [shape: f32[1,32], index: 6, kind: input, shape index: {}]
  %s7 = inlined_call_operand.vmem [shape: f32[1,32], index: 7, kind: input, shape index: {}]
  %s8 = inlined_call_operand.vmem [shape: f32[1,32], index: 8, kind: input, shape index: {}]
  %s9 = inlined_call_operand.<no memory space> [shape: f32[1,1], index: 9, kind: input, shape index: {}]
  %s10 = inlined_call_operand.vmem [shape: f32[16,32], index: 10, kind: output, shape index: {}]
  %s11 = sld [smem:[#allocation0]]
  $region50: #{binary_conformer_forward.18} parent=0
    _
  %s13 = ssub.s32 1, %s11
  %s14 = scalar_select 0, %s13, %s11
  %15 = sst [smem:[#allocation2]] %s9
  // Predicated region
  $region2: #{binary_conformer_forward.18} parent=0 // pred_check
    _
  $region3: #{binary_conformer_forward.18} parent=0 // pred_check_branch
    %17 = sbr.rel (0) target = $region5
  $region4: #{binary_conformer_forward.18} parent=0 // pred_region
    _
  $region5: #{binary_conformer_forward.18} parent=0 // pred_fallthru
    _
  // Predicated region
  $region6: #{binary_conformer_forward.18} parent=0 // pred_check
    _
  $region7: #{binary_conformer_forward.18} parent=0 // pred_check_branch
    %19 = sbr.rel (0) target = $region9
  $region8: #{binary_conformer_forward.18} parent=0 // pred_region
    _
  $region9: #{binary_conformer_forward.18} parent=0 // pred_fallthru
    _
  // Predicated region
  $region10: #{binary_conformer_forward.18} parent=0 // pred_check
    _
  $region11: #{binary_conformer_forward.18} parent=0 // pred_check_branch
    %21 = sbr.rel (0) target = $region13
  $region12: #{binary_conformer_forward.18} parent=0 // pred_region
    _
  $region13: #{binary_conformer_forward.18} parent=0 // pred_fallthru
    _
  // Predicated region
  $region14: #{binary_conformer_forward.18} parent=0 // pred_check
    _
  $region15: #{binary_conformer_forward.18} parent=0 // pred_check_branch
    %23 = sbr.rel (0) target = $region17
  $region16: #{binary_conformer_forward.18} parent=0 // pred_region
    _
  $region17: #{binary_conformer_forward.18} parent=0 // pred_fallthru
    _
  // Predicated region
  $region18: #{binary_conformer_forward.18} parent=0 // pred_check
    _
  $region19: #{binary_conformer_forward.18} parent=0 // pred_check_branch
    %25 = sbr.rel (0) target = $region21
  $region20: #{binary_conformer_forward.18} parent=0 // pred_region
    _
  $region21: #{binary_conformer_forward.18} parent=0 // pred_fallthru
    _
  // Predicated region
  $region22: #{binary_conformer_forward.18} parent=0 // pred_check
    _
  $region23: #{binary_conformer_forward.18} parent=0 // pred_check_branch
    %27 = sbr.rel (0) target = $region25
  $region24: #{binary_conformer_forward.18} parent=0 // pred_region
    _
  $region25: #{binary_conformer_forward.18} parent=0 // pred_fallthru
    _
  // Predicated region
  $region26: #{binary_conformer_forward.18} parent=0 // pred_check
    _
  $region27: #{binary_conformer_forward.18} parent=0 // pred_check_branch
    %29 = sbr.rel (0) target = $region29
  $region28: #{binary_conformer_forward.18} parent=0 // pred_region
    _
  $region29: #{binary_conformer_forward.18} parent=0 // pred_fallthru
    _
  // Predicated region
  $region30: #{binary_conformer_forward.18} parent=0 // pred_check
    _
  $region31: #{binary_conformer_forward.18} parent=0 // pred_check_branch
    %31 = sbr.rel (0) target = $region33
  $region32: #{binary_conformer_forward.18} parent=0 // pred_region
    _
  $region33: #{binary_conformer_forward.18} parent=0 // pred_fallthru
    _
  // Predicated region
  $region34: #{binary_conformer_forward.18} parent=0 // pred_check
    _
  $region35: #{binary_conformer_forward.18} parent=0 // pred_check_branch
    %33 = sbr.rel (0) target = $region37
  $region36: #{binary_conformer_forward.18} parent=0 // pred_region
    _
  $region37: #{binary_conformer_forward.18} parent=0 // pred_fallthru
    _
  // Predicated region
  $region38: #{binary_conformer_forward.18} parent=0 // pred_check
    _
  $region39: #{binary_conformer_forward.18} parent=0 // pred_check_branch
    %35 = sbr.rel (0) target = $region41
  $region40: #{binary_conformer_forward.18} parent=0 // pred_region
    _
  $region41: #{binary_conformer_forward.18} parent=0 // pred_fallthru
    _
  %v37 = vld [vmem:[%s0] sm:$0xff]
  %v38 = vld [vmem:[%s0 + $0x8] sm:$0xff]
  %v39 = vld [vmem:[%s1] sm:$0x1]
  %v40 = vld [vmem:[%s2] sm:$0x1]
  %vm41 = vcmask 261120
  %v42 = vsel %vm41, %v37, 0.0
  %43 = vadd.xlane.f32.xlu0 %v42
  %v44 = vpop.xlane.xlu0 %43
  %v45 = vsel %vm41, %v38, 0.0
  %46 = vadd.xlane.f32.xlu0 %v45
  %v47 = vpop.xlane.xlu0 %46
  %v48 = vrcp.pop 32.0
  %v49 = vmul.f32 32.0, %v48
  %v50 = vsub.f32 1.0, %v49
  %v51 = vmul.f32 %v48, %v50
  %v52 = vadd.f32 %v48, %v51
  %vm53 = vweird.f32 %v48
  %v54 = vsel %vm53, %v48, %v52
  %v55 = vmul.f32 %v44, %v54
  %v56 = vmul.f32 %v47, %v54
  %v57 = vsub.f32 %v37, %v55
  %v58 = vsub.f32 %v38, %v56
  %v59 = vmul.f32 %v57, %v57
  %v60 = vmul.f32 %v58, %v58
  %v61 = vsel %vm41, %v59, 0.0
  %62 = vadd.xlane.f32.xlu0 %v61
  %v63 = vpop.xlane.xlu0 %62
  %v64 = vsel %vm41, %v60, 0.0
  %65 = vadd.xlane.f32.xlu0 %v64
  %v66 = vpop.xlane.xlu0 %65
  %v67 = vmul.f32 %v63, %v54
  %v68 = vmul.f32 %v66, %v54
  %v69 = vadd.f32 %v67, 1e-05
  %v70 = vadd.f32 %v68, 1e-05
  %v71 = vrsqrt.pop %v69
  %v72 = vmul.f32 %v71, %v69
  %v73 = vmul.f32 %v72, %v71
  %v74 = vmul.f32 0.5, %v73
  %v75 = vsub.f32 1.5, %v74
  %v76 = vmul.f32 %v71, %v75
  %vm77 = vweird.f32 %v69
  %vm78 = vweird.f32 %v71
  %vm79 = vmor %vm77, %vm78
  %v80 = vsel %vm79, %v71, %v76
  %v81 = vrsqrt.pop %v70
  %v82 = vmul.f32 %v81, %v70
  %v83 = vmul.f32 %v82, %v81
  %v84 = vmul.f32 0.5, %v83
  %v85 = vsub.f32 1.5, %v84
  %v86 = vmul.f32 %v81, %v85
  %vm87 = vweird.f32 %v70
  %vm88 = vweird.f32 %v81
  %vm89 = vmor %vm87, %vm88
  %v90 = vsel %vm89, %v81, %v86
  %v91 = vmul.f32 %v57, %v80
  %v92 = vmul.f32 %v58, %v90
  %v94 = vperm.slane %v39, 0
  %v96 = vmul.f32 %v91, %v94
  %v97 = vmul.f32 %v92, %v94
  %v99 = vperm.slane %v40, 0
  %v101 = vadd.f32 %v96, %v99
  %v102 = vadd.f32 %v97, %v99
  %v103 = vpack.c.bf16 %v102, %v101
  %v104 = vld [vmem:[%s3] sm:$0xf]
  %v105 = vld [vmem:[%s3 + $0x4] sm:$0xf]
  %v106 = vld [vmem:[%s3 + $0x8] sm:$0xf]
  %v107 = vld [vmem:[%s3 + $0xc] sm:$0xf]
  %v108 = vld [vmem:[%s4] sm:$0x1]
  %v110 = vperm.slane %v108, 0
  %v116 = vunpack.c.l.b16 %v104
  %v117 = vunpack.c.l.b16 %v105
  %v118 = vunpack.c.l.b16 %v106
  %v119 = vunpack.c.l.b16 %v107
  %v120 = vpack.c.b16 %v117, %v116
  %v121 = vpack.c.b16 %v119, %v118
  %v125 = vsel %vm41, %v103, 0
  %127 = vmatpush.bf16.msra.mxu0 0
  %128 = vmatpush.bf16.msra.mxu0 0
  %129 = vmatpush.bf16.msra.mxu0 0
  %130 = vmatpush.bf16.msra.mxu0 0
  %131 = vmatpush.bf16.msra.mxu0 0
  %132 = vmatpush.bf16.msra.mxu0 0
  %133 = vmatpush.bf16.msra.mxu0 %v121
  %134 = vmatpush.bf16.msra.mxu0 %v120
  %135 = vmatmul.bf16.gmra.mxu0 %v125
  %v136 = vpop.f32.mrf.mxu0
  %v137 = vadd.f32 %v110, %v136
  %v138 = vpop.f32.mrf.mxu0
  %v139 = vadd.f32 %v110, %v138
  %140 = vdwg.mxu0
  %v141 = vxor.u32 %v137, 2147483648
  %v142 = vxor.u32 %v139, 2147483648
  %v143 = vmul.f32 %v141, 1.442695
  %v144 = vpow.pop %v143
  %v145 = vmul.f32 %v142, 1.442695
  %v146 = vpow.pop %v145
  %v147 = vadd.f32 %v144, 1.0
  %v148 = vadd.f32 %v146, 1.0
  %v149 = vrcp.pop %v147
  %v150 = vmul.f32 %v147, %v149
  %v151 = vsub.f32 1.0, %v150
  %v152 = vmul.f32 %v149, %v151
  %v153 = vadd.f32 %v149, %v152
  %vm154 = vweird.f32 %v147
  %vm155 = vweird.f32 %v149
  %vm156 = vmor %vm154, %vm155
  %v157 = vsel %vm156, %v149, %v153
  %v158 = vand.u32 2147483647, %v147
  %vm159 = vcmp.eq.f32.partialorder %v158, 8.507059e+37
  %v160 = vand.u32 %v147, 2147483648
  %v161 = vor.u32 1.1754944e-38, %v160
  %v162 = vsel %vm159, %v161, %v157
  %v163 = vmul.f32 1.0, %v162
  %v164 = vrcp.pop %v148
  %v165 = vmul.f32 %v148, %v164
  %v166 = vsub.f32 1.0, %v165
  %v167 = vmul.f32 %v164, %v166
  %v168 = vadd.f32 %v164, %v167
  %vm169 = vweird.f32 %v148
  %vm170 = vweird.f32 %v164
  %vm171 = vmor %vm169, %vm170
  %v172 = vsel %vm171, %v164, %v168
  %v173 = vand.u32 2147483647, %v148
  %vm174 = vcmp.eq.f32.partialorder %v173, 8.507059e+37
  %v175 = vand.u32 %v148, 2147483648
  %v176 = vor.u32 1.1754944e-38, %v175
  %v177 = vsel %vm174, %v176, %v172
  %v178 = vmul.f32 1.0, %v177
  %v179 = vmul.f32 %v137, %v163
  %v180 = vmul.f32 %v139, %v178
  %v181 = vpack.c.bf16 %v180, %v179
  %v182 = vld [vmem:[%s5] sm:$0xf]
  %v183 = vld [vmem:[%s5 + $0x4] sm:$0xf]
  %v184 = vld [vmem:[%s5 + $0x8] sm:$0xf]
  %v185 = vld [vmem:[%s5 + $0xc] sm:$0xf]
  %v186 = vld [vmem:[%s5 + $0x10] sm:$0xf]
  %v187 = vld [vmem:[%s5 + $0x14] sm:$0xf]
  %v188 = vld [vmem:[%s5 + $0x18] sm:$0xf]
  %v189 = vld [vmem:[%s5 + $0x1c] sm:$0xf]
  %v190 = vld [vmem:[%s5 + $0x20] sm:$0xf]
  %v191 = vld [vmem:[%s5 + $0x24] sm:$0xf]
  %v192 = vld [vmem:[%s5 + $0x28] sm:$0xf]
  %v193 = vld [vmem:[%s5 + $0x2c] sm:$0xf]
  %v194 = vld [vmem:[%s5 + $0x30] sm:$0xf]
  %v195 = vld [vmem:[%s5 + $0x34] sm:$0xf]
  %v196 = vld [vmem:[%s5 + $0x38] sm:$0xf]
  %v197 = vld [vmem:[%s5 + $0x3c] sm:$0xf]
  %v198 = vld [vmem:[%s6] sm:$0x1]
  %v200 = vperm.slane %v198, 0
  %v218 = vunpack.c.l.b16 %v182
  %v219 = vunpack.c.l.b16 %v183
  %v220 = vunpack.c.l.b16 %v184
  %v221 = vunpack.c.l.b16 %v185
  %v222 = vunpack.c.l.b16 %v186
  %v223 = vunpack.c.l.b16 %v187
  %v224 = vunpack.c.l.b16 %v188
  %v225 = vunpack.c.l.b16 %v189
  %v226 = vunpack.c.l.b16 %v190
  %v227 = vunpack.c.l.b16 %v191
  %v228 = vunpack.c.l.b16 %v192
  %v229 = vunpack.c.l.b16 %v193
  %v230 = vunpack.c.l.b16 %v194
  %v231 = vunpack.c.l.b16 %v195
  %v232 = vunpack.c.l.b16 %v196
  %v233 = vunpack.c.l.b16 %v197
  %v234 = vpack.c.b16 %v219, %v218
  %v235 = vpack.c.b16 %v221, %v220
  %v236 = vpack.c.b16 %v223, %v222
  %v237 = vpack.c.b16 %v225, %v224
  %v238 = vpack.c.b16 %v227, %v226
  %v239 = vpack.c.b16 %v229, %v228
  %v240 = vpack.c.b16 %v231, %v230
  %v241 = vpack.c.b16 %v233, %v232
  %250 = vmatpush.bf16.msra.mxu0 %v241
  %251 = vmatpush.bf16.msra.mxu0 %v240
  %252 = vmatpush.bf16.msra.mxu0 %v239
  %253 = vmatpush.bf16.msra.mxu0 %v238
  %254 = vmatpush.bf16.msra.mxu0 %v237
  %255 = vmatpush.bf16.msra.mxu0 %v236
  %256 = vmatpush.bf16.msra.mxu0 %v235
  %257 = vmatpush.bf16.msra.mxu0 %v234
  %258 = vmatmul.bf16.gmra.mxu0 %v181
  %v259 = vpop.f32.mrf.mxu0
  %v260 = vadd.f32 %v200, %v259
  %v261 = vpop.f32.mrf.mxu0
  %v262 = vadd.f32 %v200, %v261
  %263 = vdwg.mxu0
  %s264 = sld [smem:[#allocation2]]
  %s265 = smul.f32 %s264, 0.5
  %v266 = vstv %s265
  %v267 = vmul.f32 %v266, %v260
  %v268 = vmul.f32 %v266, %v262
  %v269 = vadd.f32 %v37, %v267
  %v270 = vadd.f32 %v38, %v268
  %v271 = vld [vmem:[%s7] sm:$0x1]
  %v272 = vld [vmem:[%s8] sm:$0x1]
  %v273 = vsel %vm41, %v269, 0.0
  %274 = vadd.xlane.f32.xlu0 %v273
  %v275 = vpop.xlane.xlu0 %274
  %v276 = vsel %vm41, %v270, 0.0
  %277 = vadd.xlane.f32.xlu0 %v276
  %v278 = vpop.xlane.xlu0 %277
  %v279 = vmul.f32 %v275, %v54
  %v280 = vmul.f32 %v278, %v54
  %v281 = vsub.f32 %v269, %v279
  %v282 = vsub.f32 %v270, %v280
  %v283 = vmul.f32 %v281, %v281
  %v284 = vmul.f32 %v282, %v282
  %v285 = vsel %vm41, %v283, 0.0
  %286 = vadd.xlane.f32.xlu0 %v285
  %v287 = vpop.xlane.xlu0 %286
  %v288 = vsel %vm41, %v284, 0.0
  %289 = vadd.xlane.f32.xlu0 %v288
  %v290 = vpop.xlane.xlu0 %289
  %v291 = vmul.f32 %v287, %v54
  %v292 = vmul.f32 %v290, %v54
  %v293 = vadd.f32 %v291, 1e-05
  %v294 = vadd.f32 %v292, 1e-05
  %v295 = vrsqrt.pop %v293
  %v296 = vmul.f32 %v295, %v293
  %v297 = vmul.f32 %v296, %v295
  %v298 = vmul.f32 0.5, %v297
  %v299 = vsub.f32 1.5, %v298
  %v300 = vmul.f32 %v295, %v299
  %vm301 = vweird.f32 %v293
  %vm302 = vweird.f32 %v295
  %vm303 = vmor %vm301, %vm302
  %v304 = vsel %vm303, %v295, %v300
  %v305 = vrsqrt.pop %v294
  %v306 = vmul.f32 %v305, %v294
  %v307 = vmul.f32 %v306, %v305
  %v308 = vmul.f32 0.5, %v307
  %v309 = vsub.f32 1.5, %v308
  %v310 = vmul.f32 %v305, %v309
  %vm311 = vweird.f32 %v294
  %vm312 = vweird.f32 %v305
  %vm313 = vmor %vm311, %vm312
  %v314 = vsel %vm313, %v305, %v310
  %v315 = vmul.f32 %v281, %v304
  %v316 = vmul.f32 %v282, %v314
  %v318 = vperm.slane %v271, 0
  %v320 = vmul.f32 %v315, %v318
  %v321 = vmul.f32 %v316, %v318
  %v323 = vperm.slane %v272, 0
  %v325 = vadd.f32 %v320, %v323
  %v326 = vadd.f32 %v321, %v323
  %327 = vst.msk [vmem:[%s10] sm:$0xff] %vm41, %v325
  %328 = vst.msk [vmem:[%s10 + $0x8] sm:$0xff] %vm41, %v326
  // Predicated region
  $region42: #{binary_conformer_forward.18} parent=0 // pred_check
    _
  $region43: #{binary_conformer_forward.18} parent=0 // pred_check_branch
    %330 = sbr.rel (0) target = $region45
  $region44: #{binary_conformer_forward.18} parent=0 // pred_region
    _
  $region45: #{binary_conformer_forward.18} parent=0 // pred_fallthru
    _
  // Predicated region
  $region46: #{binary_conformer_forward.18} parent=0 // pred_check
    _
  $region47: #{binary_conformer_forward.18} parent=0 // pred_check_branch
    %332 = sbr.rel (0) target = $region49
  $region48: #{binary_conformer_forward.18} parent=0 // pred_region
    _
  $region49: #{binary_conformer_forward.18} parent=0 // pred_fallthru
    _

// kernel: binary_conformer_forward.17
$region0: #{binary_conformer_forward.17}
  #allocation0 [shape = 'u32[]', space=smem, size = 0x4, offset = 0x4, fixed_abs, tag = 'smem constant byte address 0x4 - core index']
  #allocation1 [shape = 'u32[72,128]{1,0:T(1,128)}', space=vmem, size = 0x9000, scoped, tag = 'internal scratch']
  #allocation2 [shape = 'f32[1,1]{1,0:T(1,128)S(6)}', space=smem, size = 0x200, scoped, tag = 'scoped memory for binary_conformer_forward.17']
  %s0 = inlined_call_operand.vmem [shape: f32[2,8,32], index: 0, kind: input, shape index: {}]
  %s1 = inlined_call_operand.vmem [shape: f32[1,32], index: 1, kind: input, shape index: {}]
  %s2 = inlined_call_operand.vmem [shape: f32[1,32], index: 2, kind: input, shape index: {}]
  %s3 = inlined_call_operand.vmem [shape: bf16[32,64], index: 3, kind: input, shape index: {}]
  %s4 = inlined_call_operand.vmem [shape: f32[1,64], index: 4, kind: input, shape index: {}]
  %s5 = inlined_call_operand.vmem [shape: f32[7,32], index: 5, kind: input, shape index: {}]
  %s6 = inlined_call_operand.vmem [shape: f32[1,32], index: 6, kind: input, shape index: {}]
  %s7 = inlined_call_operand.vmem [shape: f32[1,32], index: 7, kind: input, shape index: {}]
  %s8 = inlined_call_operand.vmem [shape: f32[1,32], index: 8, kind: input, shape index: {}]
  %s9 = inlined_call_operand.vmem [shape: f32[1,32], index: 9, kind: input, shape index: {}]
  %s10 = inlined_call_operand.vmem [shape: bf16[32,32], index: 10, kind: input, shape index: {}]
  %s11 = inlined_call_operand.vmem [shape: f32[1,32], index: 11, kind: input, shape index: {}]
  %s12 = inlined_call_operand.<no memory space> [shape: f32[1,1], index: 12, kind: input, shape index: {}]
  %s13 = inlined_call_operand.vmem [shape: f32[2,8,32], index: 13, kind: output, shape index: {}]
  %s14 = sld [smem:[#allocation0]]
  $region85: #{binary_conformer_forward.17} parent=0
    _
  %s16 = ssub.s32 1, %s14
  %s17 = scalar_select 0, %s16, %s14
  %18 = sst [smem:[#allocation2]] %s12
  loop: start=0, step=1, limit=4
  $region2: #{binary_conformer_forward.17} parent=0 // loop_pre_header
    _
  $region3: #{binary_conformer_forward.17} parent=0 // loop_header
    %s20 = sphi 0, %s24
    %p21 = scmp.ge.s32.totalorder %s20, 4
    %s30 = sphi 0, %s32
    %s33 = sphi 0, %s30
    %s34 = sphi 0, %s33
    %s50 = sphi 0, %s34
    %s54 = sphi 0, %s54
    %s56 = sphi 0, %s54
    %s57 = sphi 0, %s56
    %s71 = sphi 0, %s57
    %s75 = sphi 0, %s75
    %s77 = sphi 0, %s75
    %s78 = sphi 0, %s77
    %s92 = sphi 0, %s78
    %s96 = sphi 0, %s96
    %s98 = sphi 0, %s96
    %s99 = sphi 0, %s98
    %s113 = sphi 0, %s99
    %s117 = sphi 0, %s117
    %s119 = sphi 0, %s117
    %s120 = sphi 0, %s119
    %s134 = sphi 0, %s120
    %s138 = sphi 0, %s138
    %s140 = sphi 0, %s138
    %s141 = sphi 0, %s140
    %s155 = sphi 0, %s141
    %s159 = sphi 0, %s159
    %s161 = sphi 0, %s159
    %s162 = sphi 0, %s161
    %s176 = sphi 0, %s162
    %s180 = sphi 0, %s180
    %s182 = sphi 0, %s180
    %s183 = sphi 0, %s182
    %s197 = sphi 0, %s183
    %s201 = sphi 0, %s201
    %s203 = sphi 0, %s201
    %s204 = sphi 0, %s203
    %s218 = sphi 0, %s204
    %s222 = sphi 0, %s222
    %s224 = sphi 0, %s222
    %s225 = sphi 0, %s224
    %s239 = sphi 0, %s225
    %s243 = sphi 0, %s243
    %s245 = sphi 0, %s243
    %s246 = sphi 0, %s245
    %s260 = sphi 0, %s246
    %s264 = sphi 0, %s264
    %s266 = sphi 0, %s264
    %s267 = sphi 0, %s266
    %s281 = sphi 0, %s267
    %s285 = sphi 0, %s285
    %s287 = sphi 0, %s285
    %s288 = sphi 0, %s287
    %s302 = sphi 0, %s288
    %s308 = sphi 0, %s310
    %s311 = sphi 0, %s308
    %s312 = sphi 0, %s311
    %s328 = sphi 0, %s312
  $region4: #{binary_conformer_forward.17} parent=0 // loop_header_branch
    %23 = sbr.rel (%p21) target = $region8
  $region5: #{binary_conformer_forward.17} parent=0 // loop_body
    %s25 = ssub.s32 %s20, 1
    %s26 = ssub.s32 %s20, 2
    %s27 = sadd.s32 %s20, 1
    %s28 = ssub.s32 %s20, %s27
    %p29 = scmp.eq.s32.totalorder %s28, 0
    %s31 = sadd.s32 %s30, 1
    %s32 = scalar_select %p29, %s30, %s31
    %p35 = pneg %p29
    %p36 = scmp.eq.s32.totalorder %s20, 1
    %p37 = por %p35, %p36
    %p38 = scmp.ne.s32.totalorder %s30, %s33
    %p39 = scmp.eq.s32.totalorder %s20, 0
    %p40 = por %p38, %p39
    %p41 = scmp.ne.s32.totalorder %s30, %s33
    %p42 = scmp.eq.s32.totalorder %s25, 1
    %p43 = por %p41, %p42
    %p44 = scmp.ne.s32.totalorder %s33, %s34
    %p45 = scmp.eq.s32.totalorder %s25, 0
    %p46 = por %p44, %p45
    %p47 = scmp.ne.s32.totalorder %s33, %s34
    %p48 = scmp.eq.s32.totalorder %s26, 1
    %p49 = por %p47, %p48
    %p51 = scmp.ne.s32.totalorder %s34, %s50
    %p52 = scmp.eq.s32.totalorder %s26, 0
    %p53 = por %p51, %p52
    %s55 = sadd.s32 %s54, 1
    %p58 = scmp.eq.s32.totalorder %s20, 1
    %p59 = scmp.ne.s32.totalorder %s54, %s56
    %p60 = scmp.eq.s32.totalorder %s20, 0
    %p61 = por %p59, %p60
    %p62 = scmp.ne.s32.totalorder %s54, %s56
    %p63 = scmp.eq.s32.totalorder %s25, 1
    %p64 = por %p62, %p63
    %p65 = scmp.ne.s32.totalorder %s56, %s57
    %p66 = scmp.eq.s32.totalorder %s25, 0
    %p67 = por %p65, %p66
    %p68 = scmp.ne.s32.totalorder %s56, %s57
    %p69 = scmp.eq.s32.totalorder %s26, 1
    %p70 = por %p68, %p69
    %p72 = scmp.ne.s32.totalorder %s57, %s71
    %p73 = scmp.eq.s32.totalorder %s26, 0
    %p74 = por %p72, %p73
    %s76 = sadd.s32 %s75, 1
    %p79 = scmp.eq.s32.totalorder %s20, 1
    %p80 = scmp.ne.s32.totalorder %s75, %s77
    %p81 = scmp.eq.s32.totalorder %s20, 0
    %p82 = por %p80, %p81
    %p83 = scmp.ne.s32.totalorder %s75, %s77
    %p84 = scmp.eq.s32.totalorder %s25, 1
    %p85 = por %p83, %p84
    %p86 = scmp.ne.s32.totalorder %s77, %s78
    %p87 = scmp.eq.s32.totalorder %s25, 0
    %p88 = por %p86, %p87
    %p89 = scmp.ne.s32.totalorder %s77, %s78
    %p90 = scmp.eq.s32.totalorder %s26, 1
    %p91 = por %p89, %p90
    %p93 = scmp.ne.s32.totalorder %s78, %s92
    %p94 = scmp.eq.s32.totalorder %s26, 0
    %p95 = por %p93, %p94
    %s97 = sadd.s32 %s96, 1
    %p100 = scmp.eq.s32.totalorder %s20, 1
    %p101 = scmp.ne.s32.totalorder %s96, %s98
    %p102 = scmp.eq.s32.totalorder %s20, 0
    %p103 = por %p101, %p102
    %p104 = scmp.ne.s32.totalorder %s96, %s98
    %p105 = scmp.eq.s32.totalorder %s25, 1
    %p106 = por %p104, %p105
    %p107 = scmp.ne.s32.totalorder %s98, %s99
    %p108 = scmp.eq.s32.totalorder %s25, 0
    %p109 = por %p107, %p108
    %p110 = scmp.ne.s32.totalorder %s98, %s99
    %p111 = scmp.eq.s32.totalorder %s26, 1
    %p112 = por %p110, %p111
    %p114 = scmp.ne.s32.totalorder %s99, %s113
    %p115 = scmp.eq.s32.totalorder %s26, 0
    %p116 = por %p114, %p115
    %s118 = sadd.s32 %s117, 1
    %p121 = scmp.eq.s32.totalorder %s20, 1
    %p122 = scmp.ne.s32.totalorder %s117, %s119
    %p123 = scmp.eq.s32.totalorder %s20, 0
    %p124 = por %p122, %p123
    %p125 = scmp.ne.s32.totalorder %s117, %s119
    %p126 = scmp.eq.s32.totalorder %s25, 1
    %p127 = por %p125, %p126
    %p128 = scmp.ne.s32.totalorder %s119, %s120
    %p129 = scmp.eq.s32.totalorder %s25, 0
    %p130 = por %p128, %p129
    %p131 = scmp.ne.s32.totalorder %s119, %s120
    %p132 = scmp.eq.s32.totalorder %s26, 1
    %p133 = por %p131, %p132
    %p135 = scmp.ne.s32.totalorder %s120, %s134
    %p136 = scmp.eq.s32.totalorder %s26, 0
    %p137 = por %p135, %p136
    %s139 = sadd.s32 %s138, 1
    %p142 = scmp.eq.s32.totalorder %s20, 1
    %p143 = scmp.ne.s32.totalorder %s138, %s140
    %p144 = scmp.eq.s32.totalorder %s20, 0
    %p145 = por %p143, %p144
    %p146 = scmp.ne.s32.totalorder %s138, %s140
    %p147 = scmp.eq.s32.totalorder %s25, 1
    %p148 = por %p146, %p147
    %p149 = scmp.ne.s32.totalorder %s140, %s141
    %p150 = scmp.eq.s32.totalorder %s25, 0
    %p151 = por %p149, %p150
    %p152 = scmp.ne.s32.totalorder %s140, %s141
    %p153 = scmp.eq.s32.totalorder %s26, 1
    %p154 = por %p152, %p153
    %p156 = scmp.ne.s32.totalorder %s141, %s155
    %p157 = scmp.eq.s32.totalorder %s26, 0
    %p158 = por %p156, %p157
    %s160 = sadd.s32 %s159, 1
    %p163 = scmp.eq.s32.totalorder %s20, 1
    %p164 = scmp.ne.s32.totalorder %s159, %s161
    %p165 = scmp.eq.s32.totalorder %s20, 0
    %p166 = por %p164, %p165
    %p167 = scmp.ne.s32.totalorder %s159, %s161
    %p168 = scmp.eq.s32.totalorder %s25, 1
    %p169 = por %p167, %p168
    %p170 = scmp.ne.s32.totalorder %s161, %s162
    %p171 = scmp.eq.s32.totalorder %s25, 0
    %p172 = por %p170, %p171
    %p173 = scmp.ne.s32.totalorder %s161, %s162
    %p174 = scmp.eq.s32.totalorder %s26, 1
    %p175 = por %p173, %p174
    %p177 = scmp.ne.s32.totalorder %s162, %s176
    %p178 = scmp.eq.s32.totalorder %s26, 0
    %p179 = por %p177, %p178
    %s181 = sadd.s32 %s180, 1
    %p184 = scmp.eq.s32.totalorder %s20, 1
    %p185 = scmp.ne.s32.totalorder %s180, %s182
    %p186 = scmp.eq.s32.totalorder %s20, 0
    %p187 = por %p185, %p186
    %p188 = scmp.ne.s32.totalorder %s180, %s182
    %p189 = scmp.eq.s32.totalorder %s25, 1
    %p190 = por %p188, %p189
    %p191 = scmp.ne.s32.totalorder %s182, %s183
    %p192 = scmp.eq.s32.totalorder %s25, 0
    %p193 = por %p191, %p192
    %p194 = scmp.ne.s32.totalorder %s182, %s183
    %p195 = scmp.eq.s32.totalorder %s26, 1
    %p196 = por %p194, %p195
    %p198 = scmp.ne.s32.totalorder %s183, %s197
    %p199 = scmp.eq.s32.totalorder %s26, 0
    %p200 = por %p198, %p199
    %s202 = sadd.s32 %s201, 1
    %p205 = scmp.eq.s32.totalorder %s20, 1
    %p206 = scmp.ne.s32.totalorder %s201, %s203
    %p207 = scmp.eq.s32.totalorder %s20, 0
    %p208 = por %p206, %p207
    %p209 = scmp.ne.s32.totalorder %s201, %s203
    %p210 = scmp.eq.s32.totalorder %s25, 1
    %p211 = por %p209, %p210
    %p212 = scmp.ne.s32.totalorder %s203, %s204
    %p213 = scmp.eq.s32.totalorder %s25, 0
    %p214 = por %p212, %p213
    %p215 = scmp.ne.s32.totalorder %s203, %s204
    %p216 = scmp.eq.s32.totalorder %s26, 1
    %p217 = por %p215, %p216
    %p219 = scmp.ne.s32.totalorder %s204, %s218
    %p220 = scmp.eq.s32.totalorder %s26, 0
    %p221 = por %p219, %p220
    %s223 = sadd.s32 %s222, 1
    %p226 = scmp.eq.s32.totalorder %s20, 1
    %p227 = scmp.ne.s32.totalorder %s222, %s224
    %p228 = scmp.eq.s32.totalorder %s20, 0
    %p229 = por %p227, %p228
    %p230 = scmp.ne.s32.totalorder %s222, %s224
    %p231 = scmp.eq.s32.totalorder %s25, 1
    %p232 = por %p230, %p231
    %p233 = scmp.ne.s32.totalorder %s224, %s225
    %p234 = scmp.eq.s32.totalorder %s25, 0
    %p235 = por %p233, %p234
    %p236 = scmp.ne.s32.totalorder %s224, %s225
    %p237 = scmp.eq.s32.totalorder %s26, 1
    %p238 = por %p236, %p237
    %p240 = scmp.ne.s32.totalorder %s225, %s239
    %p241 = scmp.eq.s32.totalorder %s26, 0
    %p242 = por %p240, %p241
    %s244 = sadd.s32 %s243, 1
    %p247 = scmp.eq.s32.totalorder %s20, 1
    %p248 = scmp.ne.s32.totalorder %s243, %s245
    %p249 = scmp.eq.s32.totalorder %s20, 0
    %p250 = por %p248, %p249
    %p251 = scmp.ne.s32.totalorder %s243, %s245
    %p252 = scmp.eq.s32.totalorder %s25, 1
    %p253 = por %p251, %p252
    %p254 = scmp.ne.s32.totalorder %s245, %s246
    %p255 = scmp.eq.s32.totalorder %s25, 0
    %p256 = por %p254, %p255
    %p257 = scmp.ne.s32.totalorder %s245, %s246
    %p258 = scmp.eq.s32.totalorder %s26, 1
    %p259 = por %p257, %p258
    %p261 = scmp.ne.s32.totalorder %s246, %s260
    %p262 = scmp.eq.s32.totalorder %s26, 0
    %p263 = por %p261, %p262
    %s265 = sadd.s32 %s264, 1
    %p268 = scmp.eq.s32.totalorder %s20, 1
    %p269 = scmp.ne.s32.totalorder %s264, %s266
    %p270 = scmp.eq.s32.totalorder %s20, 0
    %p271 = por %p269, %p270
    %p272 = scmp.ne.s32.totalorder %s264, %s266
    %p273 = scmp.eq.s32.totalorder %s25, 1
    %p274 = por %p272, %p273
    %p275 = scmp.ne.s32.totalorder %s266, %s267
    %p276 = scmp.eq.s32.totalorder %s25, 0
    %p277 = por %p275, %p276
    %p278 = scmp.ne.s32.totalorder %s266, %s267
    %p279 = scmp.eq.s32.totalorder %s26, 1
    %p280 = por %p278, %p279
    %p282 = scmp.ne.s32.totalorder %s267, %s281
    %p283 = scmp.eq.s32.totalorder %s26, 0
    %p284 = por %p282, %p283
    %s286 = sadd.s32 %s285, 1
    %p289 = scmp.eq.s32.totalorder %s20, 1
    %p290 = scmp.ne.s32.totalorder %s285, %s287
    %p291 = scmp.eq.s32.totalorder %s20, 0
    %p292 = por %p290, %p291
    %p293 = scmp.ne.s32.totalorder %s285, %s287
    %p294 = scmp.eq.s32.totalorder %s25, 1
    %p295 = por %p293, %p294
    %p296 = scmp.ne.s32.totalorder %s287, %s288
    %p297 = scmp.eq.s32.totalorder %s25, 0
    %p298 = por %p296, %p297
    %p299 = scmp.ne.s32.totalorder %s287, %s288
    %p300 = scmp.eq.s32.totalorder %s26, 1
    %p301 = por %p299, %p300
    %p303 = scmp.ne.s32.totalorder %s288, %s302
    %p304 = scmp.eq.s32.totalorder %s26, 0
    %p305 = por %p303, %p304
    %s306 = ssub.s32 %s20, %s27
    %p307 = scmp.eq.s32.totalorder %s306, 0
    %s309 = sadd.s32 %s308, 1
    %s310 = scalar_select %p307, %s308, %s309
    %p313 = pneg %p307
    %p314 = scmp.eq.s32.totalorder %s20, 1
    %p315 = por %p313, %p314
    %p316 = scmp.ne.s32.totalorder %s308, %s311
    %p317 = scmp.eq.s32.totalorder %s20, 0
    %p318 = por %p316, %p317
    %p319 = scmp.ne.s32.totalorder %s308, %s311
    %p320 = scmp.eq.s32.totalorder %s25, 1
    %p321 = por %p319, %p320
    %p322 = scmp.ne.s32.totalorder %s311, %s312
    %p323 = scmp.eq.s32.totalorder %s25, 0
    %p324 = por %p322, %p323
    %p325 = scmp.ne.s32.totalorder %s311, %s312
    %p326 = scmp.eq.s32.totalorder %s26, 1
    %p327 = por %p325, %p326
    %p329 = scmp.ne.s32.totalorder %s312, %s328
    %p330 = scmp.eq.s32.totalorder %s26, 0
    %p331 = por %p329, %p330
    %p332 = scmp.le.s32.totalorder 1, %s20
    %p333 = scmp.lt.s32.totalorder %s20, 3
    %p334 = pnand %p332, %p333
    %p335 = pneg %p334
    // Predicated region
    $region9: #{binary_conformer_forward.17} parent=5 // pred_check
      _
    $region10: #{binary_conformer_forward.17} parent=5 // pred_check_branch
      %337 = sbr.rel (%p334) target = $region12
    $region11: #{binary_conformer_forward.17} parent=5 // pred_region
      %s338 = ssub.s32 %s20, 1
      // Predicated region
      $region13: #{binary_conformer_forward.17} parent=11 // pred_check
        %p339 = pneg %p67
      $region14: #{binary_conformer_forward.17} parent=11 // pred_check_branch
        %341 = sbr.rel (%p339) target = $region16
      $region15: #{binary_conformer_forward.17} parent=11 // pred_region
        _
      $region16: #{binary_conformer_forward.17} parent=11 // pred_fallthru
        _
      // Predicated region
      $region17: #{binary_conformer_forward.17} parent=11 // pred_check
        %p342 = pneg %p88
      $region18: #{binary_conformer_forward.17} parent=11 // pred_check_branch
        %344 = sbr.rel (%p342) target = $region20
      $region19: #{binary_conformer_forward.17} parent=11 // pred_region
        _
      $region20: #{binary_conformer_forward.17} parent=11 // pred_fallthru
        _
      // Predicated region
      $region21: #{binary_conformer_forward.17} parent=11 // pred_check
        %p345 = pneg %p109
      $region22: #{binary_conformer_forward.17} parent=11 // pred_check_branch
        %347 = sbr.rel (%p345) target = $region24
      $region23: #{binary_conformer_forward.17} parent=11 // pred_region
        _
      $region24: #{binary_conformer_forward.17} parent=11 // pred_fallthru
        _
      // Predicated region
      $region25: #{binary_conformer_forward.17} parent=11 // pred_check
        %p348 = pneg %p130
      $region26: #{binary_conformer_forward.17} parent=11 // pred_check_branch
        %350 = sbr.rel (%p348) target = $region28
      $region27: #{binary_conformer_forward.17} parent=11 // pred_region
        _
      $region28: #{binary_conformer_forward.17} parent=11 // pred_fallthru
        _
      // Predicated region
      $region29: #{binary_conformer_forward.17} parent=11 // pred_check
        %p351 = pneg %p151
      $region30: #{binary_conformer_forward.17} parent=11 // pred_check_branch
        %353 = sbr.rel (%p351) target = $region32
      $region31: #{binary_conformer_forward.17} parent=11 // pred_region
        _
      $region32: #{binary_conformer_forward.17} parent=11 // pred_fallthru
        _
      // Predicated region
      $region33: #{binary_conformer_forward.17} parent=11 // pred_check
        %p354 = pneg %p172
      $region34: #{binary_conformer_forward.17} parent=11 // pred_check_branch
        %356 = sbr.rel (%p354) target = $region36
      $region35: #{binary_conformer_forward.17} parent=11 // pred_region
        _
      $region36: #{binary_conformer_forward.17} parent=11 // pred_fallthru
        _
      // Predicated region
      $region37: #{binary_conformer_forward.17} parent=11 // pred_check
        %p357 = pneg %p193
      $region38: #{binary_conformer_forward.17} parent=11 // pred_check_branch
        %359 = sbr.rel (%p357) target = $region40
      $region39: #{binary_conformer_forward.17} parent=11 // pred_region
        _
      $region40: #{binary_conformer_forward.17} parent=11 // pred_fallthru
        _
      // Predicated region
      $region41: #{binary_conformer_forward.17} parent=11 // pred_check
        %p360 = pneg %p214
      $region42: #{binary_conformer_forward.17} parent=11 // pred_check_branch
        %362 = sbr.rel (%p360) target = $region44
      $region43: #{binary_conformer_forward.17} parent=11 // pred_region
        _
      $region44: #{binary_conformer_forward.17} parent=11 // pred_fallthru
        _
      // Predicated region
      $region45: #{binary_conformer_forward.17} parent=11 // pred_check
        %p363 = pneg %p235
      $region46: #{binary_conformer_forward.17} parent=11 // pred_check_branch
        %365 = sbr.rel (%p363) target = $region48
      $region47: #{binary_conformer_forward.17} parent=11 // pred_region
        _
      $region48: #{binary_conformer_forward.17} parent=11 // pred_fallthru
        _
      // Predicated region
      $region49: #{binary_conformer_forward.17} parent=11 // pred_check
        %p366 = pneg %p256
      $region50: #{binary_conformer_forward.17} parent=11 // pred_check_branch
        %368 = sbr.rel (%p366) target = $region52
      $region51: #{binary_conformer_forward.17} parent=11 // pred_region
        _
      $region52: #{binary_conformer_forward.17} parent=11 // pred_fallthru
        _
      // Predicated region
      $region53: #{binary_conformer_forward.17} parent=11 // pred_check
        %p369 = pneg %p277
      $region54: #{binary_conformer_forward.17} parent=11 // pred_check_branch
        %371 = sbr.rel (%p369) target = $region56
      $region55: #{binary_conformer_forward.17} parent=11 // pred_region
        _
      $region56: #{binary_conformer_forward.17} parent=11 // pred_fallthru
        _
      // Predicated region
      $region57: #{binary_conformer_forward.17} parent=11 // pred_check
        %p372 = pneg %p298
      $region58: #{binary_conformer_forward.17} parent=11 // pred_check_branch
        %374 = sbr.rel (%p372) target = $region60
      $region59: #{binary_conformer_forward.17} parent=11 // pred_region
        _
      $region60: #{binary_conformer_forward.17} parent=11 // pred_fallthru
        _
    $region12: #{binary_conformer_forward.17} parent=5 // pred_fallthru
      _
    %p375 = scmp.lt.s32.totalorder %s20, 2
    // Predicated region
    $region61: #{binary_conformer_forward.17} parent=5 // pred_check
      %p376 = pneg %p375
    $region62: #{binary_conformer_forward.17} parent=5 // pred_check_branch
      %378 = sbr.rel (%p376) target = $region64
    $region63: #{binary_conformer_forward.17} parent=5 // pred_region
      // Predicated region
      $region65: #{binary_conformer_forward.17} parent=63 // pred_check
        %p379 = pneg %p40
      $region66: #{binary_conformer_forward.17} parent=63 // pred_check_branch
        %381 = sbr.rel (%p379) target = $region68
      $region67: #{binary_conformer_forward.17} parent=63 // pred_region
        %p382 = scmp.lt.s32.totalorder %s20, 1
        %s383 = scalar_select %p382, %s20, 1
        %s384 = smul.addr %s383, 8
        %s385 = scalar_lea.vmem %s0, %s384
      $region68: #{binary_conformer_forward.17} parent=63 // pred_fallthru
        _
    $region64: #{binary_conformer_forward.17} parent=5 // pred_fallthru
      _
    %p386 = scmp.le.s32.totalorder 1, %s20
    %p387 = scmp.lt.s32.totalorder %s20, 3
    %p388 = pnand %p386, %p387
    %p389 = pneg %p388
    // Predicated region
    $region69: #{binary_conformer_forward.17} parent=5 // pred_check
      _
    $region70: #{binary_conformer_forward.17} parent=5 // pred_check_branch
      %391 = sbr.rel (%p388) target = $region72
    $region71: #{binary_conformer_forward.17} parent=5 // pred_region
      %s392 = ssub.s32 %s20, 1
      %p393 = scmp.lt.s32.totalorder %s25, 1
      %s394 = scalar_select %p393, %s25, 1
      %s395 = smul.addr %s394, 8
      %s396 = scalar_lea.vmem %s0, %s395
      %p397 = pneg %p46
      %p398 = pneg %p43
      %p399 = pneg %p67
      %p400 = pneg %p64
      %p401 = pneg %p88
      %p402 = pneg %p85
      %p403 = pneg %p109
      %p404 = pneg %p106
      %p405 = pneg %p130
      %p406 = pneg %p127
      %p407 = pneg %p151
      %p408 = pneg %p148
      %p409 = pneg %p172
      %p410 = pneg %p169
      %p411 = pneg %p193
      %p412 = pneg %p190
      %p413 = pneg %p214
      %p414 = pneg %p211
      %p415 = pneg %p235
      %p416 = pneg %p232
      %p417 = pneg %p256
      %p418 = pneg %p253
      %p419 = pneg %p277
      %p420 = pneg %p274
      %p421 = pneg %p298
      %p422 = pneg %p295
      %p423 = pneg %p324
      %p424 = pneg %p321
      %p425 = scmp.lt.s32.totalorder %s25, 1
      %s426 = scalar_select %p425, %s25, 1
      %s427 = smul.addr %s426, 8
      %s428 = scalar_lea.vmem %s13, %s427
      %p429 = scmp.lt.s32.totalorder %s25, 1
      %s430 = scalar_select %p429, %s25, 1
      %s431 = smul.addr %s430, 8
      %s432 = scalar_lea.vmem %s0, %s431
      %p433 = scmp.lt.s32.totalorder %s25, 1
      %s434 = scalar_select %p433, %s25, 1
      %s435 = smul.addr %s434, 8
      %s436 = scalar_lea.vmem %s13, %s435
      %v438 = vld [vmem:[%s432] sm:$0xff]
      %v439 = vld [vmem:[%s1] sm:$0x1]
      %v440 = vld [vmem:[%s2] sm:$0x1]
      %vm441 = vcmask 261120
      %v442 = vsel %vm441, %v438, 0.0
      %443 = vadd.xlane.f32.xlu0 %v442
      %v444 = vpop.xlane.xlu0 %443
      %v445 = vrcp.pop 32.0
      %v446 = vmul.f32 32.0, %v445
      %v447 = vsub.f32 1.0, %v446
      %v448 = vmul.f32 %v445, %v447
      %v449 = vadd.f32 %v445, %v448
      %vm450 = vweird.f32 %v445
      %v451 = vsel %vm450, %v445, %v449
      %v452 = vmul.f32 %v444, %v451
      %v453 = vsub.f32 %v438, %v452
      %v454 = vmul.f32 %v453, %v453
      %v455 = vsel %vm441, %v454, 0.0
      %456 = vadd.xlane.f32.xlu0 %v455
      %v457 = vpop.xlane.xlu0 %456
      %v458 = vmul.f32 %v457, %v451
      %v459 = vadd.f32 %v458, 1e-05
      %v460 = vrsqrt.pop %v459
      %v461 = vmul.f32 %v460, %v459
      %v462 = vmul.f32 %v461, %v460
      %v463 = vmul.f32 0.5, %v462
      %v464 = vsub.f32 1.5, %v463
      %v465 = vmul.f32 %v460, %v464
      %vm466 = vweird.f32 %v459
      %vm467 = vweird.f32 %v460
      %vm468 = vmor %vm466, %vm467
      %v469 = vsel %vm468, %v460, %v465
      %v470 = vmul.f32 %v453, %v469
      %v472 = vperm.slane %v439, 0
      %v474 = vmul.f32 %v470, %v472
      %v476 = vperm.slane %v440, 0
      %v478 = vadd.f32 %v474, %v476
      %v479 = vpack.c.bf16 %v478, %v478
      %v480 = vld [vmem:[%s3] sm:$0xf]
      %v481 = vld [vmem:[%s3 + $0x4] sm:$0xf]
      %v482 = vld [vmem:[%s3 + $0x8] sm:$0xf]
      %v483 = vld [vmem:[%s3 + $0xc] sm:$0xf]
      %v484 = vld [vmem:[%s4] sm:$0x1]
      %v486 = vperm.slane %v484, 0
      %v492 = vunpack.c.l.b16 %v480
      %v493 = vunpack.c.l.b16 %v481
      %v494 = vunpack.c.l.b16 %v482
      %v495 = vunpack.c.l.b16 %v483
      %v496 = vpack.c.b16 %v493, %v492
      %v497 = vpack.c.b16 %v495, %v494
      %v501 = vsel %vm441, %v479, 0
      %503 = vmatpush.bf16.msra.mxu0 0
      %504 = vmatpush.bf16.msra.mxu0 0
      %505 = vmatpush.bf16.msra.mxu0 0
      %506 = vmatpush.bf16.msra.mxu0 0
      %507 = vmatpush.bf16.msra.mxu0 0
      %508 = vmatpush.bf16.msra.mxu0 0
      %509 = vmatpush.bf16.msra.mxu0 %v497
      %510 = vmatpush.bf16.msra.mxu0 %v496
      %511 = vmatmul.bf16.gmra.mxu0 %v501
      %v512 = vpop.f32.mrf.mxu0
      %v513 = vadd.f32 %v486, %v512
      %v514 = vpop.f32.mrf.mxu0
      %515 = vdwg.mxu0
      %v516 = vxor.u32 %v513, 2147483648
      %v517 = vmul.f32 %v516, 1.442695
      %v518 = vpow.pop %v517
      %v519 = vadd.f32 %v518, 1.0
      %v520 = vrcp.pop %v519
      %v521 = vmul.f32 %v519, %v520
      %v522 = vsub.f32 1.0, %v521
      %v523 = vmul.f32 %v520, %v522
      %v524 = vadd.f32 %v520, %v523
      %vm525 = vweird.f32 %v519
      %vm526 = vweird.f32 %v520
      %vm527 = vmor %vm525, %vm526
      %v528 = vsel %vm527, %v520, %v524
      %v529 = vand.u32 2147483647, %v519
      %vm530 = vcmp.eq.f32.partialorder %v529, 8.507059e+37
      %v531 = vand.u32 %v519, 2147483648
      %v532 = vor.u32 1.1754944e-38, %v531
      %v533 = vsel %vm530, %v532, %v528
      %v534 = vmul.f32 1.0, %v533
      %536 = vrot.lane.b32.xlu0 %v534, 96
      %v537 = vpop.permute.xlu0 %536
      %v539 = vmul.f32 %v513, %v537
      %v540 = vlaneseq
      %v541 = vshrl.u32 %v540, 7
      %v542 = vld [vmem:[%s5] sm:$0x7f]
      %v544 = vrot.slane %v539, 5
      %vm546 = vcmask 1042432
      %v547 = vsel %vm546, %v544, %v544
      %vm548 = vcmp.ge.s32.totalorder %v541, 3
      %vm549 = vcmp.lt.s32.totalorder %v541, 11
      %vm550 = vmand %vm548, %vm549
      %v551 = vsel %vm550, 1, 0
      %vm552 = vcmp.eq.s32.totalorder %v551, 1
      %v553 = vsel %vm552, %v547, 0.0
      %v554 = vperm.slane %v542, 0
      %v555 = vmul.f32 %v553, %v554
      %v556 = vadd.f32 %v555, 0.0
      %v557 = vrot.slane %v539, 6
      %vm559 = vcmask 1041408
      %v560 = vsel %vm559, %v557, %v557
      %vm561 = vcmp.ge.s32.totalorder %v541, 2
      %vm562 = vcmp.lt.s32.totalorder %v541, 10
      %vm563 = vmand %vm561, %vm562
      %v564 = vsel %vm563, 1, 0
      %vm565 = vcmp.eq.s32.totalorder %v564, 1
      %v566 = vsel %vm565, %v560, 0.0
      %v567 = vperm.slane %v542, 1
      %v568 = vmul.f32 %v566, %v567
      %v569 = vadd.f32 %v556, %v568
      %v570 = vrot.slane %v539, 7
      %vm572 = vcmask 1040384
      %v573 = vsel %vm572, %v570, %v570
      %vm574 = vcmp.ge.s32.totalorder %v541, 1
      %vm575 = vcmp.lt.s32.totalorder %v541, 9
      %vm576 = vmand %vm574, %vm575
      %v577 = vsel %vm576, 1, 0
      %vm578 = vcmp.eq.s32.totalorder %v577, 1
      %v579 = vsel %vm578, %v573, 0.0
      %v580 = vperm.slane %v542, 2
      %v581 = vmul.f32 %v579, %v580
      %v582 = vadd.f32 %v569, %v581
      %v583 = vperm.slane %v542, 3
      %v584 = vmul.f32 %v539, %v583
      %v585 = vadd.f32 %v582, %v584
      %v586 = vrot.slane %v539, 1
      %vm588 = vcmask 1046528
      %v589 = vsel %vm588, %v586, %v586
      %vm590 = vcmp.ge.s32.totalorder %v541, 4294967295
      %vm591 = vcmp.lt.s32.totalorder %v541, 7
      %vm592 = vmand %vm590, %vm591
      %v593 = vsel %vm592, 1, 0
      %vm594 = vcmp.eq.s32.totalorder %v593, 1
      %v595 = vsel %vm594, %v589, 0.0
      %v596 = vperm.slane %v542, 4
      %v597 = vmul.f32 %v595, %v596
      %v598 = vadd.f32 %v585, %v597
      %v599 = vrot.slane %v539, 2
      %vm601 = vcmask 1045504
      %v602 = vsel %vm601, %v599, %v599
      %vm603 = vcmp.ge.s32.totalorder %v541, 4294967294
      %vm604 = vcmp.lt.s32.totalorder %v541, 6
      %vm605 = vmand %vm603, %vm604
      %v606 = vsel %vm605, 1, 0
      %vm607 = vcmp.eq.s32.totalorder %v606, 1
      %v608 = vsel %vm607, %v602, 0.0
      %v609 = vperm.slane %v542, 5
      %v610 = vmul.f32 %v608, %v609
      %v611 = vadd.f32 %v598, %v610
      %v612 = vrot.slane %v539, 3
      %vm614 = vcmask 1044480
      %v615 = vsel %vm614, %v612, %v612
      %vm616 = vcmp.ge.s32.totalorder %v541, 4294967293
      %vm617 = vcmp.lt.s32.totalorder %v541, 5
      %vm618 = vmand %vm616, %vm617
      %v619 = vsel %vm618, 1, 0
      %vm620 = vcmp.eq.s32.totalorder %v619, 1
      %v621 = vsel %vm620, %v615, 0.0
      %v622 = vperm.slane %v542, 6
      %v623 = vmul.f32 %v621, %v622
      %v624 = vadd.f32 %v611, %v623
      %v625 = vld [vmem:[%s8] sm:$0x1]
      %v627 = vperm.slane %v625, 0
      %v629 = vsub.f32 %v624, %v627
      %v630 = vld [vmem:[%s9] sm:$0x1]
      %v631 = vadd.f32 %v630, 1e-05
      %v632 = vrsqrt.pop %v631
      %v633 = vmul.f32 %v632, %v631
      %v634 = vmul.f32 %v633, %v632
      %v635 = vmul.f32 0.5, %v634
      %v636 = vsub.f32 1.5, %v635
      %v637 = vmul.f32 %v632, %v636
      %vm638 = vweird.f32 %v631
      %vm639 = vweird.f32 %v632
      %vm640 = vmor %vm638, %vm639
      %v641 = vsel %vm640, %v632, %v637
      %v643 = vperm.slane %v641, 0
      %v645 = vmul.f32 %v629, %v643
      %v646 = vld [vmem:[%s6] sm:$0x1]
      %v648 = vperm.slane %v646, 0
      %v650 = vmul.f32 %v645, %v648
      %v651 = vld [vmem:[%s7] sm:$0x1]
      %v653 = vperm.slane %v651, 0
      %v655 = vadd.f32 %v650, %v653
      %v656 = vxor.u32 %v655, 2147483648
      %v657 = vmul.f32 %v656, 1.442695
      %v658 = vpow.pop %v657
      %v659 = vadd.f32 %v658, 1.0
      %v660 = vrcp.pop %v659
      %v661 = vmul.f32 %v659, %v660
      %v662 = vsub.f32 1.0, %v661
      %v663 = vmul.f32 %v660, %v662
      %v664 = vadd.f32 %v660, %v663
      %vm665 = vweird.f32 %v659
      %vm666 = vweird.f32 %v660
      %vm667 = vmor %vm665, %vm666
      %v668 = vsel %vm667, %v660, %v664
      %v669 = vand.u32 2147483647, %v659
      %vm670 = vcmp.eq.f32.partialorder %v669, 8.507059e+37
      %v671 = vand.u32 %v659, 2147483648
      %v672 = vor.u32 1.1754944e-38, %v671
      %v673 = vsel %vm670, %v672, %v668
      %v674 = vmul.f32 1.0, %v673
      %v675 = vmul.f32 %v655, %v674
      %v676 = vpack.c.bf16 %v675, %v675
      %v677 = vld [vmem:[%s10] sm:$0xf]
      %v678 = vld [vmem:[%s10 + $0x4] sm:$0xf]
      %v679 = vld [vmem:[%s10 + $0x8] sm:$0xf]
      %v680 = vld [vmem:[%s10 + $0xc] sm:$0xf]
      %v681 = vld [vmem:[%s11] sm:$0x1]
      %v683 = vperm.slane %v681, 0
      %v689 = vunpack.c.l.b16 %v677
      %v690 = vunpack.c.l.b16 %v678
      %v691 = vunpack.c.l.b16 %v679
      %v692 = vunpack.c.l.b16 %v680
      %v693 = vpack.c.b16 %v690, %v689
      %v694 = vpack.c.b16 %v692, %v691
      %v698 = vsel %vm441, %v676, 0
      %700 = vmatpush.bf16.msra.mxu0 0
      %701 = vmatpush.bf16.msra.mxu0 0
      %702 = vmatpush.bf16.msra.mxu0 0
      %703 = vmatpush.bf16.msra.mxu0 0
      %704 = vmatpush.bf16.msra.mxu0 0
      %705 = vmatpush.bf16.msra.mxu0 0
      %706 = vmatpush.bf16.msra.mxu0 %v694
      %707 = vmatpush.bf16.msra.mxu0 %v693
      %708 = vmatmul.bf16.gmra.mxu0 %v698
      %v709 = vpop.f32.mrf.mxu0
      %v710 = vadd.f32 %v683, %v709
      %v711 = vpop.f32.mrf.mxu0
      %712 = vdwg.mxu0
      %s713 = sld [smem:[#allocation2]]
      %v714 = vstv %s713
      %v715 = vmul.f32 %v714, %v710
      %v716 = vadd.f32 %v438, %v715
      %717 = vst.msk [vmem:[%s436] sm:$0xff] %vm441, %v716
      %p718 = scmp.lt.s32.totalorder %s25, 1
      %s719 = scalar_select %p718, %s25, 1
      %s720 = smul.addr %s719, 8
      %s721 = scalar_lea.vmem %s13, %s720
      // Predicated region
      $region73: #{binary_conformer_forward.17} parent=71 // pred_check
        %p722 = pneg %p321
      $region74: #{binary_conformer_forward.17} parent=71 // pred_check_branch
        %724 = sbr.rel (%p722) target = $region76
      $region75: #{binary_conformer_forward.17} parent=71 // pred_region
        _
      $region76: #{binary_conformer_forward.17} parent=71 // pred_fallthru
        _
    $region72: #{binary_conformer_forward.17} parent=5 // pred_fallthru
      _
    %p725 = scmp.le.s32.totalorder 2, %s20
    // Predicated region
    $region77: #{binary_conformer_forward.17} parent=5 // pred_check
      %p726 = pneg %p725
    $region78: #{binary_conformer_forward.17} parent=5 // pred_check_branch
      %728 = sbr.rel (%p726) target = $region80
    $region79: #{binary_conformer_forward.17} parent=5 // pred_region
      %s729 = ssub.s32 %s20, 2
      // Predicated region
      $region81: #{binary_conformer_forward.17} parent=79 // pred_check
        %p730 = pneg %p327
      $region82: #{binary_conformer_forward.17} parent=79 // pred_check_branch
        %732 = sbr.rel (%p730) target = $region84
      $region83: #{binary_conformer_forward.17} parent=79 // pred_region
        %p733 = scmp.lt.s32.totalorder %s26, 1
        %s734 = scalar_select %p733, %s26, 1
        %s735 = smul.addr %s734, 8
        %s736 = scalar_lea.vmem %s13, %s735
      $region84: #{binary_conformer_forward.17} parent=79 // pred_fallthru
        _
    $region80: #{binary_conformer_forward.17} parent=5 // pred_fallthru
      _
  $region6: #{binary_conformer_forward.17} parent=0 // loop_footer
    %s24 = sadd.s32 1, %s20
  $region7: #{binary_conformer_forward.17} parent=0 // loop_footer_branch
    %19 = sbr.rel target = $region3
  $region8: #{binary_conformer_forward.17} parent=0 // loop_exit
    _

</llo_original>
